<compile_context>
chip_gen: v5e
topology: v5e:2x2
jax: 0.10.0
libtpu: 0.0.40
codegen_flags: <defaults>
</compile_context>

<pallas_src>
import math

import numpy as np
import jax
import jax.numpy as jnp
from jax import lax
from jax.experimental import pallas as pl
from jax.experimental.pallas import tpu as pltpu

# ----------------------------- small config ---------------------------------
B = 2                      # batch
C_IN = 3                   # image channels
IMG_H, IMG_W = 32, 16      # small stand-in for 384x128
PATCH = 8                  # small stand-in for 16
EMBED = 128                # small stand-in for 768
DEPTH = 3                  # small stand-in for 8; local_feature -> run DEPTH-1 blocks
HEADS = 4
MLP_RATIO = 3              # same as vit_small_patch16_224_TransReID
HEAD_DIM = EMBED // HEADS
MLP_HIDDEN = EMBED * MLP_RATIO
N_H, N_W = IMG_H // PATCH, IMG_W // PATCH
NUM_PATCHES = N_H * N_W              # 8
SEQ = NUM_PATCHES + 1                # 9 (CLS + patches)
SEQ_P = 16                           # padded sequence (multiple of 8 sublanes)
PATCH_DIM = C_IN * PATCH * PATCH     # 192
PATCH_DIM_P = 256                    # padded contraction dim (whole vregs)
NB = DEPTH - 1                       # local_feature=True: blocks[:-1]
QK_SCALE = EMBED ** -0.5             # TransReID quirk: full embed dim
EPS = 1e-6                           # timm ViT LayerNorm eps
NEG_BIG = -1e30                      # additive mask for padded keys
_GELU_C = math.sqrt(2.0 / math.pi)


# ----------------------------- kernel helpers --------------------------------
def _gelu_tanh(x):
    # tanh-form GELU: moves the transcendental to the (otherwise idle) EUP slot.
    return 0.5 * x * (1.0 + jnp.tanh(_GELU_C * (x + 0.044715 * x * x * x)))


def _layer_norm(v, g, b):
    mu = jnp.mean(v, axis=-1, keepdims=True)
    var = jnp.mean((v - mu) * (v - mu), axis=-1, keepdims=True)
    return (v - mu) * lax.rsqrt(var + EPS) * g + b


# ----------------------------- fused kernel ----------------------------------
def fused_vit_kernel(
    patches_ref, patch_w_ref, patch_b_ref, base_ref,
    ln1_g_ref, ln1_b_ref, qkv_w_ref, pw_ref, proj_b_ref,
    ln2_g_ref, ln2_b_ref, fc1_w_ref, fc1_b_ref, fc2_w_ref, fc2_b_ref,
    out_ref,
):
    # ---- prologue: patch embed + CLS + pos ----------------------------------
    tok = jnp.dot(patches_ref[0], patch_w_ref[...],
                  preferred_element_type=jnp.float32) + patch_b_ref[...]
    row = lax.broadcasted_iota(jnp.int32, (SEQ_P, 1), 0)
    tok_mask = jnp.logical_and(row >= 1, row < SEQ).astype(jnp.float32)
    # base already holds: row0 = cls + pos[0], rows 1..SEQ-1 = pos, pads = 0
    x = tok * tok_mask + base_ref[...]                       # (SEQ_P, EMBED) f32

    kcol = lax.broadcasted_iota(jnp.int32, (1, SEQ_P), 1)
    key_bias = jnp.where(kcol < SEQ, 0.0, NEG_BIG)           # mask padded keys

    # ---- transformer blocks (depth collapsed into a static in-kernel loop) --
    for d in range(NB):
        # ------------------------- attention ---------------------------------
        h = _layer_norm(x, ln1_g_ref[d], ln1_b_ref[d]).astype(jnp.bfloat16)
        # single lane-dense fused QKV matmul: (16,128) x (128,384)
        qkv = jnp.dot(h, qkv_w_ref[d], preferred_element_type=jnp.float32)
        qkvb = qkv.astype(jnp.bfloat16)
        pw_d = pw_ref[d][...].astype(jnp.bfloat16)            # (EMBED, EMBED)

        attn_acc = jnp.zeros((SEQ_P, EMBED), jnp.float32)
        for hh in range(HEADS):
            lo = hh * HEAD_DIM
            q_h = qkvb[:, 0 * EMBED + lo: 0 * EMBED + lo + HEAD_DIM]   # (S, Dh)
            k_h = qkvb[:, 1 * EMBED + lo: 1 * EMBED + lo + HEAD_DIM]
            v_h = qkvb[:, 2 * EMBED + lo: 2 * EMBED + lo + HEAD_DIM]

            s = lax.dot_general(q_h, k_h, (((1,), (1,)), ((), ())),
                                preferred_element_type=jnp.float32) * QK_SCALE
            s = s + key_bias
            s = s - jnp.max(s, axis=-1, keepdims=True)
            e = jnp.exp(s)
            p = e * pl.reciprocal(jnp.sum(e, axis=-1, keepdims=True), approx=True)

            av = jnp.dot(p.astype(jnp.bfloat16), v_h,
                         preferred_element_type=jnp.float32)            # (S, Dh)
            # concat-over-heads + output projection == per-head matmul + add
            attn_acc = attn_acc + jnp.dot(
                av.astype(jnp.bfloat16), pw_d[lo: lo + HEAD_DIM, :],
                preferred_element_type=jnp.float32)
        x = x + attn_acc + proj_b_ref[d]                     # drop_path == identity

        # --------------------------- MLP --------------------------------------
        h2 = _layer_norm(x, ln2_g_ref[d], ln2_b_ref[d]).astype(jnp.bfloat16)
        h2 = jnp.dot(h2, fc1_w_ref[d],
                     preferred_element_type=jnp.float32) + fc1_b_ref[d]
        h2 = _gelu_tanh(h2)
        h2 = jnp.dot(h2.astype(jnp.bfloat16), fc2_w_ref[d],
                     preferred_element_type=jnp.float32) + fc2_b_ref[d]
        x = x + h2

    out_ref[0] = x


# ----------------------------- wrapper ----------------------------------------
_WEIGHT_NAMES = ("patch_w", "patch_b", "base",
                 "ln1_g", "ln1_b", "qkv_w", "pw", "proj_b",
                 "ln2_g", "ln2_b", "fc1_w", "fc1_b", "fc2_w", "fc2_b")


def _rep_spec(a):
    n = a.ndim
    return pl.BlockSpec(tuple(a.shape), lambda b, _n=n: (0,) * _n)


def vit_pallas(patches, pk):
    weight_args = tuple(pk[name] for name in _WEIGHT_NAMES)
    in_specs = [pl.BlockSpec((1, SEQ_P, PATCH_DIM_P), lambda b: (b, 0, 0))]
    in_specs += [_rep_spec(pk[name]) for name in _WEIGHT_NAMES]

    return pl.pallas_call(
        fused_vit_kernel,
        out_shape=jax.ShapeDtypeStruct((B, SEQ_P, EMBED), jnp.float32),
        grid=(B,),
        in_specs=in_specs,
        out_specs=pl.BlockSpec((1, SEQ_P, EMBED), lambda b: (b, 0, 0)),
        compiler_params=pltpu.CompilerParams(
            dimension_semantics=("parallel",)),
    )(patches, *weight_args)


def extract_patches_padded(x_nchw):
    # (B, C, H, W) -> (B, SEQ_P, PATCH_DIM_P); (c, ph, pw) flatten order matches
    # Conv2d weight layout. Row 0 (CLS slot) and rows SEQ.. are zero padding;
    # contraction dim zero-padded 192 -> 256 for whole-vreg loads.
    xb = x_nchw.reshape(B, C_IN, N_H, PATCH, N_W, PATCH)
    xb = xb.transpose(0, 2, 4, 1, 3, 5).reshape(B, NUM_PATCHES, PATCH_DIM)
    p = jnp.zeros((B, SEQ_P, PATCH_DIM_P), jnp.float32)
    p = p.at[:, 1:SEQ, :PATCH_DIM].set(xb)
    return p.astype(jnp.bfloat16)


def forward(x_nchw, packed):
    patches = extract_patches_padded(x_nchw)
    out_full = vit_pallas(patches, packed)          # (B, SEQ_P, EMBED)
    return out_full[:, 1:SEQ]                       # drop CLS, drop padding


# ----------------------------- param init / packing ---------------------------
def init_params(key):
    keys = iter(jax.random.split(key, 64))

    def nrm(shape, std=0.02):
        return jax.random.normal(next(keys), shape, jnp.float32) * std

    params = {
        "patch_w": nrm((PATCH_DIM, EMBED)),
        "patch_b": jnp.zeros((1, EMBED), jnp.float32),
        "cls": nrm((1, 1, EMBED)),
        "pos": nrm((1, SEQ, EMBED)),
        "blocks": [],
    }
    for _ in range(NB):
        params["blocks"].append(dict(
            ln1_g=jnp.ones((1, EMBED), jnp.float32),
            ln1_b=jnp.zeros((1, EMBED), jnp.float32),
            qkv_w=nrm((EMBED, 3 * EMBED)),        # qkv_bias=False in vit_small TransReID
            proj_w=nrm((EMBED, EMBED)),
            proj_b=jnp.zeros((1, EMBED), jnp.float32),
            ln2_g=jnp.ones((1, EMBED), jnp.float32),
            ln2_b=jnp.zeros((1, EMBED), jnp.float32),
            fc1_w=nrm((EMBED, MLP_HIDDEN)),
            fc1_b=jnp.zeros((1, MLP_HIDDEN), jnp.float32),
            fc2_w=nrm((MLP_HIDDEN, EMBED)),
            fc2_b=jnp.zeros((1, EMBED), jnp.float32),
        ))
    return params


def pack_params(params):
    blocks = params["blocks"]

    def stack(name, dtype=jnp.float32):
        return jnp.stack([blk[name] for blk in blocks]).astype(dtype)

    pos = params["pos"][0]                                         # (SEQ, E)
    base = jnp.zeros((SEQ_P, EMBED), jnp.float32)
    base = base.at[:SEQ].set(pos)
    base = base.at[0].add(params["cls"][0, 0])                     # CLS folded in

    patch_w = jnp.pad(params["patch_w"],
                      ((0, PATCH_DIM_P - PATCH_DIM), (0, 0)))

    return dict(
        patch_w=patch_w.astype(jnp.bfloat16),
        patch_b=params["patch_b"],
        base=base,
        ln1_g=stack("ln1_g"), ln1_b=stack("ln1_b"),
        qkv_w=stack("qkv_w", jnp.bfloat16),                        # (NB, E, 3E)
        pw=stack("proj_w", jnp.bfloat16),                          # (NB, E, E)
        proj_b=stack("proj_b"),
        ln2_g=stack("ln2_g"), ln2_b=stack("ln2_b"),
        fc1_w=stack("fc1_w", jnp.bfloat16), fc1_b=stack("fc1_b"),
        fc2_w=stack("fc2_w", jnp.bfloat16), fc2_b=stack("fc2_b"),
    )


# ----------------------------- pure-JAX reference -----------------------------
def reference_forward(x_nchw, params):
    xb = x_nchw.reshape(B, C_IN, N_H, PATCH, N_W, PATCH)
    xb = xb.transpose(0, 2, 4, 1, 3, 5).reshape(B, NUM_PATCHES, PATCH_DIM)
    tok = xb @ params["patch_w"] + params["patch_b"]
    cls = jnp.broadcast_to(params["cls"], (B, 1, EMBED))
    x = jnp.concatenate([cls, tok], axis=1) + params["pos"]

    def ln(v, g, b):
        mu = v.mean(-1, keepdims=True)
        var = ((v - mu) ** 2).mean(-1, keepdims=True)
        return (v - mu) / jnp.sqrt(var + EPS) * g + b

    def heads(t):
        return t.reshape(B, SEQ, HEADS, HEAD_DIM).transpose(0, 2, 1, 3)

    for blk in params["blocks"]:
        h = ln(x, blk["ln1_g"], blk["ln1_b"])
        qkv = h @ blk["qkv_w"]
        q, k, v = jnp.split(qkv, 3, axis=-1)
        q, k, v = heads(q), heads(k), heads(v)
        att = jax.nn.softmax(jnp.einsum('bhsd,bhtd->bhst', q, k) * QK_SCALE, axis=-1)
        o = jnp.einsum('bhst,bhtd->bhsd', att, v).transpose(0, 2, 1, 3)
        o = o.reshape(B, SEQ, EMBED)
        x = x + o @ blk["proj_w"] + blk["proj_b"]
        h2 = ln(x, blk["ln2_g"], blk["ln2_b"])
        h2 = jax.nn.gelu(h2 @ blk["fc1_w"] + blk["fc1_b"], approximate=False)
        x = x + h2 @ blk["fc2_w"] + blk["fc2_b"]
    return x[:, 1:]


# ----------------------------- main -------------------------------------------
if __name__ == "__main__":
    key = jax.random.PRNGKey(0)
    kx, kp = jax.random.split(key)
    x = jax.random.normal(kx, (B, C_IN, IMG_H, IMG_W), jnp.float32)
    params = init_params(kp)
    packed = pack_params(params)

    fwd = jax.jit(forward)
    out = jax.block_until_ready(fwd(x, packed))

    assert out.shape == (B, NUM_PATCHES, EMBED), out.shape
    assert bool(jnp.all(jnp.isfinite(out)))

    # loose tolerance: kernel uses bf16 MXU operands (f32 accumulation),
    # tanh-GELU and EUP approx reciprocal in softmax
    ref = reference_forward(x, params)
    np.testing.assert_allclose(np.asarray(out), np.asarray(ref),
                               rtol=2e-2, atol=2e-2)
    print("KERNEL_OK")
</pallas_src>

<mosaic_0001>
module attributes {stable_mosaic.version = 11 : i64} {
  func.func @fused_vit_kernel(%arg0: i32, %arg1: memref<1x16x256xbf16, #tpu.memory_space<vmem>>, %arg2: memref<256x128xbf16, #tpu.memory_space<vmem>>, %arg3: memref<1x128xf32, #tpu.memory_space<vmem>>, %arg4: memref<16x128xf32, #tpu.memory_space<vmem>>, %arg5: memref<2x1x128xf32, #tpu.memory_space<vmem>>, %arg6: memref<2x1x128xf32, #tpu.memory_space<vmem>>, %arg7: memref<2x128x384xbf16, #tpu.memory_space<vmem>>, %arg8: memref<2x128x128xbf16, #tpu.memory_space<vmem>>, %arg9: memref<2x1x128xf32, #tpu.memory_space<vmem>>, %arg10: memref<2x1x128xf32, #tpu.memory_space<vmem>>, %arg11: memref<2x1x128xf32, #tpu.memory_space<vmem>>, %arg12: memref<2x128x384xbf16, #tpu.memory_space<vmem>>, %arg13: memref<2x1x384xf32, #tpu.memory_space<vmem>>, %arg14: memref<2x384x128xbf16, #tpu.memory_space<vmem>>, %arg15: memref<2x1x128xf32, #tpu.memory_space<vmem>>, %arg16: memref<1x16x128xf32, #tpu.memory_space<vmem>>) attributes {dimension_semantics = [#tpu.dimension_semantics<parallel>], iteration_bounds = array<i64: 2>, scalar_prefetch = 0 : i64, scratch_operands = 0 : i64, tpu.core_type = #tpu.core_type<tc>, window_params = [{transform_indices = @transform_0, window_bounds = array<i64: 1, 16, 256>}, {pipeline_mode = #tpu.pipeline_mode<synchronous>, transform_indices = @transform_1, window_bounds = array<i64: 256, 128>}, {pipeline_mode = #tpu.pipeline_mode<synchronous>, transform_indices = @transform_2, window_bounds = array<i64: 1, 128>}, {pipeline_mode = #tpu.pipeline_mode<synchronous>, transform_indices = @transform_3, window_bounds = array<i64: 16, 128>}, {pipeline_mode = #tpu.pipeline_mode<synchronous>, transform_indices = @transform_4, window_bounds = array<i64: 2, 1, 128>}, {pipeline_mode = #tpu.pipeline_mode<synchronous>, transform_indices = @transform_5, window_bounds = array<i64: 2, 1, 128>}, {pipeline_mode = #tpu.pipeline_mode<synchronous>, transform_indices = @transform_6, window_bounds = array<i64: 2, 128, 384>}, {pipeline_mode = #tpu.pipeline_mode<synchronous>, transform_indices = @transform_7, window_bounds = array<i64: 2, 128, 128>}, {pipeline_mode = #tpu.pipeline_mode<synchronous>, transform_indices = @transform_8, window_bounds = array<i64: 2, 1, 128>}, {pipeline_mode = #tpu.pipeline_mode<synchronous>, transform_indices = @transform_9, window_bounds = array<i64: 2, 1, 128>}, {pipeline_mode = #tpu.pipeline_mode<synchronous>, transform_indices = @transform_10, window_bounds = array<i64: 2, 1, 128>}, {pipeline_mode = #tpu.pipeline_mode<synchronous>, transform_indices = @transform_11, window_bounds = array<i64: 2, 128, 384>}, {pipeline_mode = #tpu.pipeline_mode<synchronous>, transform_indices = @transform_12, window_bounds = array<i64: 2, 1, 384>}, {pipeline_mode = #tpu.pipeline_mode<synchronous>, transform_indices = @transform_13, window_bounds = array<i64: 2, 384, 128>}, {pipeline_mode = #tpu.pipeline_mode<synchronous>, transform_indices = @transform_14, window_bounds = array<i64: 2, 1, 128>}, {transform_indices = @transform_15, window_bounds = array<i64: 1, 16, 128>}]} {
    %c0 = arith.constant 0 : index
    %c0_0 = arith.constant 0 : index
    %c0_1 = arith.constant 0 : index
    %0 = vector.load %arg1[%c0, %c0_0, %c0_1] : memref<1x16x256xbf16, #tpu.memory_space<vmem>>, vector<1x16x256xbf16>
    %1 = vector.shape_cast %0 : vector<1x16x256xbf16> to vector<16x256xbf16>
    %c0_2 = arith.constant 0 : index
    %c0_3 = arith.constant 0 : index
    %2 = vector.load %arg2[%c0_2, %c0_3] : memref<256x128xbf16, #tpu.memory_space<vmem>>, vector<256x128xbf16>
    %cst = arith.constant dense<0.000000e+00> : vector<16x128xf32>
    %3 = tpu.matmul %1, %2, %cst {dimension_numbers = #tpu.dot_dimension_numbers<[1], [0], [0], [1], [0, 0, 1, 1], [], []>} : vector<16x256xbf16>, vector<256x128xbf16>, vector<16x128xf32> -> vector<16x128xf32>
    %c0_4 = arith.constant 0 : index
    %c0_5 = arith.constant 0 : index
    %4 = vector.load %arg3[%c0_4, %c0_5] : memref<1x128xf32, #tpu.memory_space<vmem>>, vector<1x128xf32>
    %5 = vector.broadcast %4 : vector<1x128xf32> to vector<16x128xf32>
    %6 = arith.addf %3, %5 : vector<16x128xf32>
    %7 = tpu.iota {dimensions = array<i32: 0>} : vector<16x1xi32>
    %c1_i32 = arith.constant 1 : i32
    %8 = vector.broadcast %c1_i32 : i32 to vector<16x1xi32>
    %9 = arith.cmpi sge, %7, %8 : vector<16x1xi32>
    %c9_i32 = arith.constant 9 : i32
    %10 = vector.broadcast %c9_i32 : i32 to vector<16x1xi32>
    %11 = arith.cmpi slt, %7, %10 : vector<16x1xi32>
    %12 = arith.andi %9, %11 : vector<16x1xi1>
    %13 = arith.extui %12 : vector<16x1xi1> to vector<16x1xi32>
    %14 = arith.sitofp %13 : vector<16x1xi32> to vector<16x1xf32>
    %15 = vector.broadcast %14 : vector<16x1xf32> to vector<16x128xf32>
    %16 = arith.mulf %6, %15 : vector<16x128xf32>
    %c0_6 = arith.constant 0 : index
    %c0_7 = arith.constant 0 : index
    %17 = vector.load %arg4[%c0_6, %c0_7] : memref<16x128xf32, #tpu.memory_space<vmem>>, vector<16x128xf32>
    %18 = arith.addf %16, %17 : vector<16x128xf32>
    %19 = tpu.iota {dimensions = array<i32: 1>} : vector<1x16xi32>
    %c9_i32_8 = arith.constant 9 : i32
    %20 = vector.broadcast %c9_i32_8 : i32 to vector<1x16xi32>
    %21 = arith.cmpi slt, %19, %20 : vector<1x16xi32>
    %cst_9 = arith.constant 0.000000e+00 : f32
    %cst_10 = arith.constant -1.000000e+30 : f32
    %22 = vector.broadcast %cst_9 : f32 to vector<1x16xf32>
    %23 = vector.broadcast %cst_10 : f32 to vector<1x16xf32>
    %24 = arith.select %21, %22, %23 : vector<1x16xi1>, vector<1x16xf32>
    %c0_11 = arith.constant 0 : index
    %c0_12 = arith.constant 0 : index
    %c0_13 = arith.constant 0 : index
    %25 = vector.load %arg5[%c0_11, %c0_12, %c0_13] : memref<2x1x128xf32, #tpu.memory_space<vmem>>, vector<1x1x128xf32>
    %26 = vector.shape_cast %25 : vector<1x1x128xf32> to vector<1x128xf32>
    %c0_14 = arith.constant 0 : index
    %c0_15 = arith.constant 0 : index
    %c0_16 = arith.constant 0 : index
    %27 = vector.load %arg6[%c0_14, %c0_15, %c0_16] : memref<2x1x128xf32, #tpu.memory_space<vmem>>, vector<1x1x128xf32>
    %28 = vector.shape_cast %27 : vector<1x1x128xf32> to vector<1x128xf32>
    %cst_17 = arith.constant dense<0.000000e+00> : vector<16xf32>
    %29 = vector.multi_reduction <add>, %18, %cst_17 [1] : vector<16x128xf32> to vector<16xf32>
    %30 = vector.shape_cast %29 : vector<16xf32> to vector<16x1xf32>
    %cst_18 = arith.constant 1.280000e+02 : f32
    %31 = vector.broadcast %cst_18 : f32 to vector<16x1xf32>
    %32 = arith.divf %30, %31 : vector<16x1xf32>
    %33 = vector.broadcast %32 : vector<16x1xf32> to vector<16x128xf32>
    %34 = arith.subf %18, %33 : vector<16x128xf32>
    %35 = vector.broadcast %32 : vector<16x1xf32> to vector<16x128xf32>
    %36 = arith.subf %18, %35 : vector<16x128xf32>
    %37 = arith.mulf %34, %36 : vector<16x128xf32>
    %cst_19 = arith.constant dense<0.000000e+00> : vector<16xf32>
    %38 = vector.multi_reduction <add>, %37, %cst_19 [1] : vector<16x128xf32> to vector<16xf32>
    %39 = vector.shape_cast %38 : vector<16xf32> to vector<16x1xf32>
    %cst_20 = arith.constant 1.280000e+02 : f32
    %40 = vector.broadcast %cst_20 : f32 to vector<16x1xf32>
    %41 = arith.divf %39, %40 : vector<16x1xf32>
    %42 = vector.broadcast %32 : vector<16x1xf32> to vector<16x128xf32>
    %43 = arith.subf %18, %42 : vector<16x128xf32>
    %cst_21 = arith.constant 9.99999997E-7 : f32
    %44 = vector.broadcast %cst_21 : f32 to vector<16x1xf32>
    %45 = arith.addf %41, %44 : vector<16x1xf32>
    %46 = math.rsqrt %45 : vector<16x1xf32>
    %47 = vector.broadcast %46 : vector<16x1xf32> to vector<16x128xf32>
    %48 = arith.mulf %43, %47 : vector<16x128xf32>
    %49 = vector.broadcast %26 : vector<1x128xf32> to vector<16x128xf32>
    %50 = arith.mulf %48, %49 : vector<16x128xf32>
    %51 = vector.broadcast %28 : vector<1x128xf32> to vector<16x128xf32>
    %52 = arith.addf %50, %51 : vector<16x128xf32>
    %53 = arith.truncf %52 : vector<16x128xf32> to vector<16x128xbf16>
    %c0_22 = arith.constant 0 : index
    %c0_23 = arith.constant 0 : index
    %c0_24 = arith.constant 0 : index
    %54 = vector.load %arg7[%c0_22, %c0_23, %c0_24] : memref<2x128x384xbf16, #tpu.memory_space<vmem>>, vector<1x128x384xbf16>
    %55 = vector.shape_cast %54 : vector<1x128x384xbf16> to vector<128x384xbf16>
    %cst_25 = arith.constant dense<0.000000e+00> : vector<16x384xf32>
    %56 = tpu.matmul %53, %55, %cst_25 {dimension_numbers = #tpu.dot_dimension_numbers<[1], [0], [0], [1], [0, 0, 1, 1], [], []>} : vector<16x128xbf16>, vector<128x384xbf16>, vector<16x384xf32> -> vector<16x384xf32>
    %57 = arith.truncf %56 : vector<16x384xf32> to vector<16x384xbf16>
    %c0_26 = arith.constant 0 : index
    %c0_27 = arith.constant 0 : index
    %c0_28 = arith.constant 0 : index
    %58 = vector.load %arg8[%c0_26, %c0_27, %c0_28] : memref<2x128x128xbf16, #tpu.memory_space<vmem>>, vector<1x128x128xbf16>
    %59 = vector.shape_cast %58 : vector<1x128x128xbf16> to vector<128x128xbf16>
    %cst_29 = arith.constant 0.000000e+00 : f32
    %60 = vector.broadcast %cst_29 : f32 to vector<16x128xf32>
    %61 = vector.extract_strided_slice %57 {offsets = [0, 0], sizes = [16, 32], strides = [1, 1]} : vector<16x384xbf16> to vector<16x32xbf16>
    %62 = vector.extract_strided_slice %57 {offsets = [0, 128], sizes = [16, 32], strides = [1, 1]} : vector<16x384xbf16> to vector<16x32xbf16>
    %63 = vector.extract_strided_slice %57 {offsets = [0, 256], sizes = [16, 32], strides = [1, 1]} : vector<16x384xbf16> to vector<16x32xbf16>
    %cst_30 = arith.constant dense<0.000000e+00> : vector<16x16xf32>
    %64 = tpu.matmul %61, %62, %cst_30 {dimension_numbers = #tpu.dot_dimension_numbers<[1], [1], [0], [0], [0, 0, 1, 0], [], []>} : vector<16x32xbf16>, vector<16x32xbf16>, vector<16x16xf32> -> vector<16x16xf32>
    %cst_31 = arith.constant 0.0883883461 : f32
    %65 = vector.broadcast %cst_31 : f32 to vector<16x16xf32>
    %66 = arith.mulf %64, %65 : vector<16x16xf32>
    %67 = vector.broadcast %24 : vector<1x16xf32> to vector<16x16xf32>
    %68 = arith.addf %66, %67 : vector<16x16xf32>
    %cst_32 = arith.constant dense<0xFF800000> : vector<16xf32>
    %69 = vector.multi_reduction <maximumf>, %68, %cst_32 [1] : vector<16x16xf32> to vector<16xf32>
    %70 = vector.shape_cast %69 : vector<16xf32> to vector<16x1xf32>
    %71 = vector.broadcast %70 : vector<16x1xf32> to vector<16x16xf32>
    %72 = arith.subf %68, %71 : vector<16x16xf32>
    %73 = math.exp %72 : vector<16x16xf32>
    %cst_33 = arith.constant dense<0.000000e+00> : vector<16xf32>
    %74 = vector.multi_reduction <add>, %73, %cst_33 [1] : vector<16x16xf32> to vector<16xf32>
    %75 = vector.shape_cast %74 : vector<16xf32> to vector<16x1xf32>
    %76 = tpu.reciprocal %75 {approx = true} : vector<16x1xf32> -> vector<16x1xf32>
    %77 = vector.broadcast %76 : vector<16x1xf32> to vector<16x16xf32>
    %78 = arith.mulf %73, %77 : vector<16x16xf32>
    %79 = arith.truncf %78 : vector<16x16xf32> to vector<16x16xbf16>
    %cst_34 = arith.constant dense<0.000000e+00> : vector<16x32xf32>
    %80 = tpu.matmul %79, %63, %cst_34 {dimension_numbers = #tpu.dot_dimension_numbers<[1], [0], [0], [1], [0, 0, 1, 1], [], []>} : vector<16x16xbf16>, vector<16x32xbf16>, vector<16x32xf32> -> vector<16x32xf32>
    %81 = arith.truncf %80 : vector<16x32xf32> to vector<16x32xbf16>
    %82 = vector.extract_strided_slice %59 {offsets = [0, 0], sizes = [32, 128], strides = [1, 1]} : vector<128x128xbf16> to vector<32x128xbf16>
    %cst_35 = arith.constant dense<0.000000e+00> : vector<16x128xf32>
    %83 = tpu.matmul %81, %82, %cst_35 {dimension_numbers = #tpu.dot_dimension_numbers<[1], [0], [0], [1], [0, 0, 1, 1], [], []>} : vector<16x32xbf16>, vector<32x128xbf16>, vector<16x128xf32> -> vector<16x128xf32>
    %84 = arith.addf %60, %83 : vector<16x128xf32>
    %85 = vector.extract_strided_slice %57 {offsets = [0, 32], sizes = [16, 32], strides = [1, 1]} : vector<16x384xbf16> to vector<16x32xbf16>
    %86 = vector.extract_strided_slice %57 {offsets = [0, 160], sizes = [16, 32], strides = [1, 1]} : vector<16x384xbf16> to vector<16x32xbf16>
    %87 = vector.extract_strided_slice %57 {offsets = [0, 288], sizes = [16, 32], strides = [1, 1]} : vector<16x384xbf16> to vector<16x32xbf16>
    %cst_36 = arith.constant dense<0.000000e+00> : vector<16x16xf32>
    %88 = tpu.matmul %85, %86, %cst_36 {dimension_numbers = #tpu.dot_dimension_numbers<[1], [1], [0], [0], [0, 0, 1, 0], [], []>} : vector<16x32xbf16>, vector<16x32xbf16>, vector<16x16xf32> -> vector<16x16xf32>
    %cst_37 = arith.constant 0.0883883461 : f32
    %89 = vector.broadcast %cst_37 : f32 to vector<16x16xf32>
    %90 = arith.mulf %88, %89 : vector<16x16xf32>
    %91 = vector.broadcast %24 : vector<1x16xf32> to vector<16x16xf32>
    %92 = arith.addf %90, %91 : vector<16x16xf32>
    %cst_38 = arith.constant dense<0xFF800000> : vector<16xf32>
    %93 = vector.multi_reduction <maximumf>, %92, %cst_38 [1] : vector<16x16xf32> to vector<16xf32>
    %94 = vector.shape_cast %93 : vector<16xf32> to vector<16x1xf32>
    %95 = vector.broadcast %94 : vector<16x1xf32> to vector<16x16xf32>
    %96 = arith.subf %92, %95 : vector<16x16xf32>
    %97 = math.exp %96 : vector<16x16xf32>
    %cst_39 = arith.constant dense<0.000000e+00> : vector<16xf32>
    %98 = vector.multi_reduction <add>, %97, %cst_39 [1] : vector<16x16xf32> to vector<16xf32>
    %99 = vector.shape_cast %98 : vector<16xf32> to vector<16x1xf32>
    %100 = tpu.reciprocal %99 {approx = true} : vector<16x1xf32> -> vector<16x1xf32>
    %101 = vector.broadcast %100 : vector<16x1xf32> to vector<16x16xf32>
    %102 = arith.mulf %97, %101 : vector<16x16xf32>
    %103 = arith.truncf %102 : vector<16x16xf32> to vector<16x16xbf16>
    %cst_40 = arith.constant dense<0.000000e+00> : vector<16x32xf32>
    %104 = tpu.matmul %103, %87, %cst_40 {dimension_numbers = #tpu.dot_dimension_numbers<[1], [0], [0], [1], [0, 0, 1, 1], [], []>} : vector<16x16xbf16>, vector<16x32xbf16>, vector<16x32xf32> -> vector<16x32xf32>
    %105 = arith.truncf %104 : vector<16x32xf32> to vector<16x32xbf16>
    %106 = vector.extract_strided_slice %59 {offsets = [32, 0], sizes = [32, 128], strides = [1, 1]} : vector<128x128xbf16> to vector<32x128xbf16>
    %cst_41 = arith.constant dense<0.000000e+00> : vector<16x128xf32>
    %107 = tpu.matmul %105, %106, %cst_41 {dimension_numbers = #tpu.dot_dimension_numbers<[1], [0], [0], [1], [0, 0, 1, 1], [], []>} : vector<16x32xbf16>, vector<32x128xbf16>, vector<16x128xf32> -> vector<16x128xf32>
    %108 = arith.addf %84, %107 : vector<16x128xf32>
    %109 = vector.extract_strided_slice %57 {offsets = [0, 64], sizes = [16, 32], strides = [1, 1]} : vector<16x384xbf16> to vector<16x32xbf16>
    %110 = vector.extract_strided_slice %57 {offsets = [0, 192], sizes = [16, 32], strides = [1, 1]} : vector<16x384xbf16> to vector<16x32xbf16>
    %111 = vector.extract_strided_slice %57 {offsets = [0, 320], sizes = [16, 32], strides = [1, 1]} : vector<16x384xbf16> to vector<16x32xbf16>
    %cst_42 = arith.constant dense<0.000000e+00> : vector<16x16xf32>
    %112 = tpu.matmul %109, %110, %cst_42 {dimension_numbers = #tpu.dot_dimension_numbers<[1], [1], [0], [0], [0, 0, 1, 0], [], []>} : vector<16x32xbf16>, vector<16x32xbf16>, vector<16x16xf32> -> vector<16x16xf32>
    %cst_43 = arith.constant 0.0883883461 : f32
    %113 = vector.broadcast %cst_43 : f32 to vector<16x16xf32>
    %114 = arith.mulf %112, %113 : vector<16x16xf32>
    %115 = vector.broadcast %24 : vector<1x16xf32> to vector<16x16xf32>
    %116 = arith.addf %114, %115 : vector<16x16xf32>
    %cst_44 = arith.constant dense<0xFF800000> : vector<16xf32>
    %117 = vector.multi_reduction <maximumf>, %116, %cst_44 [1] : vector<16x16xf32> to vector<16xf32>
    %118 = vector.shape_cast %117 : vector<16xf32> to vector<16x1xf32>
    %119 = vector.broadcast %118 : vector<16x1xf32> to vector<16x16xf32>
    %120 = arith.subf %116, %119 : vector<16x16xf32>
    %121 = math.exp %120 : vector<16x16xf32>
    %cst_45 = arith.constant dense<0.000000e+00> : vector<16xf32>
    %122 = vector.multi_reduction <add>, %121, %cst_45 [1] : vector<16x16xf32> to vector<16xf32>
    %123 = vector.shape_cast %122 : vector<16xf32> to vector<16x1xf32>
    %124 = tpu.reciprocal %123 {approx = true} : vector<16x1xf32> -> vector<16x1xf32>
    %125 = vector.broadcast %124 : vector<16x1xf32> to vector<16x16xf32>
    %126 = arith.mulf %121, %125 : vector<16x16xf32>
    %127 = arith.truncf %126 : vector<16x16xf32> to vector<16x16xbf16>
    %cst_46 = arith.constant dense<0.000000e+00> : vector<16x32xf32>
    %128 = tpu.matmul %127, %111, %cst_46 {dimension_numbers = #tpu.dot_dimension_numbers<[1], [0], [0], [1], [0, 0, 1, 1], [], []>} : vector<16x16xbf16>, vector<16x32xbf16>, vector<16x32xf32> -> vector<16x32xf32>
    %129 = arith.truncf %128 : vector<16x32xf32> to vector<16x32xbf16>
    %130 = vector.extract_strided_slice %59 {offsets = [64, 0], sizes = [32, 128], strides = [1, 1]} : vector<128x128xbf16> to vector<32x128xbf16>
    %cst_47 = arith.constant dense<0.000000e+00> : vector<16x128xf32>
    %131 = tpu.matmul %129, %130, %cst_47 {dimension_numbers = #tpu.dot_dimension_numbers<[1], [0], [0], [1], [0, 0, 1, 1], [], []>} : vector<16x32xbf16>, vector<32x128xbf16>, vector<16x128xf32> -> vector<16x128xf32>
    %132 = arith.addf %108, %131 : vector<16x128xf32>
    %133 = vector.extract_strided_slice %57 {offsets = [0, 96], sizes = [16, 32], strides = [1, 1]} : vector<16x384xbf16> to vector<16x32xbf16>
    %134 = vector.extract_strided_slice %57 {offsets = [0, 224], sizes = [16, 32], strides = [1, 1]} : vector<16x384xbf16> to vector<16x32xbf16>
    %135 = vector.extract_strided_slice %57 {offsets = [0, 352], sizes = [16, 32], strides = [1, 1]} : vector<16x384xbf16> to vector<16x32xbf16>
    %cst_48 = arith.constant dense<0.000000e+00> : vector<16x16xf32>
    %136 = tpu.matmul %133, %134, %cst_48 {dimension_numbers = #tpu.dot_dimension_numbers<[1], [1], [0], [0], [0, 0, 1, 0], [], []>} : vector<16x32xbf16>, vector<16x32xbf16>, vector<16x16xf32> -> vector<16x16xf32>
    %cst_49 = arith.constant 0.0883883461 : f32
    %137 = vector.broadcast %cst_49 : f32 to vector<16x16xf32>
    %138 = arith.mulf %136, %137 : vector<16x16xf32>
    %139 = vector.broadcast %24 : vector<1x16xf32> to vector<16x16xf32>
    %140 = arith.addf %138, %139 : vector<16x16xf32>
    %cst_50 = arith.constant dense<0xFF800000> : vector<16xf32>
    %141 = vector.multi_reduction <maximumf>, %140, %cst_50 [1] : vector<16x16xf32> to vector<16xf32>
    %142 = vector.shape_cast %141 : vector<16xf32> to vector<16x1xf32>
    %143 = vector.broadcast %142 : vector<16x1xf32> to vector<16x16xf32>
    %144 = arith.subf %140, %143 : vector<16x16xf32>
    %145 = math.exp %144 : vector<16x16xf32>
    %cst_51 = arith.constant dense<0.000000e+00> : vector<16xf32>
    %146 = vector.multi_reduction <add>, %145, %cst_51 [1] : vector<16x16xf32> to vector<16xf32>
    %147 = vector.shape_cast %146 : vector<16xf32> to vector<16x1xf32>
    %148 = tpu.reciprocal %147 {approx = true} : vector<16x1xf32> -> vector<16x1xf32>
    %149 = vector.broadcast %148 : vector<16x1xf32> to vector<16x16xf32>
    %150 = arith.mulf %145, %149 : vector<16x16xf32>
    %151 = arith.truncf %150 : vector<16x16xf32> to vector<16x16xbf16>
    %cst_52 = arith.constant dense<0.000000e+00> : vector<16x32xf32>
    %152 = tpu.matmul %151, %135, %cst_52 {dimension_numbers = #tpu.dot_dimension_numbers<[1], [0], [0], [1], [0, 0, 1, 1], [], []>} : vector<16x16xbf16>, vector<16x32xbf16>, vector<16x32xf32> -> vector<16x32xf32>
    %153 = arith.truncf %152 : vector<16x32xf32> to vector<16x32xbf16>
    %154 = vector.extract_strided_slice %59 {offsets = [96, 0], sizes = [32, 128], strides = [1, 1]} : vector<128x128xbf16> to vector<32x128xbf16>
    %cst_53 = arith.constant dense<0.000000e+00> : vector<16x128xf32>
    %155 = tpu.matmul %153, %154, %cst_53 {dimension_numbers = #tpu.dot_dimension_numbers<[1], [0], [0], [1], [0, 0, 1, 1], [], []>} : vector<16x32xbf16>, vector<32x128xbf16>, vector<16x128xf32> -> vector<16x128xf32>
    %156 = arith.addf %132, %155 : vector<16x128xf32>
    %157 = arith.addf %18, %156 : vector<16x128xf32>
    %c0_54 = arith.constant 0 : index
    %c0_55 = arith.constant 0 : index
    %c0_56 = arith.constant 0 : index
    %158 = vector.load %arg9[%c0_54, %c0_55, %c0_56] : memref<2x1x128xf32, #tpu.memory_space<vmem>>, vector<1x1x128xf32>
    %159 = vector.shape_cast %158 : vector<1x1x128xf32> to vector<1x128xf32>
    %160 = vector.broadcast %159 : vector<1x128xf32> to vector<16x128xf32>
    %161 = arith.addf %157, %160 : vector<16x128xf32>
    %c0_57 = arith.constant 0 : index
    %c0_58 = arith.constant 0 : index
    %c0_59 = arith.constant 0 : index
    %162 = vector.load %arg10[%c0_57, %c0_58, %c0_59] : memref<2x1x128xf32, #tpu.memory_space<vmem>>, vector<1x1x128xf32>
    %163 = vector.shape_cast %162 : vector<1x1x128xf32> to vector<1x128xf32>
    %c0_60 = arith.constant 0 : index
    %c0_61 = arith.constant 0 : index
    %c0_62 = arith.constant 0 : index
    %164 = vector.load %arg11[%c0_60, %c0_61, %c0_62] : memref<2x1x128xf32, #tpu.memory_space<vmem>>, vector<1x1x128xf32>
    %165 = vector.shape_cast %164 : vector<1x1x128xf32> to vector<1x128xf32>
    %cst_63 = arith.constant dense<0.000000e+00> : vector<16xf32>
    %166 = vector.multi_reduction <add>, %161, %cst_63 [1] : vector<16x128xf32> to vector<16xf32>
    %167 = vector.shape_cast %166 : vector<16xf32> to vector<16x1xf32>
    %cst_64 = arith.constant 1.280000e+02 : f32
    %168 = vector.broadcast %cst_64 : f32 to vector<16x1xf32>
    %169 = arith.divf %167, %168 : vector<16x1xf32>
    %170 = vector.broadcast %169 : vector<16x1xf32> to vector<16x128xf32>
    %171 = arith.subf %161, %170 : vector<16x128xf32>
    %172 = vector.broadcast %169 : vector<16x1xf32> to vector<16x128xf32>
    %173 = arith.subf %161, %172 : vector<16x128xf32>
    %174 = arith.mulf %171, %173 : vector<16x128xf32>
    %cst_65 = arith.constant dense<0.000000e+00> : vector<16xf32>
    %175 = vector.multi_reduction <add>, %174, %cst_65 [1] : vector<16x128xf32> to vector<16xf32>
    %176 = vector.shape_cast %175 : vector<16xf32> to vector<16x1xf32>
    %cst_66 = arith.constant 1.280000e+02 : f32
    %177 = vector.broadcast %cst_66 : f32 to vector<16x1xf32>
    %178 = arith.divf %176, %177 : vector<16x1xf32>
    %179 = vector.broadcast %169 : vector<16x1xf32> to vector<16x128xf32>
    %180 = arith.subf %161, %179 : vector<16x128xf32>
    %cst_67 = arith.constant 9.99999997E-7 : f32
    %181 = vector.broadcast %cst_67 : f32 to vector<16x1xf32>
    %182 = arith.addf %178, %181 : vector<16x1xf32>
    %183 = math.rsqrt %182 : vector<16x1xf32>
    %184 = vector.broadcast %183 : vector<16x1xf32> to vector<16x128xf32>
    %185 = arith.mulf %180, %184 : vector<16x128xf32>
    %186 = vector.broadcast %163 : vector<1x128xf32> to vector<16x128xf32>
    %187 = arith.mulf %185, %186 : vector<16x128xf32>
    %188 = vector.broadcast %165 : vector<1x128xf32> to vector<16x128xf32>
    %189 = arith.addf %187, %188 : vector<16x128xf32>
    %190 = arith.truncf %189 : vector<16x128xf32> to vector<16x128xbf16>
    %c0_68 = arith.constant 0 : index
    %c0_69 = arith.constant 0 : index
    %c0_70 = arith.constant 0 : index
    %191 = vector.load %arg12[%c0_68, %c0_69, %c0_70] : memref<2x128x384xbf16, #tpu.memory_space<vmem>>, vector<1x128x384xbf16>
    %192 = vector.shape_cast %191 : vector<1x128x384xbf16> to vector<128x384xbf16>
    %cst_71 = arith.constant dense<0.000000e+00> : vector<16x384xf32>
    %193 = tpu.matmul %190, %192, %cst_71 {dimension_numbers = #tpu.dot_dimension_numbers<[1], [0], [0], [1], [0, 0, 1, 1], [], []>} : vector<16x128xbf16>, vector<128x384xbf16>, vector<16x384xf32> -> vector<16x384xf32>
    %c0_72 = arith.constant 0 : index
    %c0_73 = arith.constant 0 : index
    %c0_74 = arith.constant 0 : index
    %194 = vector.load %arg13[%c0_72, %c0_73, %c0_74] : memref<2x1x384xf32, #tpu.memory_space<vmem>>, vector<1x1x384xf32>
    %195 = vector.shape_cast %194 : vector<1x1x384xf32> to vector<1x384xf32>
    %196 = vector.broadcast %195 : vector<1x384xf32> to vector<16x384xf32>
    %197 = arith.addf %193, %196 : vector<16x384xf32>
    %cst_75 = arith.constant 5.000000e-01 : f32
    %198 = vector.broadcast %cst_75 : f32 to vector<16x384xf32>
    %199 = arith.mulf %198, %197 : vector<16x384xf32>
    %cst_76 = arith.constant 4.471500e-02 : f32
    %200 = vector.broadcast %cst_76 : f32 to vector<16x384xf32>
    %201 = arith.mulf %200, %197 : vector<16x384xf32>
    %202 = arith.mulf %201, %197 : vector<16x384xf32>
    %203 = arith.mulf %202, %197 : vector<16x384xf32>
    %204 = arith.addf %197, %203 : vector<16x384xf32>
    %cst_77 = arith.constant 0.797884583 : f32
    %205 = vector.broadcast %cst_77 : f32 to vector<16x384xf32>
    %206 = arith.mulf %205, %204 : vector<16x384xf32>
    %207 = math.tanh %206 : vector<16x384xf32>
    %cst_78 = arith.constant 1.000000e+00 : f32
    %208 = vector.broadcast %cst_78 : f32 to vector<16x384xf32>
    %209 = arith.addf %208, %207 : vector<16x384xf32>
    %210 = arith.mulf %199, %209 : vector<16x384xf32>
    %211 = arith.truncf %210 : vector<16x384xf32> to vector<16x384xbf16>
    %c0_79 = arith.constant 0 : index
    %c0_80 = arith.constant 0 : index
    %c0_81 = arith.constant 0 : index
    %212 = vector.load %arg14[%c0_79, %c0_80, %c0_81] : memref<2x384x128xbf16, #tpu.memory_space<vmem>>, vector<1x384x128xbf16>
    %213 = vector.shape_cast %212 : vector<1x384x128xbf16> to vector<384x128xbf16>
    %cst_82 = arith.constant dense<0.000000e+00> : vector<16x128xf32>
    %214 = tpu.matmul %211, %213, %cst_82 {dimension_numbers = #tpu.dot_dimension_numbers<[1], [0], [0], [1], [0, 0, 1, 1], [], []>} : vector<16x384xbf16>, vector<384x128xbf16>, vector<16x128xf32> -> vector<16x128xf32>
    %c0_83 = arith.constant 0 : index
    %c0_84 = arith.constant 0 : index
    %c0_85 = arith.constant 0 : index
    %215 = vector.load %arg15[%c0_83, %c0_84, %c0_85] : memref<2x1x128xf32, #tpu.memory_space<vmem>>, vector<1x1x128xf32>
    %216 = vector.shape_cast %215 : vector<1x1x128xf32> to vector<1x128xf32>
    %217 = vector.broadcast %216 : vector<1x128xf32> to vector<16x128xf32>
    %218 = arith.addf %214, %217 : vector<16x128xf32>
    %219 = arith.addf %161, %218 : vector<16x128xf32>
    %c1 = arith.constant 1 : index
    %c0_86 = arith.constant 0 : index
    %c0_87 = arith.constant 0 : index
    %220 = vector.load %arg5[%c1, %c0_86, %c0_87] : memref<2x1x128xf32, #tpu.memory_space<vmem>>, vector<1x1x128xf32>
    %221 = vector.shape_cast %220 : vector<1x1x128xf32> to vector<1x128xf32>
    %c1_88 = arith.constant 1 : index
    %c0_89 = arith.constant 0 : index
    %c0_90 = arith.constant 0 : index
    %222 = vector.load %arg6[%c1_88, %c0_89, %c0_90] : memref<2x1x128xf32, #tpu.memory_space<vmem>>, vector<1x1x128xf32>
    %223 = vector.shape_cast %222 : vector<1x1x128xf32> to vector<1x128xf32>
    %cst_91 = arith.constant dense<0.000000e+00> : vector<16xf32>
    %224 = vector.multi_reduction <add>, %219, %cst_91 [1] : vector<16x128xf32> to vector<16xf32>
    %225 = vector.shape_cast %224 : vector<16xf32> to vector<16x1xf32>
    %cst_92 = arith.constant 1.280000e+02 : f32
    %226 = vector.broadcast %cst_92 : f32 to vector<16x1xf32>
    %227 = arith.divf %225, %226 : vector<16x1xf32>
    %228 = vector.broadcast %227 : vector<16x1xf32> to vector<16x128xf32>
    %229 = arith.subf %219, %228 : vector<16x128xf32>
    %230 = vector.broadcast %227 : vector<16x1xf32> to vector<16x128xf32>
    %231 = arith.subf %219, %230 : vector<16x128xf32>
    %232 = arith.mulf %229, %231 : vector<16x128xf32>
    %cst_93 = arith.constant dense<0.000000e+00> : vector<16xf32>
    %233 = vector.multi_reduction <add>, %232, %cst_93 [1] : vector<16x128xf32> to vector<16xf32>
    %234 = vector.shape_cast %233 : vector<16xf32> to vector<16x1xf32>
    %cst_94 = arith.constant 1.280000e+02 : f32
    %235 = vector.broadcast %cst_94 : f32 to vector<16x1xf32>
    %236 = arith.divf %234, %235 : vector<16x1xf32>
    %237 = vector.broadcast %227 : vector<16x1xf32> to vector<16x128xf32>
    %238 = arith.subf %219, %237 : vector<16x128xf32>
    %cst_95 = arith.constant 9.99999997E-7 : f32
    %239 = vector.broadcast %cst_95 : f32 to vector<16x1xf32>
    %240 = arith.addf %236, %239 : vector<16x1xf32>
    %241 = math.rsqrt %240 : vector<16x1xf32>
    %242 = vector.broadcast %241 : vector<16x1xf32> to vector<16x128xf32>
    %243 = arith.mulf %238, %242 : vector<16x128xf32>
    %244 = vector.broadcast %221 : vector<1x128xf32> to vector<16x128xf32>
    %245 = arith.mulf %243, %244 : vector<16x128xf32>
    %246 = vector.broadcast %223 : vector<1x128xf32> to vector<16x128xf32>
    %247 = arith.addf %245, %246 : vector<16x128xf32>
    %248 = arith.truncf %247 : vector<16x128xf32> to vector<16x128xbf16>
    %c1_96 = arith.constant 1 : index
    %c0_97 = arith.constant 0 : index
    %c0_98 = arith.constant 0 : index
    %249 = vector.load %arg7[%c1_96, %c0_97, %c0_98] : memref<2x128x384xbf16, #tpu.memory_space<vmem>>, vector<1x128x384xbf16>
    %250 = vector.shape_cast %249 : vector<1x128x384xbf16> to vector<128x384xbf16>
    %cst_99 = arith.constant dense<0.000000e+00> : vector<16x384xf32>
    %251 = tpu.matmul %248, %250, %cst_99 {dimension_numbers = #tpu.dot_dimension_numbers<[1], [0], [0], [1], [0, 0, 1, 1], [], []>} : vector<16x128xbf16>, vector<128x384xbf16>, vector<16x384xf32> -> vector<16x384xf32>
    %252 = arith.truncf %251 : vector<16x384xf32> to vector<16x384xbf16>
    %c1_100 = arith.constant 1 : index
    %c0_101 = arith.constant 0 : index
    %c0_102 = arith.constant 0 : index
    %253 = vector.load %arg8[%c1_100, %c0_101, %c0_102] : memref<2x128x128xbf16, #tpu.memory_space<vmem>>, vector<1x128x128xbf16>
    %254 = vector.shape_cast %253 : vector<1x128x128xbf16> to vector<128x128xbf16>
    %cst_103 = arith.constant 0.000000e+00 : f32
    %255 = vector.broadcast %cst_103 : f32 to vector<16x128xf32>
    %256 = vector.extract_strided_slice %252 {offsets = [0, 0], sizes = [16, 32], strides = [1, 1]} : vector<16x384xbf16> to vector<16x32xbf16>
    %257 = vector.extract_strided_slice %252 {offsets = [0, 128], sizes = [16, 32], strides = [1, 1]} : vector<16x384xbf16> to vector<16x32xbf16>
    %258 = vector.extract_strided_slice %252 {offsets = [0, 256], sizes = [16, 32], strides = [1, 1]} : vector<16x384xbf16> to vector<16x32xbf16>
    %cst_104 = arith.constant dense<0.000000e+00> : vector<16x16xf32>
    %259 = tpu.matmul %256, %257, %cst_104 {dimension_numbers = #tpu.dot_dimension_numbers<[1], [1], [0], [0], [0, 0, 1, 0], [], []>} : vector<16x32xbf16>, vector<16x32xbf16>, vector<16x16xf32> -> vector<16x16xf32>
    %cst_105 = arith.constant 0.0883883461 : f32
    %260 = vector.broadcast %cst_105 : f32 to vector<16x16xf32>
    %261 = arith.mulf %259, %260 : vector<16x16xf32>
    %262 = vector.broadcast %24 : vector<1x16xf32> to vector<16x16xf32>
    %263 = arith.addf %261, %262 : vector<16x16xf32>
    %cst_106 = arith.constant dense<0xFF800000> : vector<16xf32>
    %264 = vector.multi_reduction <maximumf>, %263, %cst_106 [1] : vector<16x16xf32> to vector<16xf32>
    %265 = vector.shape_cast %264 : vector<16xf32> to vector<16x1xf32>
    %266 = vector.broadcast %265 : vector<16x1xf32> to vector<16x16xf32>
    %267 = arith.subf %263, %266 : vector<16x16xf32>
    %268 = math.exp %267 : vector<16x16xf32>
    %cst_107 = arith.constant dense<0.000000e+00> : vector<16xf32>
    %269 = vector.multi_reduction <add>, %268, %cst_107 [1] : vector<16x16xf32> to vector<16xf32>
    %270 = vector.shape_cast %269 : vector<16xf32> to vector<16x1xf32>
    %271 = tpu.reciprocal %270 {approx = true} : vector<16x1xf32> -> vector<16x1xf32>
    %272 = vector.broadcast %271 : vector<16x1xf32> to vector<16x16xf32>
    %273 = arith.mulf %268, %272 : vector<16x16xf32>
    %274 = arith.truncf %273 : vector<16x16xf32> to vector<16x16xbf16>
    %cst_108 = arith.constant dense<0.000000e+00> : vector<16x32xf32>
    %275 = tpu.matmul %274, %258, %cst_108 {dimension_numbers = #tpu.dot_dimension_numbers<[1], [0], [0], [1], [0, 0, 1, 1], [], []>} : vector<16x16xbf16>, vector<16x32xbf16>, vector<16x32xf32> -> vector<16x32xf32>
    %276 = arith.truncf %275 : vector<16x32xf32> to vector<16x32xbf16>
    %277 = vector.extract_strided_slice %254 {offsets = [0, 0], sizes = [32, 128], strides = [1, 1]} : vector<128x128xbf16> to vector<32x128xbf16>
    %cst_109 = arith.constant dense<0.000000e+00> : vector<16x128xf32>
    %278 = tpu.matmul %276, %277, %cst_109 {dimension_numbers = #tpu.dot_dimension_numbers<[1], [0], [0], [1], [0, 0, 1, 1], [], []>} : vector<16x32xbf16>, vector<32x128xbf16>, vector<16x128xf32> -> vector<16x128xf32>
    %279 = arith.addf %255, %278 : vector<16x128xf32>
    %280 = vector.extract_strided_slice %252 {offsets = [0, 32], sizes = [16, 32], strides = [1, 1]} : vector<16x384xbf16> to vector<16x32xbf16>
    %281 = vector.extract_strided_slice %252 {offsets = [0, 160], sizes = [16, 32], strides = [1, 1]} : vector<16x384xbf16> to vector<16x32xbf16>
    %282 = vector.extract_strided_slice %252 {offsets = [0, 288], sizes = [16, 32], strides = [1, 1]} : vector<16x384xbf16> to vector<16x32xbf16>
    %cst_110 = arith.constant dense<0.000000e+00> : vector<16x16xf32>
    %283 = tpu.matmul %280, %281, %cst_110 {dimension_numbers = #tpu.dot_dimension_numbers<[1], [1], [0], [0], [0, 0, 1, 0], [], []>} : vector<16x32xbf16>, vector<16x32xbf16>, vector<16x16xf32> -> vector<16x16xf32>
    %cst_111 = arith.constant 0.0883883461 : f32
    %284 = vector.broadcast %cst_111 : f32 to vector<16x16xf32>
    %285 = arith.mulf %283, %284 : vector<16x16xf32>
    %286 = vector.broadcast %24 : vector<1x16xf32> to vector<16x16xf32>
    %287 = arith.addf %285, %286 : vector<16x16xf32>
    %cst_112 = arith.constant dense<0xFF800000> : vector<16xf32>
    %288 = vector.multi_reduction <maximumf>, %287, %cst_112 [1] : vector<16x16xf32> to vector<16xf32>
    %289 = vector.shape_cast %288 : vector<16xf32> to vector<16x1xf32>
    %290 = vector.broadcast %289 : vector<16x1xf32> to vector<16x16xf32>
    %291 = arith.subf %287, %290 : vector<16x16xf32>
    %292 = math.exp %291 : vector<16x16xf32>
    %cst_113 = arith.constant dense<0.000000e+00> : vector<16xf32>
    %293 = vector.multi_reduction <add>, %292, %cst_113 [1] : vector<16x16xf32> to vector<16xf32>
    %294 = vector.shape_cast %293 : vector<16xf32> to vector<16x1xf32>
    %295 = tpu.reciprocal %294 {approx = true} : vector<16x1xf32> -> vector<16x1xf32>
    %296 = vector.broadcast %295 : vector<16x1xf32> to vector<16x16xf32>
    %297 = arith.mulf %292, %296 : vector<16x16xf32>
    %298 = arith.truncf %297 : vector<16x16xf32> to vector<16x16xbf16>
    %cst_114 = arith.constant dense<0.000000e+00> : vector<16x32xf32>
    %299 = tpu.matmul %298, %282, %cst_114 {dimension_numbers = #tpu.dot_dimension_numbers<[1], [0], [0], [1], [0, 0, 1, 1], [], []>} : vector<16x16xbf16>, vector<16x32xbf16>, vector<16x32xf32> -> vector<16x32xf32>
    %300 = arith.truncf %299 : vector<16x32xf32> to vector<16x32xbf16>
    %301 = vector.extract_strided_slice %254 {offsets = [32, 0], sizes = [32, 128], strides = [1, 1]} : vector<128x128xbf16> to vector<32x128xbf16>
    %cst_115 = arith.constant dense<0.000000e+00> : vector<16x128xf32>
    %302 = tpu.matmul %300, %301, %cst_115 {dimension_numbers = #tpu.dot_dimension_numbers<[1], [0], [0], [1], [0, 0, 1, 1], [], []>} : vector<16x32xbf16>, vector<32x128xbf16>, vector<16x128xf32> -> vector<16x128xf32>
    %303 = arith.addf %279, %302 : vector<16x128xf32>
    %304 = vector.extract_strided_slice %252 {offsets = [0, 64], sizes = [16, 32], strides = [1, 1]} : vector<16x384xbf16> to vector<16x32xbf16>
    %305 = vector.extract_strided_slice %252 {offsets = [0, 192], sizes = [16, 32], strides = [1, 1]} : vector<16x384xbf16> to vector<16x32xbf16>
    %306 = vector.extract_strided_slice %252 {offsets = [0, 320], sizes = [16, 32], strides = [1, 1]} : vector<16x384xbf16> to vector<16x32xbf16>
    %cst_116 = arith.constant dense<0.000000e+00> : vector<16x16xf32>
    %307 = tpu.matmul %304, %305, %cst_116 {dimension_numbers = #tpu.dot_dimension_numbers<[1], [1], [0], [0], [0, 0, 1, 0], [], []>} : vector<16x32xbf16>, vector<16x32xbf16>, vector<16x16xf32> -> vector<16x16xf32>
    %cst_117 = arith.constant 0.0883883461 : f32
    %308 = vector.broadcast %cst_117 : f32 to vector<16x16xf32>
    %309 = arith.mulf %307, %308 : vector<16x16xf32>
    %310 = vector.broadcast %24 : vector<1x16xf32> to vector<16x16xf32>
    %311 = arith.addf %309, %310 : vector<16x16xf32>
    %cst_118 = arith.constant dense<0xFF800000> : vector<16xf32>
    %312 = vector.multi_reduction <maximumf>, %311, %cst_118 [1] : vector<16x16xf32> to vector<16xf32>
    %313 = vector.shape_cast %312 : vector<16xf32> to vector<16x1xf32>
    %314 = vector.broadcast %313 : vector<16x1xf32> to vector<16x16xf32>
    %315 = arith.subf %311, %314 : vector<16x16xf32>
    %316 = math.exp %315 : vector<16x16xf32>
    %cst_119 = arith.constant dense<0.000000e+00> : vector<16xf32>
    %317 = vector.multi_reduction <add>, %316, %cst_119 [1] : vector<16x16xf32> to vector<16xf32>
    %318 = vector.shape_cast %317 : vector<16xf32> to vector<16x1xf32>
    %319 = tpu.reciprocal %318 {approx = true} : vector<16x1xf32> -> vector<16x1xf32>
    %320 = vector.broadcast %319 : vector<16x1xf32> to vector<16x16xf32>
    %321 = arith.mulf %316, %320 : vector<16x16xf32>
    %322 = arith.truncf %321 : vector<16x16xf32> to vector<16x16xbf16>
    %cst_120 = arith.constant dense<0.000000e+00> : vector<16x32xf32>
    %323 = tpu.matmul %322, %306, %cst_120 {dimension_numbers = #tpu.dot_dimension_numbers<[1], [0], [0], [1], [0, 0, 1, 1], [], []>} : vector<16x16xbf16>, vector<16x32xbf16>, vector<16x32xf32> -> vector<16x32xf32>
    %324 = arith.truncf %323 : vector<16x32xf32> to vector<16x32xbf16>
    %325 = vector.extract_strided_slice %254 {offsets = [64, 0], sizes = [32, 128], strides = [1, 1]} : vector<128x128xbf16> to vector<32x128xbf16>
    %cst_121 = arith.constant dense<0.000000e+00> : vector<16x128xf32>
    %326 = tpu.matmul %324, %325, %cst_121 {dimension_numbers = #tpu.dot_dimension_numbers<[1], [0], [0], [1], [0, 0, 1, 1], [], []>} : vector<16x32xbf16>, vector<32x128xbf16>, vector<16x128xf32> -> vector<16x128xf32>
    %327 = arith.addf %303, %326 : vector<16x128xf32>
    %328 = vector.extract_strided_slice %252 {offsets = [0, 96], sizes = [16, 32], strides = [1, 1]} : vector<16x384xbf16> to vector<16x32xbf16>
    %329 = vector.extract_strided_slice %252 {offsets = [0, 224], sizes = [16, 32], strides = [1, 1]} : vector<16x384xbf16> to vector<16x32xbf16>
    %330 = vector.extract_strided_slice %252 {offsets = [0, 352], sizes = [16, 32], strides = [1, 1]} : vector<16x384xbf16> to vector<16x32xbf16>
    %cst_122 = arith.constant dense<0.000000e+00> : vector<16x16xf32>
    %331 = tpu.matmul %328, %329, %cst_122 {dimension_numbers = #tpu.dot_dimension_numbers<[1], [1], [0], [0], [0, 0, 1, 0], [], []>} : vector<16x32xbf16>, vector<16x32xbf16>, vector<16x16xf32> -> vector<16x16xf32>
    %cst_123 = arith.constant 0.0883883461 : f32
    %332 = vector.broadcast %cst_123 : f32 to vector<16x16xf32>
    %333 = arith.mulf %331, %332 : vector<16x16xf32>
    %334 = vector.broadcast %24 : vector<1x16xf32> to vector<16x16xf32>
    %335 = arith.addf %333, %334 : vector<16x16xf32>
    %cst_124 = arith.constant dense<0xFF800000> : vector<16xf32>
    %336 = vector.multi_reduction <maximumf>, %335, %cst_124 [1] : vector<16x16xf32> to vector<16xf32>
    %337 = vector.shape_cast %336 : vector<16xf32> to vector<16x1xf32>
    %338 = vector.broadcast %337 : vector<16x1xf32> to vector<16x16xf32>
    %339 = arith.subf %335, %338 : vector<16x16xf32>
    %340 = math.exp %339 : vector<16x16xf32>
    %cst_125 = arith.constant dense<0.000000e+00> : vector<16xf32>
    %341 = vector.multi_reduction <add>, %340, %cst_125 [1] : vector<16x16xf32> to vector<16xf32>
    %342 = vector.shape_cast %341 : vector<16xf32> to vector<16x1xf32>
    %343 = tpu.reciprocal %342 {approx = true} : vector<16x1xf32> -> vector<16x1xf32>
    %344 = vector.broadcast %343 : vector<16x1xf32> to vector<16x16xf32>
    %345 = arith.mulf %340, %344 : vector<16x16xf32>
    %346 = arith.truncf %345 : vector<16x16xf32> to vector<16x16xbf16>
    %cst_126 = arith.constant dense<0.000000e+00> : vector<16x32xf32>
    %347 = tpu.matmul %346, %330, %cst_126 {dimension_numbers = #tpu.dot_dimension_numbers<[1], [0], [0], [1], [0, 0, 1, 1], [], []>} : vector<16x16xbf16>, vector<16x32xbf16>, vector<16x32xf32> -> vector<16x32xf32>
    %348 = arith.truncf %347 : vector<16x32xf32> to vector<16x32xbf16>
    %349 = vector.extract_strided_slice %254 {offsets = [96, 0], sizes = [32, 128], strides = [1, 1]} : vector<128x128xbf16> to vector<32x128xbf16>
    %cst_127 = arith.constant dense<0.000000e+00> : vector<16x128xf32>
    %350 = tpu.matmul %348, %349, %cst_127 {dimension_numbers = #tpu.dot_dimension_numbers<[1], [0], [0], [1], [0, 0, 1, 1], [], []>} : vector<16x32xbf16>, vector<32x128xbf16>, vector<16x128xf32> -> vector<16x128xf32>
    %351 = arith.addf %327, %350 : vector<16x128xf32>
    %352 = arith.addf %219, %351 : vector<16x128xf32>
    %c1_128 = arith.constant 1 : index
    %c0_129 = arith.constant 0 : index
    %c0_130 = arith.constant 0 : index
    %353 = vector.load %arg9[%c1_128, %c0_129, %c0_130] : memref<2x1x128xf32, #tpu.memory_space<vmem>>, vector<1x1x128xf32>
    %354 = vector.shape_cast %353 : vector<1x1x128xf32> to vector<1x128xf32>
    %355 = vector.broadcast %354 : vector<1x128xf32> to vector<16x128xf32>
    %356 = arith.addf %352, %355 : vector<16x128xf32>
    %c1_131 = arith.constant 1 : index
    %c0_132 = arith.constant 0 : index
    %c0_133 = arith.constant 0 : index
    %357 = vector.load %arg10[%c1_131, %c0_132, %c0_133] : memref<2x1x128xf32, #tpu.memory_space<vmem>>, vector<1x1x128xf32>
    %358 = vector.shape_cast %357 : vector<1x1x128xf32> to vector<1x128xf32>
    %c1_134 = arith.constant 1 : index
    %c0_135 = arith.constant 0 : index
    %c0_136 = arith.constant 0 : index
    %359 = vector.load %arg11[%c1_134, %c0_135, %c0_136] : memref<2x1x128xf32, #tpu.memory_space<vmem>>, vector<1x1x128xf32>
    %360 = vector.shape_cast %359 : vector<1x1x128xf32> to vector<1x128xf32>
    %cst_137 = arith.constant dense<0.000000e+00> : vector<16xf32>
    %361 = vector.multi_reduction <add>, %356, %cst_137 [1] : vector<16x128xf32> to vector<16xf32>
    %362 = vector.shape_cast %361 : vector<16xf32> to vector<16x1xf32>
    %cst_138 = arith.constant 1.280000e+02 : f32
    %363 = vector.broadcast %cst_138 : f32 to vector<16x1xf32>
    %364 = arith.divf %362, %363 : vector<16x1xf32>
    %365 = vector.broadcast %364 : vector<16x1xf32> to vector<16x128xf32>
    %366 = arith.subf %356, %365 : vector<16x128xf32>
    %367 = vector.broadcast %364 : vector<16x1xf32> to vector<16x128xf32>
    %368 = arith.subf %356, %367 : vector<16x128xf32>
    %369 = arith.mulf %366, %368 : vector<16x128xf32>
    %cst_139 = arith.constant dense<0.000000e+00> : vector<16xf32>
    %370 = vector.multi_reduction <add>, %369, %cst_139 [1] : vector<16x128xf32> to vector<16xf32>
    %371 = vector.shape_cast %370 : vector<16xf32> to vector<16x1xf32>
    %cst_140 = arith.constant 1.280000e+02 : f32
    %372 = vector.broadcast %cst_140 : f32 to vector<16x1xf32>
    %373 = arith.divf %371, %372 : vector<16x1xf32>
    %374 = vector.broadcast %364 : vector<16x1xf32> to vector<16x128xf32>
    %375 = arith.subf %356, %374 : vector<16x128xf32>
    %cst_141 = arith.constant 9.99999997E-7 : f32
    %376 = vector.broadcast %cst_141 : f32 to vector<16x1xf32>
    %377 = arith.addf %373, %376 : vector<16x1xf32>
    %378 = math.rsqrt %377 : vector<16x1xf32>
    %379 = vector.broadcast %378 : vector<16x1xf32> to vector<16x128xf32>
    %380 = arith.mulf %375, %379 : vector<16x128xf32>
    %381 = vector.broadcast %358 : vector<1x128xf32> to vector<16x128xf32>
    %382 = arith.mulf %380, %381 : vector<16x128xf32>
    %383 = vector.broadcast %360 : vector<1x128xf32> to vector<16x128xf32>
    %384 = arith.addf %382, %383 : vector<16x128xf32>
    %385 = arith.truncf %384 : vector<16x128xf32> to vector<16x128xbf16>
    %c1_142 = arith.constant 1 : index
    %c0_143 = arith.constant 0 : index
    %c0_144 = arith.constant 0 : index
    %386 = vector.load %arg12[%c1_142, %c0_143, %c0_144] : memref<2x128x384xbf16, #tpu.memory_space<vmem>>, vector<1x128x384xbf16>
    %387 = vector.shape_cast %386 : vector<1x128x384xbf16> to vector<128x384xbf16>
    %cst_145 = arith.constant dense<0.000000e+00> : vector<16x384xf32>
    %388 = tpu.matmul %385, %387, %cst_145 {dimension_numbers = #tpu.dot_dimension_numbers<[1], [0], [0], [1], [0, 0, 1, 1], [], []>} : vector<16x128xbf16>, vector<128x384xbf16>, vector<16x384xf32> -> vector<16x384xf32>
    %c1_146 = arith.constant 1 : index
    %c0_147 = arith.constant 0 : index
    %c0_148 = arith.constant 0 : index
    %389 = vector.load %arg13[%c1_146, %c0_147, %c0_148] : memref<2x1x384xf32, #tpu.memory_space<vmem>>, vector<1x1x384xf32>
    %390 = vector.shape_cast %389 : vector<1x1x384xf32> to vector<1x384xf32>
    %391 = vector.broadcast %390 : vector<1x384xf32> to vector<16x384xf32>
    %392 = arith.addf %388, %391 : vector<16x384xf32>
    %cst_149 = arith.constant 5.000000e-01 : f32
    %393 = vector.broadcast %cst_149 : f32 to vector<16x384xf32>
    %394 = arith.mulf %393, %392 : vector<16x384xf32>
    %cst_150 = arith.constant 4.471500e-02 : f32
    %395 = vector.broadcast %cst_150 : f32 to vector<16x384xf32>
    %396 = arith.mulf %395, %392 : vector<16x384xf32>
    %397 = arith.mulf %396, %392 : vector<16x384xf32>
    %398 = arith.mulf %397, %392 : vector<16x384xf32>
    %399 = arith.addf %392, %398 : vector<16x384xf32>
    %cst_151 = arith.constant 0.797884583 : f32
    %400 = vector.broadcast %cst_151 : f32 to vector<16x384xf32>
    %401 = arith.mulf %400, %399 : vector<16x384xf32>
    %402 = math.tanh %401 : vector<16x384xf32>
    %cst_152 = arith.constant 1.000000e+00 : f32
    %403 = vector.broadcast %cst_152 : f32 to vector<16x384xf32>
    %404 = arith.addf %403, %402 : vector<16x384xf32>
    %405 = arith.mulf %394, %404 : vector<16x384xf32>
    %406 = arith.truncf %405 : vector<16x384xf32> to vector<16x384xbf16>
    %c1_153 = arith.constant 1 : index
    %c0_154 = arith.constant 0 : index
    %c0_155 = arith.constant 0 : index
    %407 = vector.load %arg14[%c1_153, %c0_154, %c0_155] : memref<2x384x128xbf16, #tpu.memory_space<vmem>>, vector<1x384x128xbf16>
    %408 = vector.shape_cast %407 : vector<1x384x128xbf16> to vector<384x128xbf16>
    %cst_156 = arith.constant dense<0.000000e+00> : vector<16x128xf32>
    %409 = tpu.matmul %406, %408, %cst_156 {dimension_numbers = #tpu.dot_dimension_numbers<[1], [0], [0], [1], [0, 0, 1, 1], [], []>} : vector<16x384xbf16>, vector<384x128xbf16>, vector<16x128xf32> -> vector<16x128xf32>
    %c1_157 = arith.constant 1 : index
    %c0_158 = arith.constant 0 : index
    %c0_159 = arith.constant 0 : index
    %410 = vector.load %arg15[%c1_157, %c0_158, %c0_159] : memref<2x1x128xf32, #tpu.memory_space<vmem>>, vector<1x1x128xf32>
    %411 = vector.shape_cast %410 : vector<1x1x128xf32> to vector<1x128xf32>
    %412 = vector.broadcast %411 : vector<1x128xf32> to vector<16x128xf32>
    %413 = arith.addf %409, %412 : vector<16x128xf32>
    %414 = arith.addf %356, %413 : vector<16x128xf32>
    %c0_160 = arith.constant 0 : index
    %c0_161 = arith.constant 0 : index
    %c0_162 = arith.constant 0 : index
    %415 = vector.load %arg16[%c0_160, %c0_161, %c0_162] : memref<1x16x128xf32, #tpu.memory_space<vmem>>, vector<1x16x128xf32>
    %416 = vector.shape_cast %415 : vector<1x16x128xf32> to vector<16x128xf32>
    %417 = vector.shape_cast %414 : vector<16x128xf32> to vector<1x16x128xf32>
    tpu.vector_store %arg16[%c0_160, %c0_161, %c0_162], %417 {strides = array<i32>} : memref<1x16x128xf32, #tpu.memory_space<vmem>>, vector<1x16x128xf32>,
    return
  }
  func.func @transform_0(%arg0: i32) -> (i32, i32, i32) {
    %c0_i32 = arith.constant 0 : i32
    %c0_i32_0 = arith.constant 0 : i32
    %c0_i32_1 = arith.constant 0 : i32
    return %arg0, %c0_i32, %c0_i32_0 : i32, i32, i32
  }
  func.func @transform_1(%arg0: i32) -> (i32, i32) {
    %c0_i32 = arith.constant 0 : i32
    %c0_i32_0 = arith.constant 0 : i32
    %c0_i32_1 = arith.constant 0 : i32
    return %c0_i32, %c0_i32_0 : i32, i32
  }
  func.func @transform_2(%arg0: i32) -> (i32, i32) {
    %c0_i32 = arith.constant 0 : i32
    %c0_i32_0 = arith.constant 0 : i32
    %c0_i32_1 = arith.constant 0 : i32
    return %c0_i32, %c0_i32_0 : i32, i32
  }
  func.func @transform_3(%arg0: i32) -> (i32, i32) {
    %c0_i32 = arith.constant 0 : i32
    %c0_i32_0 = arith.constant 0 : i32
    %c0_i32_1 = arith.constant 0 : i32
    return %c0_i32, %c0_i32_0 : i32, i32
  }
  func.func @transform_4(%arg0: i32) -> (i32, i32, i32) {
    %c0_i32 = arith.constant 0 : i32
    %c0_i32_0 = arith.constant 0 : i32
    %c0_i32_1 = arith.constant 0 : i32
    %c0_i32_2 = arith.constant 0 : i32
    return %c0_i32, %c0_i32_0, %c0_i32_1 : i32, i32, i32
  }
  func.func @transform_5(%arg0: i32) -> (i32, i32, i32) {
    %c0_i32 = arith.constant 0 : i32
    %c0_i32_0 = arith.constant 0 : i32
    %c0_i32_1 = arith.constant 0 : i32
    %c0_i32_2 = arith.constant 0 : i32
    return %c0_i32, %c0_i32_0, %c0_i32_1 : i32, i32, i32
  }
  func.func @transform_6(%arg0: i32) -> (i32, i32, i32) {
    %c0_i32 = arith.constant 0 : i32
    %c0_i32_0 = arith.constant 0 : i32
    %c0_i32_1 = arith.constant 0 : i32
    %c0_i32_2 = arith.constant 0 : i32
    return %c0_i32, %c0_i32_0, %c0_i32_1 : i32, i32, i32
  }
  func.func @transform_7(%arg0: i32) -> (i32, i32, i32) {
    %c0_i32 = arith.constant 0 : i32
    %c0_i32_0 = arith.constant 0 : i32
    %c0_i32_1 = arith.constant 0 : i32
    %c0_i32_2 = arith.constant 0 : i32
    return %c0_i32, %c0_i32_0, %c0_i32_1 : i32, i32, i32
  }
  func.func @transform_8(%arg0: i32) -> (i32, i32, i32) {
    %c0_i32 = arith.constant 0 : i32
    %c0_i32_0 = arith.constant 0 : i32
    %c0_i32_1 = arith.constant 0 : i32
    %c0_i32_2 = arith.constant 0 : i32
    return %c0_i32, %c0_i32_0, %c0_i32_1 : i32, i32, i32
  }
  func.func @transform_9(%arg0: i32) -> (i32, i32, i32) {
    %c0_i32 = arith.constant 0 : i32
    %c0_i32_0 = arith.constant 0 : i32
    %c0_i32_1 = arith.constant 0 : i32
    %c0_i32_2 = arith.constant 0 : i32
    return %c0_i32, %c0_i32_0, %c0_i32_1 : i32, i32, i32
  }
  func.func @transform_10(%arg0: i32) -> (i32, i32, i32) {
    %c0_i32 = arith.constant 0 : i32
    %c0_i32_0 = arith.constant 0 : i32
    %c0_i32_1 = arith.constant 0 : i32
    %c0_i32_2 = arith.constant 0 : i32
    return %c0_i32, %c0_i32_0, %c0_i32_1 : i32, i32, i32
  }
  func.func @transform_11(%arg0: i32) -> (i32, i32, i32) {
    %c0_i32 = arith.constant 0 : i32
    %c0_i32_0 = arith.constant 0 : i32
    %c0_i32_1 = arith.constant 0 : i32
    %c0_i32_2 = arith.constant 0 : i32
    return %c0_i32, %c0_i32_0, %c0_i32_1 : i32, i32, i32
  }
  func.func @transform_12(%arg0: i32) -> (i32, i32, i32) {
    %c0_i32 = arith.constant 0 : i32
    %c0_i32_0 = arith.constant 0 : i32
    %c0_i32_1 = arith.constant 0 : i32
    %c0_i32_2 = arith.constant 0 : i32
    return %c0_i32, %c0_i32_0, %c0_i32_1 : i32, i32, i32
  }
  func.func @transform_13(%arg0: i32) -> (i32, i32, i32) {
    %c0_i32 = arith.constant 0 : i32
    %c0_i32_0 = arith.constant 0 : i32
    %c0_i32_1 = arith.constant 0 : i32
    %c0_i32_2 = arith.constant 0 : i32
    return %c0_i32, %c0_i32_0, %c0_i32_1 : i32, i32, i32
  }
  func.func @transform_14(%arg0: i32) -> (i32, i32, i32) {
    %c0_i32 = arith.constant 0 : i32
    %c0_i32_0 = arith.constant 0 : i32
    %c0_i32_1 = arith.constant 0 : i32
    %c0_i32_2 = arith.constant 0 : i32
    return %c0_i32, %c0_i32_0, %c0_i32_1 : i32, i32, i32
  }
  func.func @transform_15(%arg0: i32) -> (i32, i32, i32) {
    %c0_i32 = arith.constant 0 : i32
    %c0_i32_0 = arith.constant 0 : i32
    %c0_i32_1 = arith.constant 0 : i32
    return %arg0, %c0_i32, %c0_i32_0 : i32, i32, i32
  }
}

</mosaic_0001>

<llo_original>
// kernel: forward.1
$region0: #{forward.1}
  #allocation0 [shape = 'u32[]', space=smem, size = 0x4, offset = 0x4, fixed_abs, tag = 'smem constant byte address 0x4 - core index']
  #allocation1 [shape = 'u32[72,128]{1,0:T(1,128)}', space=vmem, size = 0x9000, scoped, tag = 'internal scratch']
  %s0 = inlined_call_operand.vmem [shape: bf16[2,16,256], index: 0, kind: input, shape index: {}]
  %s1 = inlined_call_operand.vmem [shape: bf16[256,128], index: 1, kind: input, shape index: {}]
  %s2 = inlined_call_operand.vmem [shape: f32[1,128], index: 2, kind: input, shape index: {}]
  %s3 = inlined_call_operand.hbm [shape: f32[16,128], index: 3, kind: input, shape index: {}]
  %s4 = inlined_call_operand.hbm [shape: f32[2,1,128], index: 4, kind: input, shape index: {}]
  %s5 = inlined_call_operand.hbm [shape: f32[2,1,128], index: 5, kind: input, shape index: {}]
  %s6 = inlined_call_operand.vmem [shape: bf16[2,128,384], index: 6, kind: input, shape index: {}]
  %s7 = inlined_call_operand.vmem [shape: bf16[2,128,128], index: 7, kind: input, shape index: {}]
  %s8 = inlined_call_operand.vmem [shape: f32[2,1,128], index: 8, kind: input, shape index: {}]
  %s9 = inlined_call_operand.hbm [shape: f32[2,1,128], index: 9, kind: input, shape index: {}]
  %s10 = inlined_call_operand.hbm [shape: f32[2,1,128], index: 10, kind: input, shape index: {}]
  %s11 = inlined_call_operand.vmem [shape: bf16[2,128,384], index: 11, kind: input, shape index: {}]
  %s12 = inlined_call_operand.hbm [shape: f32[2,1,384], index: 12, kind: input, shape index: {}]
  %s13 = inlined_call_operand.hbm [shape: bf16[2,384,128], index: 13, kind: input, shape index: {}]
  %s14 = inlined_call_operand.hbm [shape: f32[2,1,128], index: 14, kind: input, shape index: {}]
  %s15 = inlined_call_operand.vmem [shape: f32[2,16,128], index: 15, kind: output, shape index: {}]
  %s16 = sld [smem:[#allocation0]]
  $region125: #{forward.1} parent=0
    _
  %s18 = ssub.s32 1, %s16
  %s19 = scalar_select 0, %s18, %s16
  $region1: #{forward.1} parent=0
    #allocation2 [shape = 'u8[8192]{0}', space=vmem, size = 0x2000, scoped, tag = 'input window, operand 3, single buffered']
    #allocation3 [shape = 's32[2]{0}', space=sflag, size = 0x8, scoped, tag = 'scoped memory for forward.1']
    #allocation4 [shape = 'u8[1024]{0}', space=vmem, size = 0x400, scoped, tag = 'input window, operand 4, single buffered']
    #allocation5 [shape = 's32[1]{0}', space=sflag, size = 0x4, scoped, tag = 'scoped memory for forward.1']
    #allocation6 [shape = 'u8[1024]{0}', space=vmem, size = 0x400, scoped, tag = 'input window, operand 5, single buffered']
    #allocation7 [shape = 'u8[1024]{0}', space=vmem, size = 0x400, scoped, tag = 'input window, operand 9, single buffered']
    #allocation8 [shape = 's32[1]{0}', space=sflag, size = 0x4, scoped, tag = 'scoped memory for forward.1']
    #allocation9 [shape = 'u8[1024]{0}', space=vmem, size = 0x400, scoped, tag = 'input window, operand 10, single buffered']
    #allocation10 [shape = 'u8[3072]{0}', space=vmem, size = 0xc00, scoped, tag = 'input window, operand 12, single buffered']
    #allocation11 [shape = 's32[1]{0}', space=sflag, size = 0x4, scoped, tag = 'scoped memory for forward.1']
    #allocation12 [shape = 'u8[196608]{0}', space=vmem, size = 0x30000, scoped, tag = 'input window, operand 13, single buffered']
    #allocation13 [shape = 'u8[1024]{0}', space=vmem, size = 0x400, scoped, tag = 'input window, operand 14, single buffered']
    #allocation14 [shape = 's32[1]{0}', space=sflag, size = 0x4, scoped, tag = 'scoped memory for forward.1']
    %20 = vsyncpa [#allocation3], 0
    %21 = vsyncpa [#allocation5], 0
    %22 = vsyncpa [#allocation8], 0
    %23 = vsyncpa [#allocation11], 0
    %24 = vsyncpa [#allocation14], 0
    loop: start=0, step=1, limit=4
    $region2: #{forward.1} parent=1 // loop_pre_header
      _
    $region3: #{forward.1} parent=1 // loop_header
      %s26 = sphi 0, %s30
      %p27 = scmp.ge.s32.totalorder %s26, 4
      %s36 = sphi 0, %s38
      %s39 = sphi 0, %s36
      %s40 = sphi 0, %s39
      %s56 = sphi 0, %s40
      %s60 = sphi 0, %s60
      %s62 = sphi 0, %s60
      %s63 = sphi 0, %s62
      %s77 = sphi 0, %s63
      %s81 = sphi 0, %s81
      %s83 = sphi 0, %s81
      %s84 = sphi 0, %s83
      %s98 = sphi 0, %s84
      %s102 = sphi 0, %s102
      %s104 = sphi 0, %s102
      %s105 = sphi 0, %s104
      %s119 = sphi 0, %s105
      %s123 = sphi 0, %s123
      %s125 = sphi 0, %s123
      %s126 = sphi 0, %s125
      %s140 = sphi 0, %s126
      %s144 = sphi 0, %s144
      %s146 = sphi 0, %s144
      %s147 = sphi 0, %s146
      %s161 = sphi 0, %s147
      %s165 = sphi 0, %s165
      %s167 = sphi 0, %s165
      %s168 = sphi 0, %s167
      %s182 = sphi 0, %s168
      %s186 = sphi 0, %s186
      %s188 = sphi 0, %s186
      %s189 = sphi 0, %s188
      %s203 = sphi 0, %s189
      %s207 = sphi 0, %s207
      %s209 = sphi 0, %s207
      %s210 = sphi 0, %s209
      %s224 = sphi 0, %s210
      %s228 = sphi 0, %s228
      %s230 = sphi 0, %s228
      %s231 = sphi 0, %s230
      %s245 = sphi 0, %s231
      %s249 = sphi 0, %s249
      %s251 = sphi 0, %s249
      %s252 = sphi 0, %s251
      %s266 = sphi 0, %s252
      %s270 = sphi 0, %s270
      %s272 = sphi 0, %s270
      %s273 = sphi 0, %s272
      %s287 = sphi 0, %s273
      %s291 = sphi 0, %s291
      %s293 = sphi 0, %s291
      %s294 = sphi 0, %s293
      %s308 = sphi 0, %s294
      %s312 = sphi 0, %s312
      %s314 = sphi 0, %s312
      %s315 = sphi 0, %s314
      %s329 = sphi 0, %s315
      %s333 = sphi 0, %s333
      %s335 = sphi 0, %s333
      %s336 = sphi 0, %s335
      %s350 = sphi 0, %s336
      %s356 = sphi 0, %s358
      %s359 = sphi 0, %s356
      %s360 = sphi 0, %s359
      %s376 = sphi 0, %s360
    $region4: #{forward.1} parent=1 // loop_header_branch
      %29 = sbr.rel (%p27) target = $region8
    $region5: #{forward.1} parent=1 // loop_body
      %s31 = ssub.s32 %s26, 1
      %s32 = ssub.s32 %s26, 2
      %s33 = sadd.s32 %s26, 1
      %s34 = ssub.s32 %s26, %s33
      %p35 = scmp.eq.s32.totalorder %s34, 0
      %s37 = sadd.s32 %s36, 1
      %s38 = scalar_select %p35, %s36, %s37
      %p41 = pneg %p35
      %p42 = scmp.eq.s32.totalorder %s26, 1
      %p43 = por %p41, %p42
      %p44 = scmp.ne.s32.totalorder %s36, %s39
      %p45 = scmp.eq.s32.totalorder %s26, 0
      %p46 = por %p44, %p45
      %p47 = scmp.ne.s32.totalorder %s36, %s39
      %p48 = scmp.eq.s32.totalorder %s31, 1
      %p49 = por %p47, %p48
      %p50 = scmp.ne.s32.totalorder %s39, %s40
      %p51 = scmp.eq.s32.totalorder %s31, 0
      %p52 = por %p50, %p51
      %p53 = scmp.ne.s32.totalorder %s39, %s40
      %p54 = scmp.eq.s32.totalorder %s32, 1
      %p55 = por %p53, %p54
      %p57 = scmp.ne.s32.totalorder %s40, %s56
      %p58 = scmp.eq.s32.totalorder %s32, 0
      %p59 = por %p57, %p58
      %s61 = sadd.s32 %s60, 1
      %p64 = scmp.eq.s32.totalorder %s26, 1
      %p65 = scmp.ne.s32.totalorder %s60, %s62
      %p66 = scmp.eq.s32.totalorder %s26, 0
      %p67 = por %p65, %p66
      %p68 = scmp.ne.s32.totalorder %s60, %s62
      %p69 = scmp.eq.s32.totalorder %s31, 1
      %p70 = por %p68, %p69
      %p71 = scmp.ne.s32.totalorder %s62, %s63
      %p72 = scmp.eq.s32.totalorder %s31, 0
      %p73 = por %p71, %p72
      %p74 = scmp.ne.s32.totalorder %s62, %s63
      %p75 = scmp.eq.s32.totalorder %s32, 1
      %p76 = por %p74, %p75
      %p78 = scmp.ne.s32.totalorder %s63, %s77
      %p79 = scmp.eq.s32.totalorder %s32, 0
      %p80 = por %p78, %p79
      %s82 = sadd.s32 %s81, 1
      %p85 = scmp.eq.s32.totalorder %s26, 1
      %p86 = scmp.ne.s32.totalorder %s81, %s83
      %p87 = scmp.eq.s32.totalorder %s26, 0
      %p88 = por %p86, %p87
      %p89 = scmp.ne.s32.totalorder %s81, %s83
      %p90 = scmp.eq.s32.totalorder %s31, 1
      %p91 = por %p89, %p90
      %p92 = scmp.ne.s32.totalorder %s83, %s84
      %p93 = scmp.eq.s32.totalorder %s31, 0
      %p94 = por %p92, %p93
      %p95 = scmp.ne.s32.totalorder %s83, %s84
      %p96 = scmp.eq.s32.totalorder %s32, 1
      %p97 = por %p95, %p96
      %p99 = scmp.ne.s32.totalorder %s84, %s98
      %p100 = scmp.eq.s32.totalorder %s32, 0
      %p101 = por %p99, %p100
      %s103 = sadd.s32 %s102, 1
      %p106 = scmp.eq.s32.totalorder %s26, 1
      %p107 = scmp.ne.s32.totalorder %s102, %s104
      %p108 = scmp.eq.s32.totalorder %s26, 0
      %p109 = por %p107, %p108
      %p110 = scmp.ne.s32.totalorder %s102, %s104
      %p111 = scmp.eq.s32.totalorder %s31, 1
      %p112 = por %p110, %p111
      %p113 = scmp.ne.s32.totalorder %s104, %s105
      %p114 = scmp.eq.s32.totalorder %s31, 0
      %p115 = por %p113, %p114
      %p116 = scmp.ne.s32.totalorder %s104, %s105
      %p117 = scmp.eq.s32.totalorder %s32, 1
      %p118 = por %p116, %p117
      %p120 = scmp.ne.s32.totalorder %s105, %s119
      %p121 = scmp.eq.s32.totalorder %s32, 0
      %p122 = por %p120, %p121
      %s124 = sadd.s32 %s123, 1
      %p127 = scmp.eq.s32.totalorder %s26, 1
      %p128 = scmp.ne.s32.totalorder %s123, %s125
      %p129 = scmp.eq.s32.totalorder %s26, 0
      %p130 = por %p128, %p129
      %p131 = scmp.ne.s32.totalorder %s123, %s125
      %p132 = scmp.eq.s32.totalorder %s31, 1
      %p133 = por %p131, %p132
      %p134 = scmp.ne.s32.totalorder %s125, %s126
      %p135 = scmp.eq.s32.totalorder %s31, 0
      %p136 = por %p134, %p135
      %p137 = scmp.ne.s32.totalorder %s125, %s126
      %p138 = scmp.eq.s32.totalorder %s32, 1
      %p139 = por %p137, %p138
      %p141 = scmp.ne.s32.totalorder %s126, %s140
      %p142 = scmp.eq.s32.totalorder %s32, 0
      %p143 = por %p141, %p142
      %s145 = sadd.s32 %s144, 1
      %p148 = scmp.eq.s32.totalorder %s26, 1
      %p149 = scmp.ne.s32.totalorder %s144, %s146
      %p150 = scmp.eq.s32.totalorder %s26, 0
      %p151 = por %p149, %p150
      %p152 = scmp.ne.s32.totalorder %s144, %s146
      %p153 = scmp.eq.s32.totalorder %s31, 1
      %p154 = por %p152, %p153
      %p155 = scmp.ne.s32.totalorder %s146, %s147
      %p156 = scmp.eq.s32.totalorder %s31, 0
      %p157 = por %p155, %p156
      %p158 = scmp.ne.s32.totalorder %s146, %s147
      %p159 = scmp.eq.s32.totalorder %s32, 1
      %p160 = por %p158, %p159
      %p162 = scmp.ne.s32.totalorder %s147, %s161
      %p163 = scmp.eq.s32.totalorder %s32, 0
      %p164 = por %p162, %p163
      %s166 = sadd.s32 %s165, 1
      %p169 = scmp.eq.s32.totalorder %s26, 1
      %p170 = scmp.ne.s32.totalorder %s165, %s167
      %p171 = scmp.eq.s32.totalorder %s26, 0
      %p172 = por %p170, %p171
      %p173 = scmp.ne.s32.totalorder %s165, %s167
      %p174 = scmp.eq.s32.totalorder %s31, 1
      %p175 = por %p173, %p174
      %p176 = scmp.ne.s32.totalorder %s167, %s168
      %p177 = scmp.eq.s32.totalorder %s31, 0
      %p178 = por %p176, %p177
      %p179 = scmp.ne.s32.totalorder %s167, %s168
      %p180 = scmp.eq.s32.totalorder %s32, 1
      %p181 = por %p179, %p180
      %p183 = scmp.ne.s32.totalorder %s168, %s182
      %p184 = scmp.eq.s32.totalorder %s32, 0
      %p185 = por %p183, %p184
      %s187 = sadd.s32 %s186, 1
      %p190 = scmp.eq.s32.totalorder %s26, 1
      %p191 = scmp.ne.s32.totalorder %s186, %s188
      %p192 = scmp.eq.s32.totalorder %s26, 0
      %p193 = por %p191, %p192
      %p194 = scmp.ne.s32.totalorder %s186, %s188
      %p195 = scmp.eq.s32.totalorder %s31, 1
      %p196 = por %p194, %p195
      %p197 = scmp.ne.s32.totalorder %s188, %s189
      %p198 = scmp.eq.s32.totalorder %s31, 0
      %p199 = por %p197, %p198
      %p200 = scmp.ne.s32.totalorder %s188, %s189
      %p201 = scmp.eq.s32.totalorder %s32, 1
      %p202 = por %p200, %p201
      %p204 = scmp.ne.s32.totalorder %s189, %s203
      %p205 = scmp.eq.s32.totalorder %s32, 0
      %p206 = por %p204, %p205
      %s208 = sadd.s32 %s207, 1
      %p211 = scmp.eq.s32.totalorder %s26, 1
      %p212 = scmp.ne.s32.totalorder %s207, %s209
      %p213 = scmp.eq.s32.totalorder %s26, 0
      %p214 = por %p212, %p213
      %p215 = scmp.ne.s32.totalorder %s207, %s209
      %p216 = scmp.eq.s32.totalorder %s31, 1
      %p217 = por %p215, %p216
      %p218 = scmp.ne.s32.totalorder %s209, %s210
      %p219 = scmp.eq.s32.totalorder %s31, 0
      %p220 = por %p218, %p219
      %p221 = scmp.ne.s32.totalorder %s209, %s210
      %p222 = scmp.eq.s32.totalorder %s32, 1
      %p223 = por %p221, %p222
      %p225 = scmp.ne.s32.totalorder %s210, %s224
      %p226 = scmp.eq.s32.totalorder %s32, 0
      %p227 = por %p225, %p226
      %s229 = sadd.s32 %s228, 1
      %p232 = scmp.eq.s32.totalorder %s26, 1
      %p233 = scmp.ne.s32.totalorder %s228, %s230
      %p234 = scmp.eq.s32.totalorder %s26, 0
      %p235 = por %p233, %p234
      %p236 = scmp.ne.s32.totalorder %s228, %s230
      %p237 = scmp.eq.s32.totalorder %s31, 1
      %p238 = por %p236, %p237
      %p239 = scmp.ne.s32.totalorder %s230, %s231
      %p240 = scmp.eq.s32.totalorder %s31, 0
      %p241 = por %p239, %p240
      %p242 = scmp.ne.s32.totalorder %s230, %s231
      %p243 = scmp.eq.s32.totalorder %s32, 1
      %p244 = por %p242, %p243
      %p246 = scmp.ne.s32.totalorder %s231, %s245
      %p247 = scmp.eq.s32.totalorder %s32, 0
      %p248 = por %p246, %p247
      %s250 = sadd.s32 %s249, 1
      %p253 = scmp.eq.s32.totalorder %s26, 1
      %p254 = scmp.ne.s32.totalorder %s249, %s251
      %p255 = scmp.eq.s32.totalorder %s26, 0
      %p256 = por %p254, %p255
      %p257 = scmp.ne.s32.totalorder %s249, %s251
      %p258 = scmp.eq.s32.totalorder %s31, 1
      %p259 = por %p257, %p258
      %p260 = scmp.ne.s32.totalorder %s251, %s252
      %p261 = scmp.eq.s32.totalorder %s31, 0
      %p262 = por %p260, %p261
      %p263 = scmp.ne.s32.totalorder %s251, %s252
      %p264 = scmp.eq.s32.totalorder %s32, 1
      %p265 = por %p263, %p264
      %p267 = scmp.ne.s32.totalorder %s252, %s266
      %p268 = scmp.eq.s32.totalorder %s32, 0
      %p269 = por %p267, %p268
      %s271 = sadd.s32 %s270, 1
      %p274 = scmp.eq.s32.totalorder %s26, 1
      %p275 = scmp.ne.s32.totalorder %s270, %s272
      %p276 = scmp.eq.s32.totalorder %s26, 0
      %p277 = por %p275, %p276
      %p278 = scmp.ne.s32.totalorder %s270, %s272
      %p279 = scmp.eq.s32.totalorder %s31, 1
      %p280 = por %p278, %p279
      %p281 = scmp.ne.s32.totalorder %s272, %s273
      %p282 = scmp.eq.s32.totalorder %s31, 0
      %p283 = por %p281, %p282
      %p284 = scmp.ne.s32.totalorder %s272, %s273
      %p285 = scmp.eq.s32.totalorder %s32, 1
      %p286 = por %p284, %p285
      %p288 = scmp.ne.s32.totalorder %s273, %s287
      %p289 = scmp.eq.s32.totalorder %s32, 0
      %p290 = por %p288, %p289
      %s292 = sadd.s32 %s291, 1
      %p295 = scmp.eq.s32.totalorder %s26, 1
      %p296 = scmp.ne.s32.totalorder %s291, %s293
      %p297 = scmp.eq.s32.totalorder %s26, 0
      %p298 = por %p296, %p297
      %p299 = scmp.ne.s32.totalorder %s291, %s293
      %p300 = scmp.eq.s32.totalorder %s31, 1
      %p301 = por %p299, %p300
      %p302 = scmp.ne.s32.totalorder %s293, %s294
      %p303 = scmp.eq.s32.totalorder %s31, 0
      %p304 = por %p302, %p303
      %p305 = scmp.ne.s32.totalorder %s293, %s294
      %p306 = scmp.eq.s32.totalorder %s32, 1
      %p307 = por %p305, %p306
      %p309 = scmp.ne.s32.totalorder %s294, %s308
      %p310 = scmp.eq.s32.totalorder %s32, 0
      %p311 = por %p309, %p310
      %s313 = sadd.s32 %s312, 1
      %p316 = scmp.eq.s32.totalorder %s26, 1
      %p317 = scmp.ne.s32.totalorder %s312, %s314
      %p318 = scmp.eq.s32.totalorder %s26, 0
      %p319 = por %p317, %p318
      %p320 = scmp.ne.s32.totalorder %s312, %s314
      %p321 = scmp.eq.s32.totalorder %s31, 1
      %p322 = por %p320, %p321
      %p323 = scmp.ne.s32.totalorder %s314, %s315
      %p324 = scmp.eq.s32.totalorder %s31, 0
      %p325 = por %p323, %p324
      %p326 = scmp.ne.s32.totalorder %s314, %s315
      %p327 = scmp.eq.s32.totalorder %s32, 1
      %p328 = por %p326, %p327
      %p330 = scmp.ne.s32.totalorder %s315, %s329
      %p331 = scmp.eq.s32.totalorder %s32, 0
      %p332 = por %p330, %p331
      %s334 = sadd.s32 %s333, 1
      %p337 = scmp.eq.s32.totalorder %s26, 1
      %p338 = scmp.ne.s32.totalorder %s333, %s335
      %p339 = scmp.eq.s32.totalorder %s26, 0
      %p340 = por %p338, %p339
      %p341 = scmp.ne.s32.totalorder %s333, %s335
      %p342 = scmp.eq.s32.totalorder %s31, 1
      %p343 = por %p341, %p342
      %p344 = scmp.ne.s32.totalorder %s335, %s336
      %p345 = scmp.eq.s32.totalorder %s31, 0
      %p346 = por %p344, %p345
      %p347 = scmp.ne.s32.totalorder %s335, %s336
      %p348 = scmp.eq.s32.totalorder %s32, 1
      %p349 = por %p347, %p348
      %p351 = scmp.ne.s32.totalorder %s336, %s350
      %p352 = scmp.eq.s32.totalorder %s32, 0
      %p353 = por %p351, %p352
      %s354 = ssub.s32 %s26, %s33
      %p355 = scmp.eq.s32.totalorder %s354, 0
      %s357 = sadd.s32 %s356, 1
      %s358 = scalar_select %p355, %s356, %s357
      %p361 = pneg %p355
      %p362 = scmp.eq.s32.totalorder %s26, 1
      %p363 = por %p361, %p362
      %p364 = scmp.ne.s32.totalorder %s356, %s359
      %p365 = scmp.eq.s32.totalorder %s26, 0
      %p366 = por %p364, %p365
      %p367 = scmp.ne.s32.totalorder %s356, %s359
      %p368 = scmp.eq.s32.totalorder %s31, 1
      %p369 = por %p367, %p368
      %p370 = scmp.ne.s32.totalorder %s359, %s360
      %p371 = scmp.eq.s32.totalorder %s31, 0
      %p372 = por %p370, %p371
      %p373 = scmp.ne.s32.totalorder %s359, %s360
      %p374 = scmp.eq.s32.totalorder %s32, 1
      %p375 = por %p373, %p374
      %p377 = scmp.ne.s32.totalorder %s360, %s376
      %p378 = scmp.eq.s32.totalorder %s32, 0
      %p379 = por %p377, %p378
      %p380 = scmp.le.s32.totalorder 1, %s26
      %p381 = scmp.lt.s32.totalorder %s26, 3
      %p382 = pnand %p380, %p381
      %p383 = pneg %p382
      // Predicated region
      $region9: #{forward.1} parent=5 // pred_check
        _
      $region10: #{forward.1} parent=5 // pred_check_branch
        %385 = sbr.rel (%p382) target = $region12
      $region11: #{forward.1} parent=5 // pred_region
        %s386 = ssub.s32 %s26, 1
        // Predicated region
        $region13: #{forward.1} parent=11 // pred_check
          %p387 = pneg %p73
        $region14: #{forward.1} parent=11 // pred_check_branch
          %389 = sbr.rel (%p387) target = $region16
        $region15: #{forward.1} parent=11 // pred_region
          _
        $region16: #{forward.1} parent=11 // pred_fallthru
          _
        // Predicated region
        $region17: #{forward.1} parent=11 // pred_check
          %p390 = pneg %p94
        $region18: #{forward.1} parent=11 // pred_check_branch
          %392 = sbr.rel (%p390) target = $region20
        $region19: #{forward.1} parent=11 // pred_region
          _
        $region20: #{forward.1} parent=11 // pred_fallthru
          _
        // Predicated region
        $region21: #{forward.1} parent=11 // pred_check
          %p393 = pneg %p115
        $region22: #{forward.1} parent=11 // pred_check_branch
          %395 = sbr.rel (%p393) target = $region24
        $region23: #{forward.1} parent=11 // pred_region
          %397 = vsyncadd [#allocation3], 0
          %s398 = sshll.u32 %s3, 4
          %s399 = int_to_ptr.hbm [resolvable:$true] %s398
          %s400 = sshll.u32 [#allocation2], 4
          %s401 = int_to_ptr.vmem [resolvable:$true] %s400
          %406 = dma.hbm_to_vmem [thread:$0]  %s399, 256, %s401, [#allocation3], 128, 128, 8
        $region24: #{forward.1} parent=11 // pred_fallthru
          _
        // Predicated region
        $region25: #{forward.1} parent=11 // pred_check
          %p407 = pneg %p136
        $region26: #{forward.1} parent=11 // pred_check_branch
          %409 = sbr.rel (%p407) target = $region28
        $region27: #{forward.1} parent=11 // pred_region
          %411 = vsyncadd [#allocation5], 0
          %s412 = sshll.u32 %s4, 4
          %s413 = int_to_ptr.hbm [resolvable:$true] %s412
          %s414 = sshll.u32 [#allocation4], 4
          %s415 = int_to_ptr.vmem [resolvable:$true] %s414
          %420 = dma.hbm_to_vmem [thread:$0]  %s413, 32, %s415, [#allocation5], 16, 16, 1
        $region28: #{forward.1} parent=11 // pred_fallthru
          _
        // Predicated region
        $region29: #{forward.1} parent=11 // pred_check
          %p421 = pneg %p157
        $region30: #{forward.1} parent=11 // pred_check_branch
          %423 = sbr.rel (%p421) target = $region32
        $region31: #{forward.1} parent=11 // pred_region
          %425 = vsyncadd [#allocation5], 0
          %s426 = sshll.u32 %s5, 4
          %s427 = int_to_ptr.hbm [resolvable:$true] %s426
          %s428 = sshll.u32 [#allocation6], 4
          %s429 = int_to_ptr.vmem [resolvable:$true] %s428
          %434 = dma.hbm_to_vmem [thread:$0]  %s427, 32, %s429, [#allocation5], 16, 16, 1
        $region32: #{forward.1} parent=11 // pred_fallthru
          _
        // Predicated region
        $region33: #{forward.1} parent=11 // pred_check
          %p435 = pneg %p178
        $region34: #{forward.1} parent=11 // pred_check_branch
          %437 = sbr.rel (%p435) target = $region36
        $region35: #{forward.1} parent=11 // pred_region
          _
        $region36: #{forward.1} parent=11 // pred_fallthru
          _
        // Predicated region
        $region37: #{forward.1} parent=11 // pred_check
          %p438 = pneg %p199
        $region38: #{forward.1} parent=11 // pred_check_branch
          %440 = sbr.rel (%p438) target = $region40
        $region39: #{forward.1} parent=11 // pred_region
          _
        $region40: #{forward.1} parent=11 // pred_fallthru
          _
        // Predicated region
        $region41: #{forward.1} parent=11 // pred_check
          %p441 = pneg %p220
        $region42: #{forward.1} parent=11 // pred_check_branch
          %443 = sbr.rel (%p441) target = $region44
        $region43: #{forward.1} parent=11 // pred_region
          _
        $region44: #{forward.1} parent=11 // pred_fallthru
          _
        // Predicated region
        $region45: #{forward.1} parent=11 // pred_check
          %p444 = pneg %p241
        $region46: #{forward.1} parent=11 // pred_check_branch
          %446 = sbr.rel (%p444) target = $region48
        $region47: #{forward.1} parent=11 // pred_region
          %448 = vsyncadd [#allocation8], 0
          %s449 = sshll.u32 %s9, 4
          %s450 = int_to_ptr.hbm [resolvable:$true] %s449
          %s451 = sshll.u32 [#allocation7], 4
          %s452 = int_to_ptr.vmem [resolvable:$true] %s451
          %457 = dma.hbm_to_vmem [thread:$0]  %s450, 32, %s452, [#allocation8], 16, 16, 1
        $region48: #{forward.1} parent=11 // pred_fallthru
          _
        // Predicated region
        $region49: #{forward.1} parent=11 // pred_check
          %p458 = pneg %p262
        $region50: #{forward.1} parent=11 // pred_check_branch
          %460 = sbr.rel (%p458) target = $region52
        $region51: #{forward.1} parent=11 // pred_region
          %462 = vsyncadd [#allocation8], 0
          %s463 = sshll.u32 %s10, 4
          %s464 = int_to_ptr.hbm [resolvable:$true] %s463
          %s465 = sshll.u32 [#allocation9], 4
          %s466 = int_to_ptr.vmem [resolvable:$true] %s465
          %471 = dma.hbm_to_vmem [thread:$0]  %s464, 32, %s466, [#allocation8], 16, 16, 1
        $region52: #{forward.1} parent=11 // pred_fallthru
          _
        // Predicated region
        $region53: #{forward.1} parent=11 // pred_check
          %p472 = pneg %p283
        $region54: #{forward.1} parent=11 // pred_check_branch
          %474 = sbr.rel (%p472) target = $region56
        $region55: #{forward.1} parent=11 // pred_region
          _
        $region56: #{forward.1} parent=11 // pred_fallthru
          _
        // Predicated region
        $region57: #{forward.1} parent=11 // pred_check
          %p475 = pneg %p304
        $region58: #{forward.1} parent=11 // pred_check_branch
          %477 = sbr.rel (%p475) target = $region60
        $region59: #{forward.1} parent=11 // pred_region
          %479 = vsyncadd [#allocation11], 0
          %s480 = sshll.u32 %s12, 4
          %s481 = int_to_ptr.hbm [resolvable:$true] %s480
          %s482 = sshll.u32 [#allocation10], 4
          %s483 = int_to_ptr.vmem [resolvable:$true] %s482
          %488 = dma.hbm_to_vmem [thread:$0]  %s481, 96, %s483, [#allocation11], 48, 48, 3
        $region60: #{forward.1} parent=11 // pred_fallthru
          _
        // Predicated region
        $region61: #{forward.1} parent=11 // pred_check
          %p489 = pneg %p325
        $region62: #{forward.1} parent=11 // pred_check_branch
          %491 = sbr.rel (%p489) target = $region64
        $region63: #{forward.1} parent=11 // pred_region
          %493 = vsyncadd [#allocation11], 0
          %s494 = sshll.u32 %s13, 4
          %s495 = int_to_ptr.hbm [resolvable:$true] %s494
          %s496 = sshll.u32 [#allocation12], 4
          %s497 = int_to_ptr.vmem [resolvable:$true] %s496
          %502 = dma.hbm_to_vmem [thread:$0]  %s495, 6144, %s497, [#allocation11], 64, 64, 4
        $region64: #{forward.1} parent=11 // pred_fallthru
          _
        // Predicated region
        $region65: #{forward.1} parent=11 // pred_check
          %p503 = pneg %p346
        $region66: #{forward.1} parent=11 // pred_check_branch
          %505 = sbr.rel (%p503) target = $region68
        $region67: #{forward.1} parent=11 // pred_region
          %507 = vsyncadd [#allocation14], 0
          %s508 = sshll.u32 %s14, 4
          %s509 = int_to_ptr.hbm [resolvable:$true] %s508
          %s510 = sshll.u32 [#allocation13], 4
          %s511 = int_to_ptr.vmem [resolvable:$true] %s510
          %516 = dma.hbm_to_vmem [thread:$0]  %s509, 32, %s511, [#allocation14], 16, 16, 1
        $region68: #{forward.1} parent=11 // pred_fallthru
          _
      $region12: #{forward.1} parent=5 // pred_fallthru
        _
      %p517 = scmp.lt.s32.totalorder %s26, 2
      // Predicated region
      $region69: #{forward.1} parent=5 // pred_check
        %p518 = pneg %p517
      $region70: #{forward.1} parent=5 // pred_check_branch
        %520 = sbr.rel (%p518) target = $region72
      $region71: #{forward.1} parent=5 // pred_region
        // Predicated region
        $region73: #{forward.1} parent=71 // pred_check
          %p521 = pneg %p46
        $region74: #{forward.1} parent=71 // pred_check_branch
          %523 = sbr.rel (%p521) target = $region76
        $region75: #{forward.1} parent=71 // pred_region
          %p524 = scmp.lt.s32.totalorder %s26, 1
          %s525 = scalar_select %p524, %s26, 1
          %s526 = smul.addr %s525, 4
          %s527 = smul.addr %s526, 4
          %s528 = scalar_lea.vmem %s0, %s527
        $region76: #{forward.1} parent=71 // pred_fallthru
          _
      $region72: #{forward.1} parent=5 // pred_fallthru
        _
      %p529 = scmp.le.s32.totalorder 1, %s26
      %p530 = scmp.lt.s32.totalorder %s26, 3
      %p531 = pnand %p529, %p530
      %p532 = pneg %p531
      // Predicated region
      $region77: #{forward.1} parent=5 // pred_check
        _
      $region78: #{forward.1} parent=5 // pred_check_branch
        %534 = sbr.rel (%p531) target = $region80
      $region79: #{forward.1} parent=5 // pred_region
        %s535 = ssub.s32 %s26, 1
        // Predicated region
        $region81: #{forward.1} parent=79 // pred_check
          %p536 = pneg %p115
        $region82: #{forward.1} parent=79 // pred_check_branch
          %538 = sbr.rel (%p536) target = $region84
        $region83: #{forward.1} parent=79 // pred_region
          %540 = dma.done [#allocation3], 256
        $region84: #{forward.1} parent=79 // pred_fallthru
          _
        // Predicated region
        $region85: #{forward.1} parent=79 // pred_check
          %p541 = pneg %p136
        $region86: #{forward.1} parent=79 // pred_check_branch
          %543 = sbr.rel (%p541) target = $region88
        $region87: #{forward.1} parent=79 // pred_region
          %545 = dma.done [#allocation5], 32
        $region88: #{forward.1} parent=79 // pred_fallthru
          _
        // Predicated region
        $region89: #{forward.1} parent=79 // pred_check
          %p546 = pneg %p157
        $region90: #{forward.1} parent=79 // pred_check_branch
          %548 = sbr.rel (%p546) target = $region92
        $region91: #{forward.1} parent=79 // pred_region
          %550 = dma.done [#allocation5], 32
        $region92: #{forward.1} parent=79 // pred_fallthru
          _
        // Predicated region
        $region93: #{forward.1} parent=79 // pred_check
          %p551 = pneg %p241
        $region94: #{forward.1} parent=79 // pred_check_branch
          %553 = sbr.rel (%p551) target = $region96
        $region95: #{forward.1} parent=79 // pred_region
          %555 = dma.done [#allocation8], 32
        $region96: #{forward.1} parent=79 // pred_fallthru
          _
        // Predicated region
        $region97: #{forward.1} parent=79 // pred_check
          %p556 = pneg %p262
        $region98: #{forward.1} parent=79 // pred_check_branch
          %558 = sbr.rel (%p556) target = $region100
        $region99: #{forward.1} parent=79 // pred_region
          %560 = dma.done [#allocation8], 32
        $region100: #{forward.1} parent=79 // pred_fallthru
          _
        // Predicated region
        $region101: #{forward.1} parent=79 // pred_check
          %p561 = pneg %p304
        $region102: #{forward.1} parent=79 // pred_check_branch
          %563 = sbr.rel (%p561) target = $region104
        $region103: #{forward.1} parent=79 // pred_region
          %565 = dma.done [#allocation11], 96
        $region104: #{forward.1} parent=79 // pred_fallthru
          _
        // Predicated region
        $region105: #{forward.1} parent=79 // pred_check
          %p566 = pneg %p325
        $region106: #{forward.1} parent=79 // pred_check_branch
          %568 = sbr.rel (%p566) target = $region108
        $region107: #{forward.1} parent=79 // pred_region
          %570 = dma.done [#allocation11], 6144
        $region108: #{forward.1} parent=79 // pred_fallthru
          _
        // Predicated region
        $region109: #{forward.1} parent=79 // pred_check
          %p571 = pneg %p346
        $region110: #{forward.1} parent=79 // pred_check_branch
          %573 = sbr.rel (%p571) target = $region112
        $region111: #{forward.1} parent=79 // pred_region
          %575 = dma.done [#allocation14], 32
        $region112: #{forward.1} parent=79 // pred_fallthru
          _
        %p576 = scmp.lt.s32.totalorder %s31, 1
        %s577 = scalar_select %p576, %s31, 1
        %s578 = smul.addr %s577, 4
        %s579 = smul.addr %s578, 4
        %s580 = scalar_lea.vmem %s0, %s579
        %p581 = pneg %p52
        %p582 = pneg %p49
        %p583 = pneg %p73
        %p584 = pneg %p70
        %p585 = pneg %p94
        %p586 = pneg %p91
        %p587 = pneg %p115
        %p588 = pneg %p112
        %p589 = pneg %p136
        %p590 = pneg %p133
        %p591 = pneg %p157
        %p592 = pneg %p154
        %p593 = pneg %p178
        %p594 = pneg %p175
        %p595 = pneg %p199
        %p596 = pneg %p196
        %p597 = pneg %p220
        %p598 = pneg %p217
        %p599 = pneg %p241
        %p600 = pneg %p238
        %p601 = pneg %p262
        %p602 = pneg %p259
        %p603 = pneg %p283
        %p604 = pneg %p280
        %p605 = pneg %p304
        %p606 = pneg %p301
        %p607 = pneg %p325
        %p608 = pneg %p322
        %p609 = pneg %p346
        %p610 = pneg %p343
        %p611 = pneg %p372
        %p612 = pneg %p369
        %p613 = scmp.lt.s32.totalorder %s31, 1
        %s614 = scalar_select %p613, %s31, 1
        %s615 = smul.addr %s614, 2
        %s616 = smul.addr %s615, 8
        %s617 = scalar_lea.vmem %s15, %s616
        %p618 = scmp.lt.s32.totalorder %s31, 1
        %s619 = scalar_select %p618, %s31, 1
        %s620 = smul.addr %s619, 4
        %s621 = smul.addr %s620, 4
        %s622 = scalar_lea.vmem %s0, %s621
        %p623 = scmp.lt.s32.totalorder %s31, 1
        %s624 = scalar_select %p623, %s31, 1
        %s625 = smul.addr %s624, 2
        %s626 = smul.addr %s625, 8
        %s627 = scalar_lea.vmem %s15, %s626
        %v629 = vld [vmem:[%s622] sm:$0xff]
        %v630 = vld [vmem:[%s622 + $0x8] sm:$0xff]
        %v631 = vld [vmem:[%s1] sm:$0xf]
        %v632 = vld [vmem:[%s1 + $0x4] sm:$0xf]
        %v633 = vld [vmem:[%s1 + $0x8] sm:$0xf]
        %v634 = vld [vmem:[%s1 + $0xc] sm:$0xf]
        %v635 = vld [vmem:[%s1 + $0x10] sm:$0xf]
        %v636 = vld [vmem:[%s1 + $0x14] sm:$0xf]
        %v637 = vld [vmem:[%s1 + $0x18] sm:$0xf]
        %v638 = vld [vmem:[%s1 + $0x1c] sm:$0xf]
        %v639 = vld [vmem:[%s1 + $0x20] sm:$0xf]
        %v640 = vld [vmem:[%s1 + $0x24] sm:$0xf]
        %v641 = vld [vmem:[%s1 + $0x28] sm:$0xf]
        %v642 = vld [vmem:[%s1 + $0x2c] sm:$0xf]
        %v643 = vld [vmem:[%s1 + $0x30] sm:$0xf]
        %v644 = vld [vmem:[%s1 + $0x34] sm:$0xf]
        %v645 = vld [vmem:[%s1 + $0x38] sm:$0xf]
        %v646 = vld [vmem:[%s1 + $0x3c] sm:$0xf]
        %v647 = vld [vmem:[%s1 + $0x40] sm:$0xf]
        %v648 = vld [vmem:[%s1 + $0x44] sm:$0xf]
        %v649 = vld [vmem:[%s1 + $0x48] sm:$0xf]
        %v650 = vld [vmem:[%s1 + $0x4c] sm:$0xf]
        %v651 = vld [vmem:[%s1 + $0x50] sm:$0xf]
        %v652 = vld [vmem:[%s1 + $0x54] sm:$0xf]
        %v653 = vld [vmem:[%s1 + $0x58] sm:$0xf]
        %v654 = vld [vmem:[%s1 + $0x5c] sm:$0xf]
        %v655 = vld [vmem:[%s1 + $0x60] sm:$0xf]
        %v656 = vld [vmem:[%s1 + $0x64] sm:$0xf]
        %v657 = vld [vmem:[%s1 + $0x68] sm:$0xf]
        %v658 = vld [vmem:[%s1 + $0x6c] sm:$0xf]
        %v659 = vld [vmem:[%s1 + $0x70] sm:$0xf]
        %v660 = vld [vmem:[%s1 + $0x74] sm:$0xf]
        %v661 = vld [vmem:[%s1 + $0x78] sm:$0xf]
        %v662 = vld [vmem:[%s1 + $0x7c] sm:$0xf]
        %v663 = vld [vmem:[%s2] sm:$0x1]
        %v665 = vperm.slane %v663, 0
        %v669 = vunpack.c.l.b16 %v629
        %v670 = vunpack.c.h.b16 %v629
        %v671 = vunpack.c.l.b16 %v630
        %v672 = vunpack.c.h.b16 %v630
        %v673 = vpack.c.b16 %v671, %v669
        %v674 = vpack.c.b16 %v672, %v670
        %v709 = vunpack.c.l.b16 %v631
        %v710 = vunpack.c.l.b16 %v632
        %v711 = vunpack.c.l.b16 %v633
        %v712 = vunpack.c.l.b16 %v634
        %v713 = vunpack.c.l.b16 %v635
        %v714 = vunpack.c.l.b16 %v636
        %v715 = vunpack.c.l.b16 %v637
        %v716 = vunpack.c.l.b16 %v638
        %v717 = vunpack.c.l.b16 %v639
        %v718 = vunpack.c.l.b16 %v640
        %v719 = vunpack.c.l.b16 %v641
        %v720 = vunpack.c.l.b16 %v642
        %v721 = vunpack.c.l.b16 %v643
        %v722 = vunpack.c.l.b16 %v644
        %v723 = vunpack.c.l.b16 %v645
        %v724 = vunpack.c.l.b16 %v646
        %v725 = vunpack.c.l.b16 %v647
        %v726 = vunpack.c.l.b16 %v648
        %v727 = vunpack.c.l.b16 %v649
        %v728 = vunpack.c.l.b16 %v650
        %v729 = vunpack.c.l.b16 %v651
        %v730 = vunpack.c.l.b16 %v652
        %v731 = vunpack.c.l.b16 %v653
        %v732 = vunpack.c.l.b16 %v654
        %v733 = vunpack.c.l.b16 %v655
        %v734 = vunpack.c.l.b16 %v656
        %v735 = vunpack.c.l.b16 %v657
        %v736 = vunpack.c.l.b16 %v658
        %v737 = vunpack.c.l.b16 %v659
        %v738 = vunpack.c.l.b16 %v660
        %v739 = vunpack.c.l.b16 %v661
        %v740 = vunpack.c.l.b16 %v662
        %v741 = vpack.c.b16 %v710, %v709
        %v742 = vpack.c.b16 %v712, %v711
        %v743 = vpack.c.b16 %v714, %v713
        %v744 = vpack.c.b16 %v716, %v715
        %v745 = vpack.c.b16 %v718, %v717
        %v746 = vpack.c.b16 %v720, %v719
        %v747 = vpack.c.b16 %v722, %v721
        %v748 = vpack.c.b16 %v724, %v723
        %v749 = vpack.c.b16 %v726, %v725
        %v750 = vpack.c.b16 %v728, %v727
        %v751 = vpack.c.b16 %v730, %v729
        %v752 = vpack.c.b16 %v732, %v731
        %v753 = vpack.c.b16 %v734, %v733
        %v754 = vpack.c.b16 %v736, %v735
        %v755 = vpack.c.b16 %v738, %v737
        %v756 = vpack.c.b16 %v740, %v739
        %773 = vmatpush.bf16.msra.mxu0 %v748
        %774 = vmatpush.bf16.msra.mxu0 %v747
        %775 = vmatpush.bf16.msra.mxu0 %v746
        %776 = vmatpush.bf16.msra.mxu0 %v745
        %777 = vmatpush.bf16.msra.mxu0 %v744
        %778 = vmatpush.bf16.msra.mxu0 %v743
        %779 = vmatpush.bf16.msra.mxu0 %v742
        %780 = vmatpush.bf16.msra.mxu0 %v741
        %781 = vmatmul.bf16.gmra.mxu0 %v673
        %v782 = vpop.f32.mrf.mxu0
        %v783 = vadd.f32 %v665, %v782
        %v784 = vpop.f32.mrf.mxu0
        %v785 = vadd.f32 %v665, %v784
        %786 = vdwg.mxu0
        %787 = vmatpush.bf16.msra.mxu0 %v756
        %788 = vmatpush.bf16.msra.mxu0 %v755
        %789 = vmatpush.bf16.msra.mxu0 %v754
        %790 = vmatpush.bf16.msra.mxu0 %v753
        %791 = vmatpush.bf16.msra.mxu0 %v752
        %792 = vmatpush.bf16.msra.mxu0 %v751
        %793 = vmatpush.bf16.msra.mxu0 %v750
        %794 = vmatpush.bf16.msra.mxu0 %v749
        %795 = vmatmul.bf16.gmra.mxu0 %v674
        %v796 = vpop.f32.mrf.mxu0
        %v797 = vadd.f32 %v783, %v796
        %v798 = vpop.f32.mrf.mxu0
        %v799 = vadd.f32 %v785, %v798
        %800 = vdwg.mxu0
        %v801 = vlaneseq
        %v802 = vshrl.u32 %v801, 7
        %v803 = vadd.s32 %v802, 8
        %vm804 = vcmp.ge.s32.totalorder %v802, 1
        %vm805 = vcmp.ge.s32.totalorder %v803, 1
        %vm806 = vcmp.lt.s32.totalorder %v802, 9
        %vm807 = vcmp.lt.s32.totalorder %v803, 9
        %vm808 = vmand %vm804, %vm806
        %vm809 = vmand %vm805, %vm807
        %v810 = vsel %vm808, 1, 0
        %v811 = vsel %vm809, 1, 0
        %v812 = vcvt.s32.f32 %v810
        %v813 = vcvt.s32.f32 %v811
        %v814 = vmul.f32 %v797, %v812
        %v815 = vmul.f32 %v799, %v813
        %v816 = vld [vmem:[#allocation2] sm:$0xff]
        %v817 = vld [vmem:[#allocation2 + $0x8] sm:$0xff]
        %v818 = vadd.f32 %v814, %v816
        %v819 = vadd.f32 %v815, %v817
        %v820 = vlaneseq
        %v821 = vand.u32 %v820, 127
        %vm822 = vcmp.lt.s32.totalorder %v821, 9
        %v823 = vsel %vm822, 0.0, -1e+30
        %v824 = vld [vmem:[#allocation4] sm:$0x1]
        %v825 = vld [vmem:[#allocation6] sm:$0x1]
        %826 = vadd.xlane.f32.xlu0 %v818
        %v827 = vpop.xlane.xlu0 %826
        %828 = vadd.xlane.f32.xlu0 %v819
        %v829 = vpop.xlane.xlu0 %828
        %v830 = vrcp.pop 128.0
        %v831 = vmul.f32 128.0, %v830
        %v832 = vsub.f32 1.0, %v831
        %v833 = vmul.f32 %v830, %v832
        %v834 = vadd.f32 %v830, %v833
        %vm835 = vweird.f32 %v830
        %v836 = vsel %vm835, %v830, %v834
        %v837 = vmul.f32 %v827, %v836
        %v838 = vmul.f32 %v829, %v836
        %v839 = vsub.f32 %v818, %v837
        %v840 = vsub.f32 %v819, %v838
        %v841 = vmul.f32 %v839, %v839
        %v842 = vmul.f32 %v840, %v840
        %843 = vadd.xlane.f32.xlu0 %v841
        %v844 = vpop.xlane.xlu0 %843
        %845 = vadd.xlane.f32.xlu0 %v842
        %v846 = vpop.xlane.xlu0 %845
        %v847 = vmul.f32 %v844, %v836
        %v848 = vmul.f32 %v846, %v836
        %v849 = vadd.f32 %v847, 1e-06
        %v850 = vadd.f32 %v848, 1e-06
        %v851 = vrsqrt.pop %v849
        %v852 = vmul.f32 %v851, %v849
        %v853 = vmul.f32 %v852, %v851
        %v854 = vmul.f32 0.5, %v853
        %v855 = vsub.f32 1.5, %v854
        %v856 = vmul.f32 %v851, %v855
        %vm857 = vweird.f32 %v849
        %vm858 = vweird.f32 %v851
        %vm859 = vmor %vm857, %vm858
        %v860 = vsel %vm859, %v851, %v856
        %v861 = vrsqrt.pop %v850
        %v862 = vmul.f32 %v861, %v850
        %v863 = vmul.f32 %v862, %v861
        %v864 = vmul.f32 0.5, %v863
        %v865 = vsub.f32 1.5, %v864
        %v866 = vmul.f32 %v861, %v865
        %vm867 = vweird.f32 %v850
        %vm868 = vweird.f32 %v861
        %vm869 = vmor %vm867, %vm868
        %v870 = vsel %vm869, %v861, %v866
        %v871 = vmul.f32 %v839, %v860
        %v872 = vmul.f32 %v840, %v870
        %v874 = vperm.slane %v824, 0
        %v876 = vmul.f32 %v871, %v874
        %v877 = vmul.f32 %v872, %v874
        %v879 = vperm.slane %v825, 0
        %v881 = vadd.f32 %v876, %v879
        %v882 = vadd.f32 %v877, %v879
        %v883 = vpack.c.bf16 %v882, %v881
        %v884 = vld [vmem:[%s6] sm:$0xff]
        %v885 = vld [vmem:[%s6 + $0x8] sm:$0xf]
        %v886 = vld [vmem:[%s6 + $0xc] sm:$0xff]
        %v887 = vld [vmem:[%s6 + $0x14] sm:$0xf]
        %v888 = vld [vmem:[%s6 + $0x18] sm:$0xff]
        %v889 = vld [vmem:[%s6 + $0x20] sm:$0xf]
        %v890 = vld [vmem:[%s6 + $0x24] sm:$0xff]
        %v891 = vld [vmem:[%s6 + $0x2c] sm:$0xf]
        %v892 = vld [vmem:[%s6 + $0x30] sm:$0xff]
        %v893 = vld [vmem:[%s6 + $0x38] sm:$0xf]
        %v894 = vld [vmem:[%s6 + $0x3c] sm:$0xff]
        %v895 = vld [vmem:[%s6 + $0x44] sm:$0xf]
        %v896 = vld [vmem:[%s6 + $0x48] sm:$0xff]
        %v897 = vld [vmem:[%s6 + $0x50] sm:$0xf]
        %v898 = vld [vmem:[%s6 + $0x54] sm:$0xff]
        %v899 = vld [vmem:[%s6 + $0x5c] sm:$0xf]
        %v900 = vld [vmem:[%s6 + $0x60] sm:$0xff]
        %v901 = vld [vmem:[%s6 + $0x68] sm:$0xf]
        %v902 = vld [vmem:[%s6 + $0x6c] sm:$0xff]
        %v903 = vld [vmem:[%s6 + $0x74] sm:$0xf]
        %v904 = vld [vmem:[%s6 + $0x78] sm:$0xff]
        %v905 = vld [vmem:[%s6 + $0x80] sm:$0xf]
        %v906 = vld [vmem:[%s6 + $0x84] sm:$0xff]
        %v907 = vld [vmem:[%s6 + $0x8c] sm:$0xf]
        %v908 = vld [vmem:[%s6 + $0x90] sm:$0xff]
        %v909 = vld [vmem:[%s6 + $0x98] sm:$0xf]
        %v910 = vld [vmem:[%s6 + $0x9c] sm:$0xff]
        %v911 = vld [vmem:[%s6 + $0xa4] sm:$0xf]
        %v912 = vld [vmem:[%s6 + $0xa8] sm:$0xff]
        %v913 = vld [vmem:[%s6 + $0xb0] sm:$0xf]
        %v914 = vld [vmem:[%s6 + $0xb4] sm:$0xff]
        %v915 = vld [vmem:[%s6 + $0xbc] sm:$0xf]
        %v948 = vunpack.c.l.b16 %v884
        %v949 = vunpack.c.h.b16 %v884
        %v950 = vunpack.c.l.b16 %v885
        %v951 = vunpack.c.l.b16 %v886
        %v952 = vunpack.c.h.b16 %v886
        %v953 = vunpack.c.l.b16 %v887
        %v954 = vunpack.c.l.b16 %v888
        %v955 = vunpack.c.h.b16 %v888
        %v956 = vunpack.c.l.b16 %v889
        %v957 = vunpack.c.l.b16 %v890
        %v958 = vunpack.c.h.b16 %v890
        %v959 = vunpack.c.l.b16 %v891
        %v960 = vunpack.c.l.b16 %v892
        %v961 = vunpack.c.h.b16 %v892
        %v962 = vunpack.c.l.b16 %v893
        %v963 = vunpack.c.l.b16 %v894
        %v964 = vunpack.c.h.b16 %v894
        %v965 = vunpack.c.l.b16 %v895
        %v966 = vunpack.c.l.b16 %v896
        %v967 = vunpack.c.h.b16 %v896
        %v968 = vunpack.c.l.b16 %v897
        %v969 = vunpack.c.l.b16 %v898
        %v970 = vunpack.c.h.b16 %v898
        %v971 = vunpack.c.l.b16 %v899
        %v972 = vunpack.c.l.b16 %v900
        %v973 = vunpack.c.h.b16 %v900
        %v974 = vunpack.c.l.b16 %v901
        %v975 = vunpack.c.l.b16 %v902
        %v976 = vunpack.c.h.b16 %v902
        %v977 = vunpack.c.l.b16 %v903
        %v978 = vunpack.c.l.b16 %v904
        %v979 = vunpack.c.h.b16 %v904
        %v980 = vunpack.c.l.b16 %v905
        %v981 = vunpack.c.l.b16 %v906
        %v982 = vunpack.c.h.b16 %v906
        %v983 = vunpack.c.l.b16 %v907
        %v984 = vunpack.c.l.b16 %v908
        %v985 = vunpack.c.h.b16 %v908
        %v986 = vunpack.c.l.b16 %v909
        %v987 = vunpack.c.l.b16 %v910
        %v988 = vunpack.c.h.b16 %v910
        %v989 = vunpack.c.l.b16 %v911
        %v990 = vunpack.c.l.b16 %v912
        %v991 = vunpack.c.h.b16 %v912
        %v992 = vunpack.c.l.b16 %v913
        %v993 = vunpack.c.l.b16 %v914
        %v994 = vunpack.c.h.b16 %v914
        %v995 = vunpack.c.l.b16 %v915
        %v996 = vpack.c.b16 %v951, %v948
        %v997 = vpack.c.b16 %v952, %v949
        %v998 = vpack.c.b16 %v953, %v950
        %v999 = vpack.c.b16 %v957, %v954
        %v1000 = vpack.c.b16 %v958, %v955
        %v1001 = vpack.c.b16 %v959, %v956
        %v1002 = vpack.c.b16 %v963, %v960
        %v1003 = vpack.c.b16 %v964, %v961
        %v1004 = vpack.c.b16 %v965, %v962
        %v1005 = vpack.c.b16 %v969, %v966
        %v1006 = vpack.c.b16 %v970, %v967
        %v1007 = vpack.c.b16 %v971, %v968
        %v1008 = vpack.c.b16 %v975, %v972
        %v1009 = vpack.c.b16 %v976, %v973
        %v1010 = vpack.c.b16 %v977, %v974
        %v1011 = vpack.c.b16 %v981, %v978
        %v1012 = vpack.c.b16 %v982, %v979
        %v1013 = vpack.c.b16 %v983, %v980
        %v1014 = vpack.c.b16 %v987, %v984
        %v1015 = vpack.c.b16 %v988, %v985
        %v1016 = vpack.c.b16 %v989, %v986
        %v1017 = vpack.c.b16 %v993, %v990
        %v1018 = vpack.c.b16 %v994, %v991
        %v1019 = vpack.c.b16 %v995, %v992
        %1044 = vmatpush.bf16.msra.mxu0 %v1017
        %1045 = vmatpush.bf16.msra.mxu0 %v1014
        %1046 = vmatpush.bf16.msra.mxu0 %v1011
        %1047 = vmatpush.bf16.msra.mxu0 %v1008
        %1048 = vmatpush.bf16.msra.mxu0 %v1005
        %1049 = vmatpush.bf16.msra.mxu0 %v1002
        %1050 = vmatpush.bf16.msra.mxu0 %v999
        %1051 = vmatpush.bf16.msra.mxu0 %v996
        %1052 = vmatmul.bf16.gmra.mxu0 %v883
        %v1053 = vpop.f32.mrf.mxu0
        %v1054 = vadd.f32 0.0, %v1053
        %v1055 = vpop.f32.mrf.mxu0
        %v1056 = vadd.f32 0.0, %v1055
        %1057 = vdwg.mxu0
        %1058 = vmatpush.bf16.msra.mxu0 %v1018
        %1059 = vmatpush.bf16.msra.mxu0 %v1015
        %1060 = vmatpush.bf16.msra.mxu0 %v1012
        %1061 = vmatpush.bf16.msra.mxu0 %v1009
        %1062 = vmatpush.bf16.msra.mxu0 %v1006
        %1063 = vmatpush.bf16.msra.mxu0 %v1003
        %1064 = vmatpush.bf16.msra.mxu0 %v1000
        %1065 = vmatpush.bf16.msra.mxu0 %v997
        %1066 = vmatmul.bf16.gmra.mxu0 %v883
        %v1067 = vpop.f32.mrf.mxu0
        %v1068 = vadd.f32 0.0, %v1067
        %v1069 = vpop.f32.mrf.mxu0
        %v1070 = vadd.f32 0.0, %v1069
        %1071 = vdwg.mxu0
        %1072 = vmatpush.bf16.msra.mxu0 %v1019
        %1073 = vmatpush.bf16.msra.mxu0 %v1016
        %1074 = vmatpush.bf16.msra.mxu0 %v1013
        %1075 = vmatpush.bf16.msra.mxu0 %v1010
        %1076 = vmatpush.bf16.msra.mxu0 %v1007
        %1077 = vmatpush.bf16.msra.mxu0 %v1004
        %1078 = vmatpush.bf16.msra.mxu0 %v1001
        %1079 = vmatpush.bf16.msra.mxu0 %v998
        %1080 = vmatmul.bf16.gmra.mxu0 %v883
        %v1081 = vpop.f32.mrf.mxu0
        %v1082 = vadd.f32 0.0, %v1081
        %v1083 = vpop.f32.mrf.mxu0
        %v1084 = vadd.f32 0.0, %v1083
        %1085 = vdwg.mxu0
        %v1086 = vpack.c.bf16 %v1068, %v1054
        %v1087 = vpack.c.bf16 %v1082, %v1082
        %v1088 = vpack.c.bf16 %v1070, %v1056
        %v1089 = vpack.c.bf16 %v1084, %v1084
        %v1090 = vld [vmem:[%s7] sm:$0xf]
        %v1091 = vld [vmem:[%s7 + $0x4] sm:$0xf]
        %v1092 = vld [vmem:[%s7 + $0x8] sm:$0xf]
        %v1093 = vld [vmem:[%s7 + $0xc] sm:$0xf]
        %v1094 = vld [vmem:[%s7 + $0x10] sm:$0xf]
        %v1095 = vld [vmem:[%s7 + $0x14] sm:$0xf]
        %v1096 = vld [vmem:[%s7 + $0x18] sm:$0xf]
        %v1097 = vld [vmem:[%s7 + $0x1c] sm:$0xf]
        %v1098 = vld [vmem:[%s7 + $0x20] sm:$0xf]
        %v1099 = vld [vmem:[%s7 + $0x24] sm:$0xf]
        %v1100 = vld [vmem:[%s7 + $0x28] sm:$0xf]
        %v1101 = vld [vmem:[%s7 + $0x2c] sm:$0xf]
        %v1102 = vld [vmem:[%s7 + $0x30] sm:$0xf]
        %v1103 = vld [vmem:[%s7 + $0x34] sm:$0xf]
        %v1104 = vld [vmem:[%s7 + $0x38] sm:$0xf]
        %v1105 = vld [vmem:[%s7 + $0x3c] sm:$0xf]
        %v1108 = vunpack.c.l.b16 %v1086
        %v1109 = vunpack.c.l.b16 %v1088
        %v1110 = vpack.c.b16 %v1109, %v1108
        %v1111 = vunpack.c.h.b16 %v1086
        %v1112 = vunpack.c.h.b16 %v1088
        %v1113 = vpack.c.b16 %v1112, %v1111
        %vm1114 = vcmask 261120
        %v1116 = vsel %vm1114, %v1110, 0
        %v1119 = vsel %vm1114, %v1113, 0
        %1121 = vmatpush.bf16.xpose.msra.mxu0 0
        %1122 = vmatpush.bf16.xpose.msra.mxu0 0
        %1123 = vmatpush.bf16.xpose.msra.mxu0 0
        %1124 = vmatpush.bf16.xpose.msra.mxu0 0
        %1125 = vmatpush.bf16.xpose.msra.mxu0 0
        %1126 = vmatpush.bf16.xpose.msra.mxu0 0
        %1127 = vmatpush.bf16.xpose.msra.mxu0 0
        %1128 = vmatpush.bf16.xpose.msra.mxu0 %v1119
        %1129 = vmatmul.bf16.gmra.mxu0 %v1116
        %v1130 = vpop.f32.mrf.mxu0
        %v1131 = vadd.f32 0.0, %v1130
        %v1132 = vpop.f32.mrf.mxu0
        %v1133 = vadd.f32 0.0, %v1132
        %1134 = vdwg.mxu0
        %v1135 = vmul.f32 %v1131, 0.088388346
        %v1136 = vmul.f32 %v1133, 0.088388346
        %v1137 = vadd.f32 %v1135, %v823
        %v1138 = vadd.f32 %v1136, %v823
        %vm1139 = vcmask 130048
        %v1140 = vsel %vm1139, %v1137, -inf
        %1141 = vmax.xlane.f32.xlu0 %v1140
        %v1142 = vpop.xlane.xlu0 %1141
        %v1143 = vsel %vm1139, %v1138, -inf
        %1144 = vmax.xlane.f32.xlu0 %v1143
        %v1145 = vpop.xlane.xlu0 %1144
        %v1146 = vsub.f32 %v1137, %v1142
        %v1147 = vsub.f32 %v1138, %v1145
        %v1148 = vmul.f32 %v1146, 1.442695
        %v1149 = vpow.pop %v1148
        %v1150 = vmul.f32 %v1147, 1.442695
        %v1151 = vpow.pop %v1150
        %v1152 = vsel %vm1139, %v1149, 0.0
        %1153 = vadd.xlane.f32.xlu0 %v1152
        %v1154 = vpop.xlane.xlu0 %1153
        %v1155 = vsel %vm1139, %v1151, 0.0
        %1156 = vadd.xlane.f32.xlu0 %v1155
        %v1157 = vpop.xlane.xlu0 %1156
        %v1158 = vrcp.pop %v1154
        %v1159 = vrcp.pop %v1157
        %v1160 = vmul.f32 %v1149, %v1158
        %v1161 = vmul.f32 %v1151, %v1159
        %v1162 = vpack.c.bf16 %v1161, %v1160
        %v1165 = vunpack.c.l.b16 %v1087
        %v1166 = vunpack.c.l.b16 %v1089
        %v1167 = vpack.c.b16 %v1166, %v1165
        %v1170 = vsel %vm1139, %v1162, 0
        %1172 = vmatpush.bf16.msra.mxu0 0
        %1173 = vmatpush.bf16.msra.mxu0 0
        %1174 = vmatpush.bf16.msra.mxu0 0
        %1175 = vmatpush.bf16.msra.mxu0 0
        %1176 = vmatpush.bf16.msra.mxu0 0
        %1177 = vmatpush.bf16.msra.mxu0 0
        %1178 = vmatpush.bf16.msra.mxu0 0
        %1179 = vmatpush.bf16.msra.mxu0 %v1167
        %1180 = vmatmul.bf16.gmra.mxu0 %v1170
        %v1181 = vpop.f32.mrf.mxu0
        %v1182 = vadd.f32 0.0, %v1181
        %v1183 = vpop.f32.mrf.mxu0
        %v1184 = vadd.f32 0.0, %v1183
        %1185 = vdwg.mxu0
        %v1186 = vpack.c.bf16 %v1184, %v1182
        %1187 = vrot.lane.b32.xlu0 %v1110, 96
        %v1188 = vpop.permute.xlu0 %1187
        %1189 = vrot.lane.b32.xlu0 %v1113, 96
        %v1190 = vpop.permute.xlu0 %1189
        %v1192 = vsel %vm1114, %v1188, 0
        %v1195 = vsel %vm1114, %v1190, 0
        %1197 = vmatpush.bf16.xpose.msra.mxu0 0
        %1198 = vmatpush.bf16.xpose.msra.mxu0 0
        %1199 = vmatpush.bf16.xpose.msra.mxu0 0
        %1200 = vmatpush.bf16.xpose.msra.mxu0 0
        %1201 = vmatpush.bf16.xpose.msra.mxu0 0
        %1202 = vmatpush.bf16.xpose.msra.mxu0 0
        %1203 = vmatpush.bf16.xpose.msra.mxu0 0
        %1204 = vmatpush.bf16.xpose.msra.mxu0 %v1195
        %1205 = vmatmul.bf16.gmra.mxu0 %v1192
        %v1206 = vpop.f32.mrf.mxu0
        %v1207 = vadd.f32 0.0, %v1206
        %v1208 = vpop.f32.mrf.mxu0
        %v1209 = vadd.f32 0.0, %v1208
        %1210 = vdwg.mxu0
        %v1211 = vmul.f32 %v1207, 0.088388346
        %v1212 = vmul.f32 %v1209, 0.088388346
        %v1213 = vadd.f32 %v1211, %v823
        %v1214 = vadd.f32 %v1212, %v823
        %v1215 = vsel %vm1139, %v1213, -inf
        %1216 = vmax.xlane.f32.xlu0 %v1215
        %v1217 = vpop.xlane.xlu0 %1216
        %v1218 = vsel %vm1139, %v1214, -inf
        %1219 = vmax.xlane.f32.xlu0 %v1218
        %v1220 = vpop.xlane.xlu0 %1219
        %v1221 = vsub.f32 %v1213, %v1217
        %v1222 = vsub.f32 %v1214, %v1220
        %v1223 = vmul.f32 %v1221, 1.442695
        %v1224 = vpow.pop %v1223
        %v1225 = vmul.f32 %v1222, 1.442695
        %v1226 = vpow.pop %v1225
        %v1227 = vsel %vm1139, %v1224, 0.0
        %1228 = vadd.xlane.f32.xlu0 %v1227
        %v1229 = vpop.xlane.xlu0 %1228
        %v1230 = vsel %vm1139, %v1226, 0.0
        %1231 = vadd.xlane.f32.xlu0 %v1230
        %v1232 = vpop.xlane.xlu0 %1231
        %v1233 = vrcp.pop %v1229
        %v1234 = vrcp.pop %v1232
        %v1235 = vmul.f32 %v1224, %v1233
        %v1236 = vmul.f32 %v1226, %v1234
        %v1237 = vpack.c.bf16 %v1236, %v1235
        %1238 = vrot.lane.b32.xlu0 %v1167, 96
        %v1239 = vpop.permute.xlu0 %1238
        %v1242 = vsel %vm1139, %v1237, 0
        %1244 = vmatpush.bf16.msra.mxu0 0
        %1245 = vmatpush.bf16.msra.mxu0 0
        %1246 = vmatpush.bf16.msra.mxu0 0
        %1247 = vmatpush.bf16.msra.mxu0 0
        %1248 = vmatpush.bf16.msra.mxu0 0
        %1249 = vmatpush.bf16.msra.mxu0 0
        %1250 = vmatpush.bf16.msra.mxu0 0
        %1251 = vmatpush.bf16.msra.mxu0 %v1239
        %1252 = vmatmul.bf16.gmra.mxu0 %v1242
        %v1253 = vpop.f32.mrf.mxu0
        %v1254 = vadd.f32 0.0, %v1253
        %v1255 = vpop.f32.mrf.mxu0
        %v1256 = vadd.f32 0.0, %v1255
        %1257 = vdwg.mxu0
        %v1258 = vpack.c.bf16 %v1256, %v1254
        %v1263 = vunpack.c.l.b16 %v1094
        %v1264 = vunpack.c.l.b16 %v1095
        %v1265 = vunpack.c.l.b16 %v1096
        %v1266 = vunpack.c.l.b16 %v1097
        %v1267 = vpack.c.b16 %v1264, %v1263
        %v1268 = vpack.c.b16 %v1266, %v1265
        %v1272 = vsel %vm1114, %v1258, 0
        %1274 = vmatpush.bf16.msra.mxu0 0
        %1275 = vmatpush.bf16.msra.mxu0 0
        %1276 = vmatpush.bf16.msra.mxu0 0
        %1277 = vmatpush.bf16.msra.mxu0 0
        %1278 = vmatpush.bf16.msra.mxu0 0
        %1279 = vmatpush.bf16.msra.mxu0 0
        %1280 = vmatpush.bf16.msra.mxu0 %v1268
        %1281 = vmatpush.bf16.msra.mxu0 %v1267
        %1282 = vmatmul.bf16.gmra.mxu0 %v1272
        %v1283 = vpop.f32.mrf.mxu0
        %v1284 = vadd.f32 0.0, %v1283
        %v1285 = vpop.f32.mrf.mxu0
        %v1286 = vadd.f32 0.0, %v1285
        %1287 = vdwg.mxu0
        %v1292 = vunpack.c.l.b16 %v1090
        %v1293 = vunpack.c.l.b16 %v1091
        %v1294 = vunpack.c.l.b16 %v1092
        %v1295 = vunpack.c.l.b16 %v1093
        %v1296 = vpack.c.b16 %v1293, %v1292
        %v1297 = vpack.c.b16 %v1295, %v1294
        %v1301 = vsel %vm1114, %v1186, 0
        %1303 = vmatpush.bf16.msra.mxu0 0
        %1304 = vmatpush.bf16.msra.mxu0 0
        %1305 = vmatpush.bf16.msra.mxu0 0
        %1306 = vmatpush.bf16.msra.mxu0 0
        %1307 = vmatpush.bf16.msra.mxu0 0
        %1308 = vmatpush.bf16.msra.mxu0 0
        %1309 = vmatpush.bf16.msra.mxu0 %v1297
        %1310 = vmatpush.bf16.msra.mxu0 %v1296
        %1311 = vmatmul.bf16.gmra.mxu0 %v1301
        %v1312 = vpop.f32.mrf.mxu0
        %v1313 = vadd.f32 %v1284, %v1312
        %v1314 = vpop.f32.mrf.mxu0
        %v1315 = vadd.f32 %v1286, %v1314
        %1316 = vdwg.mxu0
        %1317 = vrot.lane.b32.xlu0 %v1110, 64
        %v1318 = vpop.permute.xlu0 %1317
        %1319 = vrot.lane.b32.xlu0 %v1113, 64
        %v1320 = vpop.permute.xlu0 %1319
        %v1322 = vsel %vm1114, %v1318, 0
        %v1325 = vsel %vm1114, %v1320, 0
        %1327 = vmatpush.bf16.xpose.msra.mxu0 0
        %1328 = vmatpush.bf16.xpose.msra.mxu0 0
        %1329 = vmatpush.bf16.xpose.msra.mxu0 0
        %1330 = vmatpush.bf16.xpose.msra.mxu0 0
        %1331 = vmatpush.bf16.xpose.msra.mxu0 0
        %1332 = vmatpush.bf16.xpose.msra.mxu0 0
        %1333 = vmatpush.bf16.xpose.msra.mxu0 0
        %1334 = vmatpush.bf16.xpose.msra.mxu0 %v1325
        %1335 = vmatmul.bf16.gmra.mxu0 %v1322
        %v1336 = vpop.f32.mrf.mxu0
        %v1337 = vadd.f32 0.0, %v1336
        %v1338 = vpop.f32.mrf.mxu0
        %v1339 = vadd.f32 0.0, %v1338
        %1340 = vdwg.mxu0
        %v1341 = vmul.f32 %v1337, 0.088388346
        %v1342 = vmul.f32 %v1339, 0.088388346
        %v1343 = vadd.f32 %v1341, %v823
        %v1344 = vadd.f32 %v1342, %v823
        %v1345 = vsel %vm1139, %v1343, -inf
        %1346 = vmax.xlane.f32.xlu0 %v1345
        %v1347 = vpop.xlane.xlu0 %1346
        %v1348 = vsel %vm1139, %v1344, -inf
        %1349 = vmax.xlane.f32.xlu0 %v1348
        %v1350 = vpop.xlane.xlu0 %1349
        %v1351 = vsub.f32 %v1343, %v1347
        %v1352 = vsub.f32 %v1344, %v1350
        %v1353 = vmul.f32 %v1351, 1.442695
        %v1354 = vpow.pop %v1353
        %v1355 = vmul.f32 %v1352, 1.442695
        %v1356 = vpow.pop %v1355
        %v1357 = vsel %vm1139, %v1354, 0.0
        %1358 = vadd.xlane.f32.xlu0 %v1357
        %v1359 = vpop.xlane.xlu0 %1358
        %v1360 = vsel %vm1139, %v1356, 0.0
        %1361 = vadd.xlane.f32.xlu0 %v1360
        %v1362 = vpop.xlane.xlu0 %1361
        %v1363 = vrcp.pop %v1359
        %v1364 = vrcp.pop %v1362
        %v1365 = vmul.f32 %v1354, %v1363
        %v1366 = vmul.f32 %v1356, %v1364
        %v1367 = vpack.c.bf16 %v1366, %v1365
        %1368 = vrot.lane.b32.xlu0 %v1167, 64
        %v1369 = vpop.permute.xlu0 %1368
        %v1372 = vsel %vm1139, %v1367, 0
        %1374 = vmatpush.bf16.msra.mxu0 0
        %1375 = vmatpush.bf16.msra.mxu0 0
        %1376 = vmatpush.bf16.msra.mxu0 0
        %1377 = vmatpush.bf16.msra.mxu0 0
        %1378 = vmatpush.bf16.msra.mxu0 0
        %1379 = vmatpush.bf16.msra.mxu0 0
        %1380 = vmatpush.bf16.msra.mxu0 0
        %1381 = vmatpush.bf16.msra.mxu0 %v1369
        %1382 = vmatmul.bf16.gmra.mxu0 %v1372
        %v1383 = vpop.f32.mrf.mxu0
        %v1384 = vadd.f32 0.0, %v1383
        %v1385 = vpop.f32.mrf.mxu0
        %v1386 = vadd.f32 0.0, %v1385
        %1387 = vdwg.mxu0
        %v1388 = vpack.c.bf16 %v1386, %v1384
        %v1393 = vunpack.c.l.b16 %v1098
        %v1394 = vunpack.c.l.b16 %v1099
        %v1395 = vunpack.c.l.b16 %v1100
        %v1396 = vunpack.c.l.b16 %v1101
        %v1397 = vpack.c.b16 %v1394, %v1393
        %v1398 = vpack.c.b16 %v1396, %v1395
        %v1402 = vsel %vm1114, %v1388, 0
        %1404 = vmatpush.bf16.msra.mxu0 0
        %1405 = vmatpush.bf16.msra.mxu0 0
        %1406 = vmatpush.bf16.msra.mxu0 0
        %1407 = vmatpush.bf16.msra.mxu0 0
        %1408 = vmatpush.bf16.msra.mxu0 0
        %1409 = vmatpush.bf16.msra.mxu0 0
        %1410 = vmatpush.bf16.msra.mxu0 %v1398
        %1411 = vmatpush.bf16.msra.mxu0 %v1397
        %1412 = vmatmul.bf16.gmra.mxu0 %v1402
        %v1413 = vpop.f32.mrf.mxu0
        %v1414 = vadd.f32 0.0, %v1413
        %v1415 = vpop.f32.mrf.mxu0
        %v1416 = vadd.f32 0.0, %v1415
        %1417 = vdwg.mxu0
        %v1418 = vadd.f32 %v1313, %v1414
        %v1419 = vadd.f32 %v1315, %v1416
        %1420 = vrot.lane.b32.xlu0 %v1110, 32
        %v1421 = vpop.permute.xlu0 %1420
        %1422 = vrot.lane.b32.xlu0 %v1113, 32
        %v1423 = vpop.permute.xlu0 %1422
        %v1425 = vsel %vm1114, %v1421, 0
        %v1428 = vsel %vm1114, %v1423, 0
        %1430 = vmatpush.bf16.xpose.msra.mxu0 0
        %1431 = vmatpush.bf16.xpose.msra.mxu0 0
        %1432 = vmatpush.bf16.xpose.msra.mxu0 0
        %1433 = vmatpush.bf16.xpose.msra.mxu0 0
        %1434 = vmatpush.bf16.xpose.msra.mxu0 0
        %1435 = vmatpush.bf16.xpose.msra.mxu0 0
        %1436 = vmatpush.bf16.xpose.msra.mxu0 0
        %1437 = vmatpush.bf16.xpose.msra.mxu0 %v1428
        %1438 = vmatmul.bf16.gmra.mxu0 %v1425
        %v1439 = vpop.f32.mrf.mxu0
        %v1440 = vadd.f32 0.0, %v1439
        %v1441 = vpop.f32.mrf.mxu0
        %v1442 = vadd.f32 0.0, %v1441
        %1443 = vdwg.mxu0
        %v1444 = vmul.f32 %v1440, 0.088388346
        %v1445 = vmul.f32 %v1442, 0.088388346
        %v1446 = vadd.f32 %v1444, %v823
        %v1447 = vadd.f32 %v1445, %v823
        %v1448 = vsel %vm1139, %v1446, -inf
        %1449 = vmax.xlane.f32.xlu0 %v1448
        %v1450 = vpop.xlane.xlu0 %1449
        %v1451 = vsel %vm1139, %v1447, -inf
        %1452 = vmax.xlane.f32.xlu0 %v1451
        %v1453 = vpop.xlane.xlu0 %1452
        %v1454 = vsub.f32 %v1446, %v1450
        %v1455 = vsub.f32 %v1447, %v1453
        %v1456 = vmul.f32 %v1454, 1.442695
        %v1457 = vpow.pop %v1456
        %v1458 = vmul.f32 %v1455, 1.442695
        %v1459 = vpow.pop %v1458
        %v1460 = vsel %vm1139, %v1457, 0.0
        %1461 = vadd.xlane.f32.xlu0 %v1460
        %v1462 = vpop.xlane.xlu0 %1461
        %v1463 = vsel %vm1139, %v1459, 0.0
        %1464 = vadd.xlane.f32.xlu0 %v1463
        %v1465 = vpop.xlane.xlu0 %1464
        %v1466 = vrcp.pop %v1462
        %v1467 = vrcp.pop %v1465
        %v1468 = vmul.f32 %v1457, %v1466
        %v1469 = vmul.f32 %v1459, %v1467
        %v1470 = vpack.c.bf16 %v1469, %v1468
        %1471 = vrot.lane.b32.xlu0 %v1167, 32
        %v1472 = vpop.permute.xlu0 %1471
        %v1475 = vsel %vm1139, %v1470, 0
        %1477 = vmatpush.bf16.msra.mxu0 0
        %1478 = vmatpush.bf16.msra.mxu0 0
        %1479 = vmatpush.bf16.msra.mxu0 0
        %1480 = vmatpush.bf16.msra.mxu0 0
        %1481 = vmatpush.bf16.msra.mxu0 0
        %1482 = vmatpush.bf16.msra.mxu0 0
        %1483 = vmatpush.bf16.msra.mxu0 0
        %1484 = vmatpush.bf16.msra.mxu0 %v1472
        %1485 = vmatmul.bf16.gmra.mxu0 %v1475
        %v1486 = vpop.f32.mrf.mxu0
        %v1487 = vadd.f32 0.0, %v1486
        %v1488 = vpop.f32.mrf.mxu0
        %v1489 = vadd.f32 0.0, %v1488
        %1490 = vdwg.mxu0
        %v1491 = vpack.c.bf16 %v1489, %v1487
        %v1496 = vunpack.c.l.b16 %v1102
        %v1497 = vunpack.c.l.b16 %v1103
        %v1498 = vunpack.c.l.b16 %v1104
        %v1499 = vunpack.c.l.b16 %v1105
        %v1500 = vpack.c.b16 %v1497, %v1496
        %v1501 = vpack.c.b16 %v1499, %v1498
        %v1505 = vsel %vm1114, %v1491, 0
        %1507 = vmatpush.bf16.msra.mxu0 0
        %1508 = vmatpush.bf16.msra.mxu0 0
        %1509 = vmatpush.bf16.msra.mxu0 0
        %1510 = vmatpush.bf16.msra.mxu0 0
        %1511 = vmatpush.bf16.msra.mxu0 0
        %1512 = vmatpush.bf16.msra.mxu0 0
        %1513 = vmatpush.bf16.msra.mxu0 %v1501
        %1514 = vmatpush.bf16.msra.mxu0 %v1500
        %1515 = vmatmul.bf16.gmra.mxu0 %v1505
        %v1516 = vpop.f32.mrf.mxu0
        %v1517 = vadd.f32 0.0, %v1516
        %v1518 = vpop.f32.mrf.mxu0
        %v1519 = vadd.f32 0.0, %v1518
        %1520 = vdwg.mxu0
        %v1521 = vadd.f32 %v1418, %v1517
        %v1522 = vadd.f32 %v1419, %v1519
        %v1523 = vadd.f32 %v818, %v1521
        %v1524 = vadd.f32 %v819, %v1522
        %v1525 = vld [vmem:[%s8] sm:$0x1]
        %v1527 = vperm.slane %v1525, 0
        %v1529 = vadd.f32 %v1523, %v1527
        %v1530 = vadd.f32 %v1524, %v1527
        %v1531 = vld [vmem:[#allocation7] sm:$0x1]
        %v1532 = vld [vmem:[#allocation9] sm:$0x1]
        %1533 = vadd.xlane.f32.xlu0 %v1529
        %v1534 = vpop.xlane.xlu0 %1533
        %1535 = vadd.xlane.f32.xlu0 %v1530
        %v1536 = vpop.xlane.xlu0 %1535
        %v1537 = vmul.f32 %v1534, %v836
        %v1538 = vmul.f32 %v1536, %v836
        %v1539 = vsub.f32 %v1529, %v1537
        %v1540 = vsub.f32 %v1530, %v1538
        %v1541 = vmul.f32 %v1539, %v1539
        %v1542 = vmul.f32 %v1540, %v1540
        %1543 = vadd.xlane.f32.xlu0 %v1541
        %v1544 = vpop.xlane.xlu0 %1543
        %1545 = vadd.xlane.f32.xlu0 %v1542
        %v1546 = vpop.xlane.xlu0 %1545
        %v1547 = vmul.f32 %v1544, %v836
        %v1548 = vmul.f32 %v1546, %v836
        %v1549 = vadd.f32 %v1547, 1e-06
        %v1550 = vadd.f32 %v1548, 1e-06
        %v1551 = vrsqrt.pop %v1549
        %v1552 = vmul.f32 %v1551, %v1549
        %v1553 = vmul.f32 %v1552, %v1551
        %v1554 = vmul.f32 0.5, %v1553
        %v1555 = vsub.f32 1.5, %v1554
        %v1556 = vmul.f32 %v1551, %v1555
        %vm1557 = vweird.f32 %v1549
        %vm1558 = vweird.f32 %v1551
        %vm1559 = vmor %vm1557, %vm1558
        %v1560 = vsel %vm1559, %v1551, %v1556
        %v1561 = vrsqrt.pop %v1550
        %v1562 = vmul.f32 %v1561, %v1550
        %v1563 = vmul.f32 %v1562, %v1561
        %v1564 = vmul.f32 0.5, %v1563
        %v1565 = vsub.f32 1.5, %v1564
        %v1566 = vmul.f32 %v1561, %v1565
        %vm1567 = vweird.f32 %v1550
        %vm1568 = vweird.f32 %v1561
        %vm1569 = vmor %vm1567, %vm1568
        %v1570 = vsel %vm1569, %v1561, %v1566
        %v1571 = vmul.f32 %v1539, %v1560
        %v1572 = vmul.f32 %v1540, %v1570
        %v1574 = vperm.slane %v1531, 0
        %v1576 = vmul.f32 %v1571, %v1574
        %v1577 = vmul.f32 %v1572, %v1574
        %v1579 = vperm.slane %v1532, 0
        %v1581 = vadd.f32 %v1576, %v1579
        %v1582 = vadd.f32 %v1577, %v1579
        %v1583 = vpack.c.bf16 %v1582, %v1581
        %v1584 = vld [vmem:[%s11] sm:$0xff]
        %v1585 = vld [vmem:[%s11 + $0x8] sm:$0xf]
        %v1586 = vld [vmem:[%s11 + $0xc] sm:$0xff]
        %v1587 = vld [vmem:[%s11 + $0x14] sm:$0xf]
        %v1588 = vld [vmem:[%s11 + $0x18] sm:$0xff]
        %v1589 = vld [vmem:[%s11 + $0x20] sm:$0xf]
        %v1590 = vld [vmem:[%s11 + $0x24] sm:$0xff]
        %v1591 = vld [vmem:[%s11 + $0x2c] sm:$0xf]
        %v1592 = vld [vmem:[%s11 + $0x30] sm:$0xff]
        %v1593 = vld [vmem:[%s11 + $0x38] sm:$0xf]
        %v1594 = vld [vmem:[%s11 + $0x3c] sm:$0xff]
        %v1595 = vld [vmem:[%s11 + $0x44] sm:$0xf]
        %v1596 = vld [vmem:[%s11 + $0x48] sm:$0xff]
        %v1597 = vld [vmem:[%s11 + $0x50] sm:$0xf]
        %v1598 = vld [vmem:[%s11 + $0x54] sm:$0xff]
        %v1599 = vld [vmem:[%s11 + $0x5c] sm:$0xf]
        %v1600 = vld [vmem:[%s11 + $0x60] sm:$0xff]
        %v1601 = vld [vmem:[%s11 + $0x68] sm:$0xf]
        %v1602 = vld [vmem:[%s11 + $0x6c] sm:$0xff]
        %v1603 = vld [vmem:[%s11 + $0x74] sm:$0xf]
        %v1604 = vld [vmem:[%s11 + $0x78] sm:$0xff]
        %v1605 = vld [vmem:[%s11 + $0x80] sm:$0xf]
        %v1606 = vld [vmem:[%s11 + $0x84] sm:$0xff]
        %v1607 = vld [vmem:[%s11 + $0x8c] sm:$0xf]
        %v1608 = vld [vmem:[%s11 + $0x90] sm:$0xff]
        %v1609 = vld [vmem:[%s11 + $0x98] sm:$0xf]
        %v1610 = vld [vmem:[%s11 + $0x9c] sm:$0xff]
        %v1611 = vld [vmem:[%s11 + $0xa4] sm:$0xf]
        %v1612 = vld [vmem:[%s11 + $0xa8] sm:$0xff]
        %v1613 = vld [vmem:[%s11 + $0xb0] sm:$0xf]
        %v1614 = vld [vmem:[%s11 + $0xb4] sm:$0xff]
        %v1615 = vld [vmem:[%s11 + $0xbc] sm:$0xf]
        %v1616 = vld [vmem:[#allocation10] sm:$0x7]
        %v1618 = vperm.slane %v1616, 0
        %v1619 = vperm.slane %v1616, 1
        %v1620 = vperm.slane %v1616, 2
        %v1656 = vunpack.c.l.b16 %v1584
        %v1657 = vunpack.c.h.b16 %v1584
        %v1658 = vunpack.c.l.b16 %v1585
        %v1659 = vunpack.c.l.b16 %v1586
        %v1660 = vunpack.c.h.b16 %v1586
        %v1661 = vunpack.c.l.b16 %v1587
        %v1662 = vunpack.c.l.b16 %v1588
        %v1663 = vunpack.c.h.b16 %v1588
        %v1664 = vunpack.c.l.b16 %v1589
        %v1665 = vunpack.c.l.b16 %v1590
        %v1666 = vunpack.c.h.b16 %v1590
        %v1667 = vunpack.c.l.b16 %v1591
        %v1668 = vunpack.c.l.b16 %v1592
        %v1669 = vunpack.c.h.b16 %v1592
        %v1670 = vunpack.c.l.b16 %v1593
        %v1671 = vunpack.c.l.b16 %v1594
        %v1672 = vunpack.c.h.b16 %v1594
        %v1673 = vunpack.c.l.b16 %v1595
        %v1674 = vunpack.c.l.b16 %v1596
        %v1675 = vunpack.c.h.b16 %v1596
        %v1676 = vunpack.c.l.b16 %v1597
        %v1677 = vunpack.c.l.b16 %v1598
        %v1678 = vunpack.c.h.b16 %v1598
        %v1679 = vunpack.c.l.b16 %v1599
        %v1680 = vunpack.c.l.b16 %v1600
        %v1681 = vunpack.c.h.b16 %v1600
        %v1682 = vunpack.c.l.b16 %v1601
        %v1683 = vunpack.c.l.b16 %v1602
        %v1684 = vunpack.c.h.b16 %v1602
        %v1685 = vunpack.c.l.b16 %v1603
        %v1686 = vunpack.c.l.b16 %v1604
        %v1687 = vunpack.c.h.b16 %v1604
        %v1688 = vunpack.c.l.b16 %v1605
        %v1689 = vunpack.c.l.b16 %v1606
        %v1690 = vunpack.c.h.b16 %v1606
        %v1691 = vunpack.c.l.b16 %v1607
        %v1692 = vunpack.c.l.b16 %v1608
        %v1693 = vunpack.c.h.b16 %v1608
        %v1694 = vunpack.c.l.b16 %v1609
        %v1695 = vunpack.c.l.b16 %v1610
        %v1696 = vunpack.c.h.b16 %v1610
        %v1697 = vunpack.c.l.b16 %v1611
        %v1698 = vunpack.c.l.b16 %v1612
        %v1699 = vunpack.c.h.b16 %v1612
        %v1700 = vunpack.c.l.b16 %v1613
        %v1701 = vunpack.c.l.b16 %v1614
        %v1702 = vunpack.c.h.b16 %v1614
        %v1703 = vunpack.c.l.b16 %v1615
        %v1704 = vpack.c.b16 %v1659, %v1656
        %v1705 = vpack.c.b16 %v1660, %v1657
        %v1706 = vpack.c.b16 %v1661, %v1658
        %v1707 = vpack.c.b16 %v1665, %v1662
        %v1708 = vpack.c.b16 %v1666, %v1663
        %v1709 = vpack.c.b16 %v1667, %v1664
        %v1710 = vpack.c.b16 %v1671, %v1668
        %v1711 = vpack.c.b16 %v1672, %v1669
        %v1712 = vpack.c.b16 %v1673, %v1670
        %v1713 = vpack.c.b16 %v1677, %v1674
        %v1714 = vpack.c.b16 %v1678, %v1675
        %v1715 = vpack.c.b16 %v1679, %v1676
        %v1716 = vpack.c.b16 %v1683, %v1680
        %v1717 = vpack.c.b16 %v1684, %v1681
        %v1718 = vpack.c.b16 %v1685, %v1682
        %v1719 = vpack.c.b16 %v1689, %v1686
        %v1720 = vpack.c.b16 %v1690, %v1687
        %v1721 = vpack.c.b16 %v1691, %v1688
        %v1722 = vpack.c.b16 %v1695, %v1692
        %v1723 = vpack.c.b16 %v1696, %v1693
        %v1724 = vpack.c.b16 %v1697, %v1694
        %v1725 = vpack.c.b16 %v1701, %v1698
        %v1726 = vpack.c.b16 %v1702, %v1699
        %v1727 = vpack.c.b16 %v1703, %v1700
        %1752 = vmatpush.bf16.msra.mxu0 %v1725
        %1753 = vmatpush.bf16.msra.mxu0 %v1722
        %1754 = vmatpush.bf16.msra.mxu0 %v1719
        %1755 = vmatpush.bf16.msra.mxu0 %v1716
        %1756 = vmatpush.bf16.msra.mxu0 %v1713
        %1757 = vmatpush.bf16.msra.mxu0 %v1710
        %1758 = vmatpush.bf16.msra.mxu0 %v1707
        %1759 = vmatpush.bf16.msra.mxu0 %v1704
        %1760 = vmatmul.bf16.gmra.mxu0 %v1583
        %v1761 = vpop.f32.mrf.mxu0
        %v1762 = vadd.f32 %v1618, %v1761
        %v1763 = vpop.f32.mrf.mxu0
        %v1764 = vadd.f32 %v1618, %v1763
        %1765 = vdwg.mxu0
        %1766 = vmatpush.bf16.msra.mxu0 %v1726
        %1767 = vmatpush.bf16.msra.mxu0 %v1723
        %1768 = vmatpush.bf16.msra.mxu0 %v1720
        %1769 = vmatpush.bf16.msra.mxu0 %v1717
        %1770 = vmatpush.bf16.msra.mxu0 %v1714
        %1771 = vmatpush.bf16.msra.mxu0 %v1711
        %1772 = vmatpush.bf16.msra.mxu0 %v1708
        %1773 = vmatpush.bf16.msra.mxu0 %v1705
        %1774 = vmatmul.bf16.gmra.mxu0 %v1583
        %v1775 = vpop.f32.mrf.mxu0
        %v1776 = vadd.f32 %v1619, %v1775
        %v1777 = vpop.f32.mrf.mxu0
        %v1778 = vadd.f32 %v1619, %v1777
        %1779 = vdwg.mxu0
        %1780 = vmatpush.bf16.msra.mxu0 %v1727
        %1781 = vmatpush.bf16.msra.mxu0 %v1724
        %1782 = vmatpush.bf16.msra.mxu0 %v1721
        %1783 = vmatpush.bf16.msra.mxu0 %v1718
        %1784 = vmatpush.bf16.msra.mxu0 %v1715
        %1785 = vmatpush.bf16.msra.mxu0 %v1712
        %1786 = vmatpush.bf16.msra.mxu0 %v1709
        %1787 = vmatpush.bf16.msra.mxu0 %v1706
        %1788 = vmatmul.bf16.gmra.mxu0 %v1583
        %v1789 = vpop.f32.mrf.mxu0
        %v1790 = vadd.f32 %v1620, %v1789
        %v1791 = vpop.f32.mrf.mxu0
        %v1792 = vadd.f32 %v1620, %v1791
        %1793 = vdwg.mxu0
        %v1794 = vmul.f32 %v1762, 0.5
        %v1795 = vmul.f32 %v1776, 0.5
        %v1796 = vmul.f32 %v1790, 0.5
        %v1797 = vmul.f32 %v1764, 0.5
        %v1798 = vmul.f32 %v1778, 0.5
        %v1799 = vmul.f32 %v1792, 0.5
        %v1800 = vmul.f32 %v1762, 0.044715
        %v1801 = vmul.f32 %v1776, 0.044715
        %v1802 = vmul.f32 %v1790, 0.044715
        %v1803 = vmul.f32 %v1764, 0.044715
        %v1804 = vmul.f32 %v1778, 0.044715
        %v1805 = vmul.f32 %v1792, 0.044715
        %v1806 = vmul.f32 %v1800, %v1762
        %v1807 = vmul.f32 %v1801, %v1776
        %v1808 = vmul.f32 %v1802, %v1790
        %v1809 = vmul.f32 %v1803, %v1764
        %v1810 = vmul.f32 %v1804, %v1778
        %v1811 = vmul.f32 %v1805, %v1792
        %v1812 = vmul.f32 %v1806, %v1762
        %v1813 = vmul.f32 %v1807, %v1776
        %v1814 = vmul.f32 %v1808, %v1790
        %v1815 = vmul.f32 %v1809, %v1764
        %v1816 = vmul.f32 %v1810, %v1778
        %v1817 = vmul.f32 %v1811, %v1792
        %v1818 = vadd.f32 %v1762, %v1812
        %v1819 = vadd.f32 %v1776, %v1813
        %v1820 = vadd.f32 %v1790, %v1814
        %v1821 = vadd.f32 %v1764, %v1815
        %v1822 = vadd.f32 %v1778, %v1816
        %v1823 = vadd.f32 %v1792, %v1817
        %v1824 = vmul.f32 %v1818, 0.7978846
        %v1825 = vmul.f32 %v1819, 0.7978846
        %v1826 = vmul.f32 %v1820, 0.7978846
        %v1827 = vmul.f32 %v1821, 0.7978846
        %v1828 = vmul.f32 %v1822, 0.7978846
        %v1829 = vmul.f32 %v1823, 0.7978846
        %v1830 = vtanh.pop %v1824
        %v1831 = vtanh.pop %v1825
        %v1832 = vtanh.pop %v1826
        %v1833 = vtanh.pop %v1827
        %v1834 = vtanh.pop %v1828
        %v1835 = vtanh.pop %v1829
        %v1836 = vadd.f32 %v1830, 1.0
        %v1837 = vadd.f32 %v1831, 1.0
        %v1838 = vadd.f32 %v1832, 1.0
        %v1839 = vadd.f32 %v1833, 1.0
        %v1840 = vadd.f32 %v1834, 1.0
        %v1841 = vadd.f32 %v1835, 1.0
        %v1842 = vmul.f32 %v1794, %v1836
        %v1843 = vmul.f32 %v1795, %v1837
        %v1844 = vmul.f32 %v1796, %v1838
        %v1845 = vmul.f32 %v1797, %v1839
        %v1846 = vmul.f32 %v1798, %v1840
        %v1847 = vmul.f32 %v1799, %v1841
        %v1848 = vpack.c.bf16 %v1845, %v1842
        %v1849 = vpack.c.bf16 %v1846, %v1843
        %v1850 = vpack.c.bf16 %v1847, %v1844
        %v1851 = vld [vmem:[#allocation12] sm:$0xf]
        %v1852 = vld [vmem:[#allocation12 + $0x4] sm:$0xf]
        %v1853 = vld [vmem:[#allocation12 + $0x8] sm:$0xf]
        %v1854 = vld [vmem:[#allocation12 + $0xc] sm:$0xf]
        %v1855 = vld [vmem:[#allocation12 + $0x10] sm:$0xf]
        %v1856 = vld [vmem:[#allocation12 + $0x14] sm:$0xf]
        %v1857 = vld [vmem:[#allocation12 + $0x18] sm:$0xf]
        %v1858 = vld [vmem:[#allocation12 + $0x1c] sm:$0xf]
        %v1859 = vld [vmem:[#allocation12 + $0x20] sm:$0xf]
        %v1860 = vld [vmem:[#allocation12 + $0x24] sm:$0xf]
        %v1861 = vld [vmem:[#allocation12 + $0x28] sm:$0xf]
        %v1862 = vld [vmem:[#allocation12 + $0x2c] sm:$0xf]
        %v1863 = vld [vmem:[#allocation12 + $0x30] sm:$0xf]
        %v1864 = vld [vmem:[#allocation12 + $0x34] sm:$0xf]
        %v1865 = vld [vmem:[#allocation12 + $0x38] sm:$0xf]
        %v1866 = vld [vmem:[#allocation12 + $0x3c] sm:$0xf]
        %v1867 = vld [vmem:[#allocation12 + $0x40] sm:$0xf]
        %v1868 = vld [vmem:[#allocation12 + $0x44] sm:$0xf]
        %v1869 = vld [vmem:[#allocation12 + $0x48] sm:$0xf]
        %v1870 = vld [vmem:[#allocation12 + $0x4c] sm:$0xf]
        %v1871 = vld [vmem:[#allocation12 + $0x50] sm:$0xf]
        %v1872 = vld [vmem:[#allocation12 + $0x54] sm:$0xf]
        %v1873 = vld [vmem:[#allocation12 + $0x58] sm:$0xf]
        %v1874 = vld [vmem:[#allocation12 + $0x5c] sm:$0xf]
        %v1875 = vld [vmem:[#allocation12 + $0x60] sm:$0xf]
        %v1876 = vld [vmem:[#allocation12 + $0x64] sm:$0xf]
        %v1877 = vld [vmem:[#allocation12 + $0x68] sm:$0xf]
        %v1878 = vld [vmem:[#allocation12 + $0x6c] sm:$0xf]
        %v1879 = vld [vmem:[#allocation12 + $0x70] sm:$0xf]
        %v1880 = vld [vmem:[#allocation12 + $0x74] sm:$0xf]
        %v1881 = vld [vmem:[#allocation12 + $0x78] sm:$0xf]
        %v1882 = vld [vmem:[#allocation12 + $0x7c] sm:$0xf]
        %v1883 = vld [vmem:[#allocation12 + $0x80] sm:$0xf]
        %v1884 = vld [vmem:[#allocation12 + $0x84] sm:$0xf]
        %v1885 = vld [vmem:[#allocation12 + $0x88] sm:$0xf]
        %v1886 = vld [vmem:[#allocation12 + $0x8c] sm:$0xf]
        %v1887 = vld [vmem:[#allocation12 + $0x90] sm:$0xf]
        %v1888 = vld [vmem:[#allocation12 + $0x94] sm:$0xf]
        %v1889 = vld [vmem:[#allocation12 + $0x98] sm:$0xf]
        %v1890 = vld [vmem:[#allocation12 + $0x9c] sm:$0xf]
        %v1891 = vld [vmem:[#allocation12 + $0xa0] sm:$0xf]
        %v1892 = vld [vmem:[#allocation12 + $0xa4] sm:$0xf]
        %v1893 = vld [vmem:[#allocation12 + $0xa8] sm:$0xf]
        %v1894 = vld [vmem:[#allocation12 + $0xac] sm:$0xf]
        %v1895 = vld [vmem:[#allocation12 + $0xb0] sm:$0xf]
        %v1896 = vld [vmem:[#allocation12 + $0xb4] sm:$0xf]
        %v1897 = vld [vmem:[#allocation12 + $0xb8] sm:$0xf]
        %v1898 = vld [vmem:[#allocation12 + $0xbc] sm:$0xf]
        %v1899 = vld [vmem:[#allocation13] sm:$0x1]
        %v1901 = vperm.slane %v1899, 0
        %v1951 = vunpack.c.l.b16 %v1851
        %v1952 = vunpack.c.l.b16 %v1852
        %v1953 = vunpack.c.l.b16 %v1853
        %v1954 = vunpack.c.l.b16 %v1854
        %v1955 = vunpack.c.l.b16 %v1855
        %v1956 = vunpack.c.l.b16 %v1856
        %v1957 = vunpack.c.l.b16 %v1857
        %v1958 = vunpack.c.l.b16 %v1858
        %v1959 = vunpack.c.l.b16 %v1859
        %v1960 = vunpack.c.l.b16 %v1860
        %v1961 = vunpack.c.l.b16 %v1861
        %v1962 = vunpack.c.l.b16 %v1862
        %v1963 = vunpack.c.l.b16 %v1863
        %v1964 = vunpack.c.l.b16 %v1864
        %v1965 = vunpack.c.l.b16 %v1865
        %v1966 = vunpack.c.l.b16 %v1866
        %v1967 = vunpack.c.l.b16 %v1867
        %v1968 = vunpack.c.l.b16 %v1868
        %v1969 = vunpack.c.l.b16 %v1869
        %v1970 = vunpack.c.l.b16 %v1870
        %v1971 = vunpack.c.l.b16 %v1871
        %v1972 = vunpack.c.l.b16 %v1872
        %v1973 = vunpack.c.l.b16 %v1873
        %v1974 = vunpack.c.l.b16 %v1874
        %v1975 = vunpack.c.l.b16 %v1875
        %v1976 = vunpack.c.l.b16 %v1876
        %v1977 = vunpack.c.l.b16 %v1877
        %v1978 = vunpack.c.l.b16 %v1878
        %v1979 = vunpack.c.l.b16 %v1879
        %v1980 = vunpack.c.l.b16 %v1880
        %v1981 = vunpack.c.l.b16 %v1881
        %v1982 = vunpack.c.l.b16 %v1882
        %v1983 = vunpack.c.l.b16 %v1883
        %v1984 = vunpack.c.l.b16 %v1884
        %v1985 = vunpack.c.l.b16 %v1885
        %v1986 = vunpack.c.l.b16 %v1886
        %v1987 = vunpack.c.l.b16 %v1887
        %v1988 = vunpack.c.l.b16 %v1888
        %v1989 = vunpack.c.l.b16 %v1889
        %v1990 = vunpack.c.l.b16 %v1890
        %v1991 = vunpack.c.l.b16 %v1891
        %v1992 = vunpack.c.l.b16 %v1892
        %v1993 = vunpack.c.l.b16 %v1893
        %v1994 = vunpack.c.l.b16 %v1894
        %v1995 = vunpack.c.l.b16 %v1895
        %v1996 = vunpack.c.l.b16 %v1896
        %v1997 = vunpack.c.l.b16 %v1897
        %v1998 = vunpack.c.l.b16 %v1898
        %v1999 = vpack.c.b16 %v1952, %v1951
        %v2000 = vpack.c.b16 %v1954, %v1953
        %v2001 = vpack.c.b16 %v1956, %v1955
        %v2002 = vpack.c.b16 %v1958, %v1957
        %v2003 = vpack.c.b16 %v1960, %v1959
        %v2004 = vpack.c.b16 %v1962, %v1961
        %v2005 = vpack.c.b16 %v1964, %v1963
        %v2006 = vpack.c.b16 %v1966, %v1965
        %v2007 = vpack.c.b16 %v1968, %v1967
        %v2008 = vpack.c.b16 %v1970, %v1969
        %v2009 = vpack.c.b16 %v1972, %v1971
        %v2010 = vpack.c.b16 %v1974, %v1973
        %v2011 = vpack.c.b16 %v1976, %v1975
        %v2012 = vpack.c.b16 %v1978, %v1977
        %v2013 = vpack.c.b16 %v1980, %v1979
        %v2014 = vpack.c.b16 %v1982, %v1981
        %v2015 = vpack.c.b16 %v1984, %v1983
        %v2016 = vpack.c.b16 %v1986, %v1985
        %v2017 = vpack.c.b16 %v1988, %v1987
        %v2018 = vpack.c.b16 %v1990, %v1989
        %v2019 = vpack.c.b16 %v1992, %v1991
        %v2020 = vpack.c.b16 %v1994, %v1993
        %v2021 = vpack.c.b16 %v1996, %v1995
        %v2022 = vpack.c.b16 %v1998, %v1997
        %2047 = vmatpush.bf16.msra.mxu0 %v2006
        %2048 = vmatpush.bf16.msra.mxu0 %v2005
        %2049 = vmatpush.bf16.msra.mxu0 %v2004
        %2050 = vmatpush.bf16.msra.mxu0 %v2003
        %2051 = vmatpush.bf16.msra.mxu0 %v2002
        %2052 = vmatpush.bf16.msra.mxu0 %v2001
        %2053 = vmatpush.bf16.msra.mxu0 %v2000
        %2054 = vmatpush.bf16.msra.mxu0 %v1999
        %2055 = vmatmul.bf16.gmra.mxu0 %v1848
        %v2056 = vpop.f32.mrf.mxu0
        %v2057 = vadd.f32 %v1901, %v2056
        %v2058 = vpop.f32.mrf.mxu0
        %v2059 = vadd.f32 %v1901, %v2058
        %2060 = vdwg.mxu0
        %2061 = vmatpush.bf16.msra.mxu0 %v2014
        %2062 = vmatpush.bf16.msra.mxu0 %v2013
        %2063 = vmatpush.bf16.msra.mxu0 %v2012
        %2064 = vmatpush.bf16.msra.mxu0 %v2011
        %2065 = vmatpush.bf16.msra.mxu0 %v2010
        %2066 = vmatpush.bf16.msra.mxu0 %v2009
        %2067 = vmatpush.bf16.msra.mxu0 %v2008
        %2068 = vmatpush.bf16.msra.mxu0 %v2007
        %2069 = vmatmul.bf16.gmra.mxu0 %v1849
        %v2070 = vpop.f32.mrf.mxu0
        %v2071 = vadd.f32 %v2057, %v2070
        %v2072 = vpop.f32.mrf.mxu0
        %v2073 = vadd.f32 %v2059, %v2072
        %2074 = vdwg.mxu0
        %2075 = vmatpush.bf16.msra.mxu0 %v2022
        %2076 = vmatpush.bf16.msra.mxu0 %v2021
        %2077 = vmatpush.bf16.msra.mxu0 %v2020
        %2078 = vmatpush.bf16.msra.mxu0 %v2019
        %2079 = vmatpush.bf16.msra.mxu0 %v2018
        %2080 = vmatpush.bf16.msra.mxu0 %v2017
        %2081 = vmatpush.bf16.msra.mxu0 %v2016
        %2082 = vmatpush.bf16.msra.mxu0 %v2015
        %2083 = vmatmul.bf16.gmra.mxu0 %v1850
        %v2084 = vpop.f32.mrf.mxu0
        %v2085 = vadd.f32 %v2071, %v2084
        %v2086 = vpop.f32.mrf.mxu0
        %v2087 = vadd.f32 %v2073, %v2086
        %2088 = vdwg.mxu0
        %v2089 = vadd.f32 %v1529, %v2085
        %v2090 = vadd.f32 %v1530, %v2087
        %s2091 = scalar_lea.vmem [#allocation4], 1
        %v2092 = vld [vmem:[%s2091] sm:$0x1]
        %s2093 = scalar_lea.vmem [#allocation6], 1
        %v2094 = vld [vmem:[%s2093] sm:$0x1]
        %2095 = vadd.xlane.f32.xlu0 %v2089
        %v2096 = vpop.xlane.xlu0 %2095
        %2097 = vadd.xlane.f32.xlu0 %v2090
        %v2098 = vpop.xlane.xlu0 %2097
        %v2099 = vmul.f32 %v2096, %v836
        %v2100 = vmul.f32 %v2098, %v836
        %v2101 = vsub.f32 %v2089, %v2099
        %v2102 = vsub.f32 %v2090, %v2100
        %v2103 = vmul.f32 %v2101, %v2101
        %v2104 = vmul.f32 %v2102, %v2102
        %2105 = vadd.xlane.f32.xlu0 %v2103
        %v2106 = vpop.xlane.xlu0 %2105
        %2107 = vadd.xlane.f32.xlu0 %v2104
        %v2108 = vpop.xlane.xlu0 %2107
        %v2109 = vmul.f32 %v2106, %v836
        %v2110 = vmul.f32 %v2108, %v836
        %v2111 = vadd.f32 %v2109, 1e-06
        %v2112 = vadd.f32 %v2110, 1e-06
        %v2113 = vrsqrt.pop %v2111
        %v2114 = vmul.f32 %v2113, %v2111
        %v2115 = vmul.f32 %v2114, %v2113
        %v2116 = vmul.f32 0.5, %v2115
        %v2117 = vsub.f32 1.5, %v2116
        %v2118 = vmul.f32 %v2113, %v2117
        %vm2119 = vweird.f32 %v2111
        %vm2120 = vweird.f32 %v2113
        %vm2121 = vmor %vm2119, %vm2120
        %v2122 = vsel %vm2121, %v2113, %v2118
        %v2123 = vrsqrt.pop %v2112
        %v2124 = vmul.f32 %v2123, %v2112
        %v2125 = vmul.f32 %v2124, %v2123
        %v2126 = vmul.f32 0.5, %v2125
        %v2127 = vsub.f32 1.5, %v2126
        %v2128 = vmul.f32 %v2123, %v2127
        %vm2129 = vweird.f32 %v2112
        %vm2130 = vweird.f32 %v2123
        %vm2131 = vmor %vm2129, %vm2130
        %v2132 = vsel %vm2131, %v2123, %v2128
        %v2133 = vmul.f32 %v2101, %v2122
        %v2134 = vmul.f32 %v2102, %v2132
        %v2136 = vperm.slane %v2092, 0
        %v2138 = vmul.f32 %v2133, %v2136
        %v2139 = vmul.f32 %v2134, %v2136
        %v2141 = vperm.slane %v2094, 0
        %v2143 = vadd.f32 %v2138, %v2141
        %v2144 = vadd.f32 %v2139, %v2141
        %v2145 = vpack.c.bf16 %v2144, %v2143
        %s2146 = scalar_lea.vmem %s6, 192
        %v2147 = vld [vmem:[%s2146] sm:$0xff]
        %v2148 = vld [vmem:[%s2146 + $0x8] sm:$0xf]
        %v2149 = vld [vmem:[%s2146 + $0xc] sm:$0xff]
        %v2150 = vld [vmem:[%s2146 + $0x14] sm:$0xf]
        %v2151 = vld [vmem:[%s2146 + $0x18] sm:$0xff]
        %v2152 = vld [vmem:[%s2146 + $0x20] sm:$0xf]
        %v2153 = vld [vmem:[%s2146 + $0x24] sm:$0xff]
        %v2154 = vld [vmem:[%s2146 + $0x2c] sm:$0xf]
        %v2155 = vld [vmem:[%s2146 + $0x30] sm:$0xff]
        %v2156 = vld [vmem:[%s2146 + $0x38] sm:$0xf]
        %v2157 = vld [vmem:[%s2146 + $0x3c] sm:$0xff]
        %v2158 = vld [vmem:[%s2146 + $0x44] sm:$0xf]
        %v2159 = vld [vmem:[%s2146 + $0x48] sm:$0xff]
        %v2160 = vld [vmem:[%s2146 + $0x50] sm:$0xf]
        %v2161 = vld [vmem:[%s2146 + $0x54] sm:$0xff]
        %v2162 = vld [vmem:[%s2146 + $0x5c] sm:$0xf]
        %v2163 = vld [vmem:[%s2146 + $0x60] sm:$0xff]
        %v2164 = vld [vmem:[%s2146 + $0x68] sm:$0xf]
        %v2165 = vld [vmem:[%s2146 + $0x6c] sm:$0xff]
        %v2166 = vld [vmem:[%s2146 + $0x74] sm:$0xf]
        %v2167 = vld [vmem:[%s2146 + $0x78] sm:$0xff]
        %v2168 = vld [vmem:[%s2146 + $0x80] sm:$0xf]
        %v2169 = vld [vmem:[%s2146 + $0x84] sm:$0xff]
        %v2170 = vld [vmem:[%s2146 + $0x8c] sm:$0xf]
        %v2171 = vld [vmem:[%s2146 + $0x90] sm:$0xff]
        %v2172 = vld [vmem:[%s2146 + $0x98] sm:$0xf]
        %v2173 = vld [vmem:[%s2146 + $0x9c] sm:$0xff]
        %v2174 = vld [vmem:[%s2146 + $0xa4] sm:$0xf]
        %v2175 = vld [vmem:[%s2146 + $0xa8] sm:$0xff]
        %v2176 = vld [vmem:[%s2146 + $0xb0] sm:$0xf]
        %v2177 = vld [vmem:[%s2146 + $0xb4] sm:$0xff]
        %v2178 = vld [vmem:[%s2146 + $0xbc] sm:$0xf]
        %v2211 = vunpack.c.l.b16 %v2147
        %v2212 = vunpack.c.h.b16 %v2147
        %v2213 = vunpack.c.l.b16 %v2148
        %v2214 = vunpack.c.l.b16 %v2149
        %v2215 = vunpack.c.h.b16 %v2149
        %v2216 = vunpack.c.l.b16 %v2150
        %v2217 = vunpack.c.l.b16 %v2151
        %v2218 = vunpack.c.h.b16 %v2151
        %v2219 = vunpack.c.l.b16 %v2152
        %v2220 = vunpack.c.l.b16 %v2153
        %v2221 = vunpack.c.h.b16 %v2153
        %v2222 = vunpack.c.l.b16 %v2154
        %v2223 = vunpack.c.l.b16 %v2155
        %v2224 = vunpack.c.h.b16 %v2155
        %v2225 = vunpack.c.l.b16 %v2156
        %v2226 = vunpack.c.l.b16 %v2157
        %v2227 = vunpack.c.h.b16 %v2157
        %v2228 = vunpack.c.l.b16 %v2158
        %v2229 = vunpack.c.l.b16 %v2159
        %v2230 = vunpack.c.h.b16 %v2159
        %v2231 = vunpack.c.l.b16 %v2160
        %v2232 = vunpack.c.l.b16 %v2161
        %v2233 = vunpack.c.h.b16 %v2161
        %v2234 = vunpack.c.l.b16 %v2162
        %v2235 = vunpack.c.l.b16 %v2163
        %v2236 = vunpack.c.h.b16 %v2163
        %v2237 = vunpack.c.l.b16 %v2164
        %v2238 = vunpack.c.l.b16 %v2165
        %v2239 = vunpack.c.h.b16 %v2165
        %v2240 = vunpack.c.l.b16 %v2166
        %v2241 = vunpack.c.l.b16 %v2167
        %v2242 = vunpack.c.h.b16 %v2167
        %v2243 = vunpack.c.l.b16 %v2168
        %v2244 = vunpack.c.l.b16 %v2169
        %v2245 = vunpack.c.h.b16 %v2169
        %v2246 = vunpack.c.l.b16 %v2170
        %v2247 = vunpack.c.l.b16 %v2171
        %v2248 = vunpack.c.h.b16 %v2171
        %v2249 = vunpack.c.l.b16 %v2172
        %v2250 = vunpack.c.l.b16 %v2173
        %v2251 = vunpack.c.h.b16 %v2173
        %v2252 = vunpack.c.l.b16 %v2174
        %v2253 = vunpack.c.l.b16 %v2175
        %v2254 = vunpack.c.h.b16 %v2175
        %v2255 = vunpack.c.l.b16 %v2176
        %v2256 = vunpack.c.l.b16 %v2177
        %v2257 = vunpack.c.h.b16 %v2177
        %v2258 = vunpack.c.l.b16 %v2178
        %v2259 = vpack.c.b16 %v2214, %v2211
        %v2260 = vpack.c.b16 %v2215, %v2212
        %v2261 = vpack.c.b16 %v2216, %v2213
        %v2262 = vpack.c.b16 %v2220, %v2217
        %v2263 = vpack.c.b16 %v2221, %v2218
        %v2264 = vpack.c.b16 %v2222, %v2219
        %v2265 = vpack.c.b16 %v2226, %v2223
        %v2266 = vpack.c.b16 %v2227, %v2224
        %v2267 = vpack.c.b16 %v2228, %v2225
        %v2268 = vpack.c.b16 %v2232, %v2229
        %v2269 = vpack.c.b16 %v2233, %v2230
        %v2270 = vpack.c.b16 %v2234, %v2231
        %v2271 = vpack.c.b16 %v2238, %v2235
        %v2272 = vpack.c.b16 %v2239, %v2236
        %v2273 = vpack.c.b16 %v2240, %v2237
        %v2274 = vpack.c.b16 %v2244, %v2241
        %v2275 = vpack.c.b16 %v2245, %v2242
        %v2276 = vpack.c.b16 %v2246, %v2243
        %v2277 = vpack.c.b16 %v2250, %v2247
        %v2278 = vpack.c.b16 %v2251, %v2248
        %v2279 = vpack.c.b16 %v2252, %v2249
        %v2280 = vpack.c.b16 %v2256, %v2253
        %v2281 = vpack.c.b16 %v2257, %v2254
        %v2282 = vpack.c.b16 %v2258, %v2255
        %2307 = vmatpush.bf16.msra.mxu0 %v2280
        %2308 = vmatpush.bf16.msra.mxu0 %v2277
        %2309 = vmatpush.bf16.msra.mxu0 %v2274
        %2310 = vmatpush.bf16.msra.mxu0 %v2271
        %2311 = vmatpush.bf16.msra.mxu0 %v2268
        %2312 = vmatpush.bf16.msra.mxu0 %v2265
        %2313 = vmatpush.bf16.msra.mxu0 %v2262
        %2314 = vmatpush.bf16.msra.mxu0 %v2259
        %2315 = vmatmul.bf16.gmra.mxu0 %v2145
        %v2316 = vpop.f32.mrf.mxu0
        %v2317 = vadd.f32 0.0, %v2316
        %v2318 = vpop.f32.mrf.mxu0
        %v2319 = vadd.f32 0.0, %v2318
        %2320 = vdwg.mxu0
        %2321 = vmatpush.bf16.msra.mxu0 %v2281
        %2322 = vmatpush.bf16.msra.mxu0 %v2278
        %2323 = vmatpush.bf16.msra.mxu0 %v2275
        %2324 = vmatpush.bf16.msra.mxu0 %v2272
        %2325 = vmatpush.bf16.msra.mxu0 %v2269
        %2326 = vmatpush.bf16.msra.mxu0 %v2266
        %2327 = vmatpush.bf16.msra.mxu0 %v2263
        %2328 = vmatpush.bf16.msra.mxu0 %v2260
        %2329 = vmatmul.bf16.gmra.mxu0 %v2145
        %v2330 = vpop.f32.mrf.mxu0
        %v2331 = vadd.f32 0.0, %v2330
        %v2332 = vpop.f32.mrf.mxu0
        %v2333 = vadd.f32 0.0, %v2332
        %2334 = vdwg.mxu0
        %2335 = vmatpush.bf16.msra.mxu0 %v2282
        %2336 = vmatpush.bf16.msra.mxu0 %v2279
        %2337 = vmatpush.bf16.msra.mxu0 %v2276
        %2338 = vmatpush.bf16.msra.mxu0 %v2273
        %2339 = vmatpush.bf16.msra.mxu0 %v2270
        %2340 = vmatpush.bf16.msra.mxu0 %v2267
        %2341 = vmatpush.bf16.msra.mxu0 %v2264
        %2342 = vmatpush.bf16.msra.mxu0 %v2261
        %2343 = vmatmul.bf16.gmra.mxu0 %v2145
        %v2344 = vpop.f32.mrf.mxu0
        %v2345 = vadd.f32 0.0, %v2344
        %v2346 = vpop.f32.mrf.mxu0
        %v2347 = vadd.f32 0.0, %v2346
        %2348 = vdwg.mxu0
        %v2349 = vpack.c.bf16 %v2331, %v2317
        %v2350 = vpack.c.bf16 %v2345, %v2345
        %v2351 = vpack.c.bf16 %v2333, %v2319
        %v2352 = vpack.c.bf16 %v2347, %v2347
        %s2353 = scalar_lea.vmem %s7, 64
        %v2354 = vld [vmem:[%s2353] sm:$0xf]
        %v2355 = vld [vmem:[%s2353 + $0x4] sm:$0xf]
        %v2356 = vld [vmem:[%s2353 + $0x8] sm:$0xf]
        %v2357 = vld [vmem:[%s2353 + $0xc] sm:$0xf]
        %v2358 = vld [vmem:[%s2353 + $0x10] sm:$0xf]
        %v2359 = vld [vmem:[%s2353 + $0x14] sm:$0xf]
        %v2360 = vld [vmem:[%s2353 + $0x18] sm:$0xf]
        %v2361 = vld [vmem:[%s2353 + $0x1c] sm:$0xf]
        %v2362 = vld [vmem:[%s2353 + $0x20] sm:$0xf]
        %v2363 = vld [vmem:[%s2353 + $0x24] sm:$0xf]
        %v2364 = vld [vmem:[%s2353 + $0x28] sm:$0xf]
        %v2365 = vld [vmem:[%s2353 + $0x2c] sm:$0xf]
        %v2366 = vld [vmem:[%s2353 + $0x30] sm:$0xf]
        %v2367 = vld [vmem:[%s2353 + $0x34] sm:$0xf]
        %v2368 = vld [vmem:[%s2353 + $0x38] sm:$0xf]
        %v2369 = vld [vmem:[%s2353 + $0x3c] sm:$0xf]
        %v2372 = vunpack.c.l.b16 %v2349
        %v2373 = vunpack.c.l.b16 %v2351
        %v2374 = vpack.c.b16 %v2373, %v2372
        %v2375 = vunpack.c.h.b16 %v2349
        %v2376 = vunpack.c.h.b16 %v2351
        %v2377 = vpack.c.b16 %v2376, %v2375
        %v2379 = vsel %vm1114, %v2374, 0
        %v2382 = vsel %vm1114, %v2377, 0
        %2384 = vmatpush.bf16.xpose.msra.mxu0 0
        %2385 = vmatpush.bf16.xpose.msra.mxu0 0
        %2386 = vmatpush.bf16.xpose.msra.mxu0 0
        %2387 = vmatpush.bf16.xpose.msra.mxu0 0
        %2388 = vmatpush.bf16.xpose.msra.mxu0 0
        %2389 = vmatpush.bf16.xpose.msra.mxu0 0
        %2390 = vmatpush.bf16.xpose.msra.mxu0 0
        %2391 = vmatpush.bf16.xpose.msra.mxu0 %v2382
        %2392 = vmatmul.bf16.gmra.mxu0 %v2379
        %v2393 = vpop.f32.mrf.mxu0
        %v2394 = vadd.f32 0.0, %v2393
        %v2395 = vpop.f32.mrf.mxu0
        %v2396 = vadd.f32 0.0, %v2395
        %2397 = vdwg.mxu0
        %v2398 = vmul.f32 %v2394, 0.088388346
        %v2399 = vmul.f32 %v2396, 0.088388346
        %v2400 = vadd.f32 %v2398, %v823
        %v2401 = vadd.f32 %v2399, %v823
        %v2402 = vsel %vm1139, %v2400, -inf
        %2403 = vmax.xlane.f32.xlu0 %v2402
        %v2404 = vpop.xlane.xlu0 %2403
        %v2405 = vsel %vm1139, %v2401, -inf
        %2406 = vmax.xlane.f32.xlu0 %v2405
        %v2407 = vpop.xlane.xlu0 %2406
        %v2408 = vsub.f32 %v2400, %v2404
        %v2409 = vsub.f32 %v2401, %v2407
        %v2410 = vmul.f32 %v2408, 1.442695
        %v2411 = vpow.pop %v2410
        %v2412 = vmul.f32 %v2409, 1.442695
        %v2413 = vpow.pop %v2412
        %v2414 = vsel %vm1139, %v2411, 0.0
        %2415 = vadd.xlane.f32.xlu0 %v2414
        %v2416 = vpop.xlane.xlu0 %2415
        %v2417 = vsel %vm1139, %v2413, 0.0
        %2418 = vadd.xlane.f32.xlu0 %v2417
        %v2419 = vpop.xlane.xlu0 %2418
        %v2420 = vrcp.pop %v2416
        %v2421 = vrcp.pop %v2419
        %v2422 = vmul.f32 %v2411, %v2420
        %v2423 = vmul.f32 %v2413, %v2421
        %v2424 = vpack.c.bf16 %v2423, %v2422
        %v2427 = vunpack.c.l.b16 %v2350
        %v2428 = vunpack.c.l.b16 %v2352
        %v2429 = vpack.c.b16 %v2428, %v2427
        %v2432 = vsel %vm1139, %v2424, 0
        %2434 = vmatpush.bf16.msra.mxu0 0
        %2435 = vmatpush.bf16.msra.mxu0 0
        %2436 = vmatpush.bf16.msra.mxu0 0
        %2437 = vmatpush.bf16.msra.mxu0 0
        %2438 = vmatpush.bf16.msra.mxu0 0
        %2439 = vmatpush.bf16.msra.mxu0 0
        %2440 = vmatpush.bf16.msra.mxu0 0
        %2441 = vmatpush.bf16.msra.mxu0 %v2429
        %2442 = vmatmul.bf16.gmra.mxu0 %v2432
        %v2443 = vpop.f32.mrf.mxu0
        %v2444 = vadd.f32 0.0, %v2443
        %v2445 = vpop.f32.mrf.mxu0
        %v2446 = vadd.f32 0.0, %v2445
        %2447 = vdwg.mxu0
        %v2448 = vpack.c.bf16 %v2446, %v2444
        %2449 = vrot.lane.b32.xlu0 %v2374, 96
        %v2450 = vpop.permute.xlu0 %2449
        %2451 = vrot.lane.b32.xlu0 %v2377, 96
        %v2452 = vpop.permute.xlu0 %2451
        %v2454 = vsel %vm1114, %v2450, 0
        %v2457 = vsel %vm1114, %v2452, 0
        %2459 = vmatpush.bf16.xpose.msra.mxu0 0
        %2460 = vmatpush.bf16.xpose.msra.mxu0 0
        %2461 = vmatpush.bf16.xpose.msra.mxu0 0
        %2462 = vmatpush.bf16.xpose.msra.mxu0 0
        %2463 = vmatpush.bf16.xpose.msra.mxu0 0
        %2464 = vmatpush.bf16.xpose.msra.mxu0 0
        %2465 = vmatpush.bf16.xpose.msra.mxu0 0
        %2466 = vmatpush.bf16.xpose.msra.mxu0 %v2457
        %2467 = vmatmul.bf16.gmra.mxu0 %v2454
        %v2468 = vpop.f32.mrf.mxu0
        %v2469 = vadd.f32 0.0, %v2468
        %v2470 = vpop.f32.mrf.mxu0
        %v2471 = vadd.f32 0.0, %v2470
        %2472 = vdwg.mxu0
        %v2473 = vmul.f32 %v2469, 0.088388346
        %v2474 = vmul.f32 %v2471, 0.088388346
        %v2475 = vadd.f32 %v2473, %v823
        %v2476 = vadd.f32 %v2474, %v823
        %v2477 = vsel %vm1139, %v2475, -inf
        %2478 = vmax.xlane.f32.xlu0 %v2477
        %v2479 = vpop.xlane.xlu0 %2478
        %v2480 = vsel %vm1139, %v2476, -inf
        %2481 = vmax.xlane.f32.xlu0 %v2480
        %v2482 = vpop.xlane.xlu0 %2481
        %v2483 = vsub.f32 %v2475, %v2479
        %v2484 = vsub.f32 %v2476, %v2482
        %v2485 = vmul.f32 %v2483, 1.442695
        %v2486 = vpow.pop %v2485
        %v2487 = vmul.f32 %v2484, 1.442695
        %v2488 = vpow.pop %v2487
        %v2489 = vsel %vm1139, %v2486, 0.0
        %2490 = vadd.xlane.f32.xlu0 %v2489
        %v2491 = vpop.xlane.xlu0 %2490
        %v2492 = vsel %vm1139, %v2488, 0.0
        %2493 = vadd.xlane.f32.xlu0 %v2492
        %v2494 = vpop.xlane.xlu0 %2493
        %v2495 = vrcp.pop %v2491
        %v2496 = vrcp.pop %v2494
        %v2497 = vmul.f32 %v2486, %v2495
        %v2498 = vmul.f32 %v2488, %v2496
        %v2499 = vpack.c.bf16 %v2498, %v2497
        %2500 = vrot.lane.b32.xlu0 %v2429, 96
        %v2501 = vpop.permute.xlu0 %2500
        %v2504 = vsel %vm1139, %v2499, 0
        %2506 = vmatpush.bf16.msra.mxu0 0
        %2507 = vmatpush.bf16.msra.mxu0 0
        %2508 = vmatpush.bf16.msra.mxu0 0
        %2509 = vmatpush.bf16.msra.mxu0 0
        %2510 = vmatpush.bf16.msra.mxu0 0
        %2511 = vmatpush.bf16.msra.mxu0 0
        %2512 = vmatpush.bf16.msra.mxu0 0
        %2513 = vmatpush.bf16.msra.mxu0 %v2501
        %2514 = vmatmul.bf16.gmra.mxu0 %v2504
        %v2515 = vpop.f32.mrf.mxu0
        %v2516 = vadd.f32 0.0, %v2515
        %v2517 = vpop.f32.mrf.mxu0
        %v2518 = vadd.f32 0.0, %v2517
        %2519 = vdwg.mxu0
        %v2520 = vpack.c.bf16 %v2518, %v2516
        %v2525 = vunpack.c.l.b16 %v2358
        %v2526 = vunpack.c.l.b16 %v2359
        %v2527 = vunpack.c.l.b16 %v2360
        %v2528 = vunpack.c.l.b16 %v2361
        %v2529 = vpack.c.b16 %v2526, %v2525
        %v2530 = vpack.c.b16 %v2528, %v2527
        %v2534 = vsel %vm1114, %v2520, 0
        %2536 = vmatpush.bf16.msra.mxu0 0
        %2537 = vmatpush.bf16.msra.mxu0 0
        %2538 = vmatpush.bf16.msra.mxu0 0
        %2539 = vmatpush.bf16.msra.mxu0 0
        %2540 = vmatpush.bf16.msra.mxu0 0
        %2541 = vmatpush.bf16.msra.mxu0 0
        %2542 = vmatpush.bf16.msra.mxu0 %v2530
        %2543 = vmatpush.bf16.msra.mxu0 %v2529
        %2544 = vmatmul.bf16.gmra.mxu0 %v2534
        %v2545 = vpop.f32.mrf.mxu0
        %v2546 = vadd.f32 0.0, %v2545
        %v2547 = vpop.f32.mrf.mxu0
        %v2548 = vadd.f32 0.0, %v2547
        %2549 = vdwg.mxu0
        %v2554 = vunpack.c.l.b16 %v2354
        %v2555 = vunpack.c.l.b16 %v2355
        %v2556 = vunpack.c.l.b16 %v2356
        %v2557 = vunpack.c.l.b16 %v2357
        %v2558 = vpack.c.b16 %v2555, %v2554
        %v2559 = vpack.c.b16 %v2557, %v2556
        %v2563 = vsel %vm1114, %v2448, 0
        %2565 = vmatpush.bf16.msra.mxu0 0
        %2566 = vmatpush.bf16.msra.mxu0 0
        %2567 = vmatpush.bf16.msra.mxu0 0
        %2568 = vmatpush.bf16.msra.mxu0 0
        %2569 = vmatpush.bf16.msra.mxu0 0
        %2570 = vmatpush.bf16.msra.mxu0 0
        %2571 = vmatpush.bf16.msra.mxu0 %v2559
        %2572 = vmatpush.bf16.msra.mxu0 %v2558
        %2573 = vmatmul.bf16.gmra.mxu0 %v2563
        %v2574 = vpop.f32.mrf.mxu0
        %v2575 = vadd.f32 %v2546, %v2574
        %v2576 = vpop.f32.mrf.mxu0
        %v2577 = vadd.f32 %v2548, %v2576
        %2578 = vdwg.mxu0
        %2579 = vrot.lane.b32.xlu0 %v2374, 64
        %v2580 = vpop.permute.xlu0 %2579
        %2581 = vrot.lane.b32.xlu0 %v2377, 64
        %v2582 = vpop.permute.xlu0 %2581
        %v2584 = vsel %vm1114, %v2580, 0
        %v2587 = vsel %vm1114, %v2582, 0
        %2589 = vmatpush.bf16.xpose.msra.mxu0 0
        %2590 = vmatpush.bf16.xpose.msra.mxu0 0
        %2591 = vmatpush.bf16.xpose.msra.mxu0 0
        %2592 = vmatpush.bf16.xpose.msra.mxu0 0
        %2593 = vmatpush.bf16.xpose.msra.mxu0 0
        %2594 = vmatpush.bf16.xpose.msra.mxu0 0
        %2595 = vmatpush.bf16.xpose.msra.mxu0 0
        %2596 = vmatpush.bf16.xpose.msra.mxu0 %v2587
        %2597 = vmatmul.bf16.gmra.mxu0 %v2584
        %v2598 = vpop.f32.mrf.mxu0
        %v2599 = vadd.f32 0.0, %v2598
        %v2600 = vpop.f32.mrf.mxu0
        %v2601 = vadd.f32 0.0, %v2600
        %2602 = vdwg.mxu0
        %v2603 = vmul.f32 %v2599, 0.088388346
        %v2604 = vmul.f32 %v2601, 0.088388346
        %v2605 = vadd.f32 %v2603, %v823
        %v2606 = vadd.f32 %v2604, %v823
        %v2607 = vsel %vm1139, %v2605, -inf
        %2608 = vmax.xlane.f32.xlu0 %v2607
        %v2609 = vpop.xlane.xlu0 %2608
        %v2610 = vsel %vm1139, %v2606, -inf
        %2611 = vmax.xlane.f32.xlu0 %v2610
        %v2612 = vpop.xlane.xlu0 %2611
        %v2613 = vsub.f32 %v2605, %v2609
        %v2614 = vsub.f32 %v2606, %v2612
        %v2615 = vmul.f32 %v2613, 1.442695
        %v2616 = vpow.pop %v2615
        %v2617 = vmul.f32 %v2614, 1.442695
        %v2618 = vpow.pop %v2617
        %v2619 = vsel %vm1139, %v2616, 0.0
        %2620 = vadd.xlane.f32.xlu0 %v2619
        %v2621 = vpop.xlane.xlu0 %2620
        %v2622 = vsel %vm1139, %v2618, 0.0
        %2623 = vadd.xlane.f32.xlu0 %v2622
        %v2624 = vpop.xlane.xlu0 %2623
        %v2625 = vrcp.pop %v2621
        %v2626 = vrcp.pop %v2624
        %v2627 = vmul.f32 %v2616, %v2625
        %v2628 = vmul.f32 %v2618, %v2626
        %v2629 = vpack.c.bf16 %v2628, %v2627
        %2630 = vrot.lane.b32.xlu0 %v2429, 64
        %v2631 = vpop.permute.xlu0 %2630
        %v2634 = vsel %vm1139, %v2629, 0
        %2636 = vmatpush.bf16.msra.mxu0 0
        %2637 = vmatpush.bf16.msra.mxu0 0
        %2638 = vmatpush.bf16.msra.mxu0 0
        %2639 = vmatpush.bf16.msra.mxu0 0
        %2640 = vmatpush.bf16.msra.mxu0 0
        %2641 = vmatpush.bf16.msra.mxu0 0
        %2642 = vmatpush.bf16.msra.mxu0 0
        %2643 = vmatpush.bf16.msra.mxu0 %v2631
        %2644 = vmatmul.bf16.gmra.mxu0 %v2634
        %v2645 = vpop.f32.mrf.mxu0
        %v2646 = vadd.f32 0.0, %v2645
        %v2647 = vpop.f32.mrf.mxu0
        %v2648 = vadd.f32 0.0, %v2647
        %2649 = vdwg.mxu0
        %v2650 = vpack.c.bf16 %v2648, %v2646
        %v2655 = vunpack.c.l.b16 %v2362
        %v2656 = vunpack.c.l.b16 %v2363
        %v2657 = vunpack.c.l.b16 %v2364
        %v2658 = vunpack.c.l.b16 %v2365
        %v2659 = vpack.c.b16 %v2656, %v2655
        %v2660 = vpack.c.b16 %v2658, %v2657
        %v2664 = vsel %vm1114, %v2650, 0
        %2666 = vmatpush.bf16.msra.mxu0 0
        %2667 = vmatpush.bf16.msra.mxu0 0
        %2668 = vmatpush.bf16.msra.mxu0 0
        %2669 = vmatpush.bf16.msra.mxu0 0
        %2670 = vmatpush.bf16.msra.mxu0 0
        %2671 = vmatpush.bf16.msra.mxu0 0
        %2672 = vmatpush.bf16.msra.mxu0 %v2660
        %2673 = vmatpush.bf16.msra.mxu0 %v2659
        %2674 = vmatmul.bf16.gmra.mxu0 %v2664
        %v2675 = vpop.f32.mrf.mxu0
        %v2676 = vadd.f32 0.0, %v2675
        %v2677 = vpop.f32.mrf.mxu0
        %v2678 = vadd.f32 0.0, %v2677
        %2679 = vdwg.mxu0
        %v2680 = vadd.f32 %v2575, %v2676
        %v2681 = vadd.f32 %v2577, %v2678
        %2682 = vrot.lane.b32.xlu0 %v2374, 32
        %v2683 = vpop.permute.xlu0 %2682
        %2684 = vrot.lane.b32.xlu0 %v2377, 32
        %v2685 = vpop.permute.xlu0 %2684
        %v2687 = vsel %vm1114, %v2683, 0
        %v2690 = vsel %vm1114, %v2685, 0
        %2692 = vmatpush.bf16.xpose.msra.mxu0 0
        %2693 = vmatpush.bf16.xpose.msra.mxu0 0
        %2694 = vmatpush.bf16.xpose.msra.mxu0 0
        %2695 = vmatpush.bf16.xpose.msra.mxu0 0
        %2696 = vmatpush.bf16.xpose.msra.mxu0 0
        %2697 = vmatpush.bf16.xpose.msra.mxu0 0
        %2698 = vmatpush.bf16.xpose.msra.mxu0 0
        %2699 = vmatpush.bf16.xpose.msra.mxu0 %v2690
        %2700 = vmatmul.bf16.gmra.mxu0 %v2687
        %v2701 = vpop.f32.mrf.mxu0
        %v2702 = vadd.f32 0.0, %v2701
        %v2703 = vpop.f32.mrf.mxu0
        %v2704 = vadd.f32 0.0, %v2703
        %2705 = vdwg.mxu0
        %v2706 = vmul.f32 %v2702, 0.088388346
        %v2707 = vmul.f32 %v2704, 0.088388346
        %v2708 = vadd.f32 %v2706, %v823
        %v2709 = vadd.f32 %v2707, %v823
        %v2710 = vsel %vm1139, %v2708, -inf
        %2711 = vmax.xlane.f32.xlu0 %v2710
        %v2712 = vpop.xlane.xlu0 %2711
        %v2713 = vsel %vm1139, %v2709, -inf
        %2714 = vmax.xlane.f32.xlu0 %v2713
        %v2715 = vpop.xlane.xlu0 %2714
        %v2716 = vsub.f32 %v2708, %v2712
        %v2717 = vsub.f32 %v2709, %v2715
        %v2718 = vmul.f32 %v2716, 1.442695
        %v2719 = vpow.pop %v2718
        %v2720 = vmul.f32 %v2717, 1.442695
        %v2721 = vpow.pop %v2720
        %v2722 = vsel %vm1139, %v2719, 0.0
        %2723 = vadd.xlane.f32.xlu0 %v2722
        %v2724 = vpop.xlane.xlu0 %2723
        %v2725 = vsel %vm1139, %v2721, 0.0
        %2726 = vadd.xlane.f32.xlu0 %v2725
        %v2727 = vpop.xlane.xlu0 %2726
        %v2728 = vrcp.pop %v2724
        %v2729 = vrcp.pop %v2727
        %v2730 = vmul.f32 %v2719, %v2728
        %v2731 = vmul.f32 %v2721, %v2729
        %v2732 = vpack.c.bf16 %v2731, %v2730
        %2733 = vrot.lane.b32.xlu0 %v2429, 32
        %v2734 = vpop.permute.xlu0 %2733
        %v2737 = vsel %vm1139, %v2732, 0
        %2739 = vmatpush.bf16.msra.mxu0 0
        %2740 = vmatpush.bf16.msra.mxu0 0
        %2741 = vmatpush.bf16.msra.mxu0 0
        %2742 = vmatpush.bf16.msra.mxu0 0
        %2743 = vmatpush.bf16.msra.mxu0 0
        %2744 = vmatpush.bf16.msra.mxu0 0
        %2745 = vmatpush.bf16.msra.mxu0 0
        %2746 = vmatpush.bf16.msra.mxu0 %v2734
        %2747 = vmatmul.bf16.gmra.mxu0 %v2737
        %v2748 = vpop.f32.mrf.mxu0
        %v2749 = vadd.f32 0.0, %v2748
        %v2750 = vpop.f32.mrf.mxu0
        %v2751 = vadd.f32 0.0, %v2750
        %2752 = vdwg.mxu0
        %v2753 = vpack.c.bf16 %v2751, %v2749
        %v2758 = vunpack.c.l.b16 %v2366
        %v2759 = vunpack.c.l.b16 %v2367
        %v2760 = vunpack.c.l.b16 %v2368
        %v2761 = vunpack.c.l.b16 %v2369
        %v2762 = vpack.c.b16 %v2759, %v2758
        %v2763 = vpack.c.b16 %v2761, %v2760
        %v2767 = vsel %vm1114, %v2753, 0
        %2769 = vmatpush.bf16.msra.mxu0 0
        %2770 = vmatpush.bf16.msra.mxu0 0
        %2771 = vmatpush.bf16.msra.mxu0 0
        %2772 = vmatpush.bf16.msra.mxu0 0
        %2773 = vmatpush.bf16.msra.mxu0 0
        %2774 = vmatpush.bf16.msra.mxu0 0
        %2775 = vmatpush.bf16.msra.mxu0 %v2763
        %2776 = vmatpush.bf16.msra.mxu0 %v2762
        %2777 = vmatmul.bf16.gmra.mxu0 %v2767
        %v2778 = vpop.f32.mrf.mxu0
        %v2779 = vadd.f32 0.0, %v2778
        %v2780 = vpop.f32.mrf.mxu0
        %v2781 = vadd.f32 0.0, %v2780
        %2782 = vdwg.mxu0
        %v2783 = vadd.f32 %v2680, %v2779
        %v2784 = vadd.f32 %v2681, %v2781
        %v2785 = vadd.f32 %v2089, %v2783
        %v2786 = vadd.f32 %v2090, %v2784
        %s2787 = scalar_lea.vmem %s8, 1
        %v2788 = vld [vmem:[%s2787] sm:$0x1]
        %v2790 = vperm.slane %v2788, 0
        %v2792 = vadd.f32 %v2785, %v2790
        %v2793 = vadd.f32 %v2786, %v2790
        %s2794 = scalar_lea.vmem [#allocation7], 1
        %v2795 = vld [vmem:[%s2794] sm:$0x1]
        %s2796 = scalar_lea.vmem [#allocation9], 1
        %v2797 = vld [vmem:[%s2796] sm:$0x1]
        %2798 = vadd.xlane.f32.xlu0 %v2792
        %v2799 = vpop.xlane.xlu0 %2798
        %2800 = vadd.xlane.f32.xlu0 %v2793
        %v2801 = vpop.xlane.xlu0 %2800
        %v2802 = vmul.f32 %v2799, %v836
        %v2803 = vmul.f32 %v2801, %v836
        %v2804 = vsub.f32 %v2792, %v2802
        %v2805 = vsub.f32 %v2793, %v2803
        %v2806 = vmul.f32 %v2804, %v2804
        %v2807 = vmul.f32 %v2805, %v2805
        %2808 = vadd.xlane.f32.xlu0 %v2806
        %v2809 = vpop.xlane.xlu0 %2808
        %2810 = vadd.xlane.f32.xlu0 %v2807
        %v2811 = vpop.xlane.xlu0 %2810
        %v2812 = vmul.f32 %v2809, %v836
        %v2813 = vmul.f32 %v2811, %v836
        %v2814 = vadd.f32 %v2812, 1e-06
        %v2815 = vadd.f32 %v2813, 1e-06
        %v2816 = vrsqrt.pop %v2814
        %v2817 = vmul.f32 %v2816, %v2814
        %v2818 = vmul.f32 %v2817, %v2816
        %v2819 = vmul.f32 0.5, %v2818
        %v2820 = vsub.f32 1.5, %v2819
        %v2821 = vmul.f32 %v2816, %v2820
        %vm2822 = vweird.f32 %v2814
        %vm2823 = vweird.f32 %v2816
        %vm2824 = vmor %vm2822, %vm2823
        %v2825 = vsel %vm2824, %v2816, %v2821
        %v2826 = vrsqrt.pop %v2815
        %v2827 = vmul.f32 %v2826, %v2815
        %v2828 = vmul.f32 %v2827, %v2826
        %v2829 = vmul.f32 0.5, %v2828
        %v2830 = vsub.f32 1.5, %v2829
        %v2831 = vmul.f32 %v2826, %v2830
        %vm2832 = vweird.f32 %v2815
        %vm2833 = vweird.f32 %v2826
        %vm2834 = vmor %vm2832, %vm2833
        %v2835 = vsel %vm2834, %v2826, %v2831
        %v2836 = vmul.f32 %v2804, %v2825
        %v2837 = vmul.f32 %v2805, %v2835
        %v2839 = vperm.slane %v2795, 0
        %v2841 = vmul.f32 %v2836, %v2839
        %v2842 = vmul.f32 %v2837, %v2839
        %v2844 = vperm.slane %v2797, 0
        %v2846 = vadd.f32 %v2841, %v2844
        %v2847 = vadd.f32 %v2842, %v2844
        %v2848 = vpack.c.bf16 %v2847, %v2846
        %s2849 = scalar_lea.vmem %s11, 192
        %v2850 = vld [vmem:[%s2849] sm:$0xff]
        %v2851 = vld [vmem:[%s2849 + $0x8] sm:$0xf]
        %v2852 = vld [vmem:[%s2849 + $0xc] sm:$0xff]
        %v2853 = vld [vmem:[%s2849 + $0x14] sm:$0xf]
        %v2854 = vld [vmem:[%s2849 + $0x18] sm:$0xff]
        %v2855 = vld [vmem:[%s2849 + $0x20] sm:$0xf]
        %v2856 = vld [vmem:[%s2849 + $0x24] sm:$0xff]
        %v2857 = vld [vmem:[%s2849 + $0x2c] sm:$0xf]
        %v2858 = vld [vmem:[%s2849 + $0x30] sm:$0xff]
        %v2859 = vld [vmem:[%s2849 + $0x38] sm:$0xf]
        %v2860 = vld [vmem:[%s2849 + $0x3c] sm:$0xff]
        %v2861 = vld [vmem:[%s2849 + $0x44] sm:$0xf]
        %v2862 = vld [vmem:[%s2849 + $0x48] sm:$0xff]
        %v2863 = vld [vmem:[%s2849 + $0x50] sm:$0xf]
        %v2864 = vld [vmem:[%s2849 + $0x54] sm:$0xff]
        %v2865 = vld [vmem:[%s2849 + $0x5c] sm:$0xf]
        %v2866 = vld [vmem:[%s2849 + $0x60] sm:$0xff]
        %v2867 = vld [vmem:[%s2849 + $0x68] sm:$0xf]
        %v2868 = vld [vmem:[%s2849 + $0x6c] sm:$0xff]
        %v2869 = vld [vmem:[%s2849 + $0x74] sm:$0xf]
        %v2870 = vld [vmem:[%s2849 + $0x78] sm:$0xff]
        %v2871 = vld [vmem:[%s2849 + $0x80] sm:$0xf]
        %v2872 = vld [vmem:[%s2849 + $0x84] sm:$0xff]
        %v2873 = vld [vmem:[%s2849 + $0x8c] sm:$0xf]
        %v2874 = vld [vmem:[%s2849 + $0x90] sm:$0xff]
        %v2875 = vld [vmem:[%s2849 + $0x98] sm:$0xf]
        %v2876 = vld [vmem:[%s2849 + $0x9c] sm:$0xff]
        %v2877 = vld [vmem:[%s2849 + $0xa4] sm:$0xf]
        %v2878 = vld [vmem:[%s2849 + $0xa8] sm:$0xff]
        %v2879 = vld [vmem:[%s2849 + $0xb0] sm:$0xf]
        %v2880 = vld [vmem:[%s2849 + $0xb4] sm:$0xff]
        %v2881 = vld [vmem:[%s2849 + $0xbc] sm:$0xf]
        %s2882 = scalar_lea.vmem [#allocation10], 3
        %v2883 = vld [vmem:[%s2882] sm:$0x7]
        %v2885 = vperm.slane %v2883, 0
        %v2886 = vperm.slane %v2883, 1
        %v2887 = vperm.slane %v2883, 2
        %v2923 = vunpack.c.l.b16 %v2850
        %v2924 = vunpack.c.h.b16 %v2850
        %v2925 = vunpack.c.l.b16 %v2851
        %v2926 = vunpack.c.l.b16 %v2852
        %v2927 = vunpack.c.h.b16 %v2852
        %v2928 = vunpack.c.l.b16 %v2853
        %v2929 = vunpack.c.l.b16 %v2854
        %v2930 = vunpack.c.h.b16 %v2854
        %v2931 = vunpack.c.l.b16 %v2855
        %v2932 = vunpack.c.l.b16 %v2856
        %v2933 = vunpack.c.h.b16 %v2856
        %v2934 = vunpack.c.l.b16 %v2857
        %v2935 = vunpack.c.l.b16 %v2858
        %v2936 = vunpack.c.h.b16 %v2858
        %v2937 = vunpack.c.l.b16 %v2859
        %v2938 = vunpack.c.l.b16 %v2860
        %v2939 = vunpack.c.h.b16 %v2860
        %v2940 = vunpack.c.l.b16 %v2861
        %v2941 = vunpack.c.l.b16 %v2862
        %v2942 = vunpack.c.h.b16 %v2862
        %v2943 = vunpack.c.l.b16 %v2863
        %v2944 = vunpack.c.l.b16 %v2864
        %v2945 = vunpack.c.h.b16 %v2864
        %v2946 = vunpack.c.l.b16 %v2865
        %v2947 = vunpack.c.l.b16 %v2866
        %v2948 = vunpack.c.h.b16 %v2866
        %v2949 = vunpack.c.l.b16 %v2867
        %v2950 = vunpack.c.l.b16 %v2868
        %v2951 = vunpack.c.h.b16 %v2868
        %v2952 = vunpack.c.l.b16 %v2869
        %v2953 = vunpack.c.l.b16 %v2870
        %v2954 = vunpack.c.h.b16 %v2870
        %v2955 = vunpack.c.l.b16 %v2871
        %v2956 = vunpack.c.l.b16 %v2872
        %v2957 = vunpack.c.h.b16 %v2872
        %v2958 = vunpack.c.l.b16 %v2873
        %v2959 = vunpack.c.l.b16 %v2874
        %v2960 = vunpack.c.h.b16 %v2874
        %v2961 = vunpack.c.l.b16 %v2875
        %v2962 = vunpack.c.l.b16 %v2876
        %v2963 = vunpack.c.h.b16 %v2876
        %v2964 = vunpack.c.l.b16 %v2877
        %v2965 = vunpack.c.l.b16 %v2878
        %v2966 = vunpack.c.h.b16 %v2878
        %v2967 = vunpack.c.l.b16 %v2879
        %v2968 = vunpack.c.l.b16 %v2880
        %v2969 = vunpack.c.h.b16 %v2880
        %v2970 = vunpack.c.l.b16 %v2881
        %v2971 = vpack.c.b16 %v2926, %v2923
        %v2972 = vpack.c.b16 %v2927, %v2924
        %v2973 = vpack.c.b16 %v2928, %v2925
        %v2974 = vpack.c.b16 %v2932, %v2929
        %v2975 = vpack.c.b16 %v2933, %v2930
        %v2976 = vpack.c.b16 %v2934, %v2931
        %v2977 = vpack.c.b16 %v2938, %v2935
        %v2978 = vpack.c.b16 %v2939, %v2936
        %v2979 = vpack.c.b16 %v2940, %v2937
        %v2980 = vpack.c.b16 %v2944, %v2941
        %v2981 = vpack.c.b16 %v2945, %v2942
        %v2982 = vpack.c.b16 %v2946, %v2943
        %v2983 = vpack.c.b16 %v2950, %v2947
        %v2984 = vpack.c.b16 %v2951, %v2948
        %v2985 = vpack.c.b16 %v2952, %v2949
        %v2986 = vpack.c.b16 %v2956, %v2953
        %v2987 = vpack.c.b16 %v2957, %v2954
        %v2988 = vpack.c.b16 %v2958, %v2955
        %v2989 = vpack.c.b16 %v2962, %v2959
        %v2990 = vpack.c.b16 %v2963, %v2960
        %v2991 = vpack.c.b16 %v2964, %v2961
        %v2992 = vpack.c.b16 %v2968, %v2965
        %v2993 = vpack.c.b16 %v2969, %v2966
        %v2994 = vpack.c.b16 %v2970, %v2967
        %3019 = vmatpush.bf16.msra.mxu0 %v2992
        %3020 = vmatpush.bf16.msra.mxu0 %v2989
        %3021 = vmatpush.bf16.msra.mxu0 %v2986
        %3022 = vmatpush.bf16.msra.mxu0 %v2983
        %3023 = vmatpush.bf16.msra.mxu0 %v2980
        %3024 = vmatpush.bf16.msra.mxu0 %v2977
        %3025 = vmatpush.bf16.msra.mxu0 %v2974
        %3026 = vmatpush.bf16.msra.mxu0 %v2971
        %3027 = vmatmul.bf16.gmra.mxu0 %v2848
        %v3028 = vpop.f32.mrf.mxu0
        %v3029 = vadd.f32 %v2885, %v3028
        %v3030 = vpop.f32.mrf.mxu0
        %v3031 = vadd.f32 %v2885, %v3030
        %3032 = vdwg.mxu0
        %3033 = vmatpush.bf16.msra.mxu0 %v2993
        %3034 = vmatpush.bf16.msra.mxu0 %v2990
        %3035 = vmatpush.bf16.msra.mxu0 %v2987
        %3036 = vmatpush.bf16.msra.mxu0 %v2984
        %3037 = vmatpush.bf16.msra.mxu0 %v2981
        %3038 = vmatpush.bf16.msra.mxu0 %v2978
        %3039 = vmatpush.bf16.msra.mxu0 %v2975
        %3040 = vmatpush.bf16.msra.mxu0 %v2972
        %3041 = vmatmul.bf16.gmra.mxu0 %v2848
        %v3042 = vpop.f32.mrf.mxu0
        %v3043 = vadd.f32 %v2886, %v3042
        %v3044 = vpop.f32.mrf.mxu0
        %v3045 = vadd.f32 %v2886, %v3044
        %3046 = vdwg.mxu0
        %3047 = vmatpush.bf16.msra.mxu0 %v2994
        %3048 = vmatpush.bf16.msra.mxu0 %v2991
        %3049 = vmatpush.bf16.msra.mxu0 %v2988
        %3050 = vmatpush.bf16.msra.mxu0 %v2985
        %3051 = vmatpush.bf16.msra.mxu0 %v2982
        %3052 = vmatpush.bf16.msra.mxu0 %v2979
        %3053 = vmatpush.bf16.msra.mxu0 %v2976
        %3054 = vmatpush.bf16.msra.mxu0 %v2973
        %3055 = vmatmul.bf16.gmra.mxu0 %v2848
        %v3056 = vpop.f32.mrf.mxu0
        %v3057 = vadd.f32 %v2887, %v3056
        %v3058 = vpop.f32.mrf.mxu0
        %v3059 = vadd.f32 %v2887, %v3058
        %3060 = vdwg.mxu0
        %v3061 = vmul.f32 %v3029, 0.5
        %v3062 = vmul.f32 %v3043, 0.5
        %v3063 = vmul.f32 %v3057, 0.5
        %v3064 = vmul.f32 %v3031, 0.5
        %v3065 = vmul.f32 %v3045, 0.5
        %v3066 = vmul.f32 %v3059, 0.5
        %v3067 = vmul.f32 %v3029, 0.044715
        %v3068 = vmul.f32 %v3043, 0.044715
        %v3069 = vmul.f32 %v3057, 0.044715
        %v3070 = vmul.f32 %v3031, 0.044715
        %v3071 = vmul.f32 %v3045, 0.044715
        %v3072 = vmul.f32 %v3059, 0.044715
        %v3073 = vmul.f32 %v3067, %v3029
        %v3074 = vmul.f32 %v3068, %v3043
        %v3075 = vmul.f32 %v3069, %v3057
        %v3076 = vmul.f32 %v3070, %v3031
        %v3077 = vmul.f32 %v3071, %v3045
        %v3078 = vmul.f32 %v3072, %v3059
        %v3079 = vmul.f32 %v3073, %v3029
        %v3080 = vmul.f32 %v3074, %v3043
        %v3081 = vmul.f32 %v3075, %v3057
        %v3082 = vmul.f32 %v3076, %v3031
        %v3083 = vmul.f32 %v3077, %v3045
        %v3084 = vmul.f32 %v3078, %v3059
        %v3085 = vadd.f32 %v3029, %v3079
        %v3086 = vadd.f32 %v3043, %v3080
        %v3087 = vadd.f32 %v3057, %v3081
        %v3088 = vadd.f32 %v3031, %v3082
        %v3089 = vadd.f32 %v3045, %v3083
        %v3090 = vadd.f32 %v3059, %v3084
        %v3091 = vmul.f32 %v3085, 0.7978846
        %v3092 = vmul.f32 %v3086, 0.7978846
        %v3093 = vmul.f32 %v3087, 0.7978846
        %v3094 = vmul.f32 %v3088, 0.7978846
        %v3095 = vmul.f32 %v3089, 0.7978846
        %v3096 = vmul.f32 %v3090, 0.7978846
        %v3097 = vtanh.pop %v3091
        %v3098 = vtanh.pop %v3092
        %v3099 = vtanh.pop %v3093
        %v3100 = vtanh.pop %v3094
        %v3101 = vtanh.pop %v3095
        %v3102 = vtanh.pop %v3096
        %v3103 = vadd.f32 %v3097, 1.0
        %v3104 = vadd.f32 %v3098, 1.0
        %v3105 = vadd.f32 %v3099, 1.0
        %v3106 = vadd.f32 %v3100, 1.0
        %v3107 = vadd.f32 %v3101, 1.0
        %v3108 = vadd.f32 %v3102, 1.0
        %v3109 = vmul.f32 %v3061, %v3103
        %v3110 = vmul.f32 %v3062, %v3104
        %v3111 = vmul.f32 %v3063, %v3105
        %v3112 = vmul.f32 %v3064, %v3106
        %v3113 = vmul.f32 %v3065, %v3107
        %v3114 = vmul.f32 %v3066, %v3108
        %v3115 = vpack.c.bf16 %v3112, %v3109
        %v3116 = vpack.c.bf16 %v3113, %v3110
        %v3117 = vpack.c.bf16 %v3114, %v3111
        %s3118 = scalar_lea.vmem [#allocation12], 192
        %v3119 = vld [vmem:[%s3118] sm:$0xf]
        %v3120 = vld [vmem:[%s3118 + $0x4] sm:$0xf]
        %v3121 = vld [vmem:[%s3118 + $0x8] sm:$0xf]
        %v3122 = vld [vmem:[%s3118 + $0xc] sm:$0xf]
        %v3123 = vld [vmem:[%s3118 + $0x10] sm:$0xf]
        %v3124 = vld [vmem:[%s3118 + $0x14] sm:$0xf]
        %v3125 = vld [vmem:[%s3118 + $0x18] sm:$0xf]
        %v3126 = vld [vmem:[%s3118 + $0x1c] sm:$0xf]
        %v3127 = vld [vmem:[%s3118 + $0x20] sm:$0xf]
        %v3128 = vld [vmem:[%s3118 + $0x24] sm:$0xf]
        %v3129 = vld [vmem:[%s3118 + $0x28] sm:$0xf]
        %v3130 = vld [vmem:[%s3118 + $0x2c] sm:$0xf]
        %v3131 = vld [vmem:[%s3118 + $0x30] sm:$0xf]
        %v3132 = vld [vmem:[%s3118 + $0x34] sm:$0xf]
        %v3133 = vld [vmem:[%s3118 + $0x38] sm:$0xf]
        %v3134 = vld [vmem:[%s3118 + $0x3c] sm:$0xf]
        %v3135 = vld [vmem:[%s3118 + $0x40] sm:$0xf]
        %v3136 = vld [vmem:[%s3118 + $0x44] sm:$0xf]
        %v3137 = vld [vmem:[%s3118 + $0x48] sm:$0xf]
        %v3138 = vld [vmem:[%s3118 + $0x4c] sm:$0xf]
        %v3139 = vld [vmem:[%s3118 + $0x50] sm:$0xf]
        %v3140 = vld [vmem:[%s3118 + $0x54] sm:$0xf]
        %v3141 = vld [vmem:[%s3118 + $0x58] sm:$0xf]
        %v3142 = vld [vmem:[%s3118 + $0x5c] sm:$0xf]
        %v3143 = vld [vmem:[%s3118 + $0x60] sm:$0xf]
        %v3144 = vld [vmem:[%s3118 + $0x64] sm:$0xf]
        %v3145 = vld [vmem:[%s3118 + $0x68] sm:$0xf]
        %v3146 = vld [vmem:[%s3118 + $0x6c] sm:$0xf]
        %v3147 = vld [vmem:[%s3118 + $0x70] sm:$0xf]
        %v3148 = vld [vmem:[%s3118 + $0x74] sm:$0xf]
        %v3149 = vld [vmem:[%s3118 + $0x78] sm:$0xf]
        %v3150 = vld [vmem:[%s3118 + $0x7c] sm:$0xf]
        %v3151 = vld [vmem:[%s3118 + $0x80] sm:$0xf]
        %v3152 = vld [vmem:[%s3118 + $0x84] sm:$0xf]
        %v3153 = vld [vmem:[%s3118 + $0x88] sm:$0xf]
        %v3154 = vld [vmem:[%s3118 + $0x8c] sm:$0xf]
        %v3155 = vld [vmem:[%s3118 + $0x90] sm:$0xf]
        %v3156 = vld [vmem:[%s3118 + $0x94] sm:$0xf]
        %v3157 = vld [vmem:[%s3118 + $0x98] sm:$0xf]
        %v3158 = vld [vmem:[%s3118 + $0x9c] sm:$0xf]
        %v3159 = vld [vmem:[%s3118 + $0xa0] sm:$0xf]
        %v3160 = vld [vmem:[%s3118 + $0xa4] sm:$0xf]
        %v3161 = vld [vmem:[%s3118 + $0xa8] sm:$0xf]
        %v3162 = vld [vmem:[%s3118 + $0xac] sm:$0xf]
        %v3163 = vld [vmem:[%s3118 + $0xb0] sm:$0xf]
        %v3164 = vld [vmem:[%s3118 + $0xb4] sm:$0xf]
        %v3165 = vld [vmem:[%s3118 + $0xb8] sm:$0xf]
        %v3166 = vld [vmem:[%s3118 + $0xbc] sm:$0xf]
        %s3167 = scalar_lea.vmem [#allocation13], 1
        %v3168 = vld [vmem:[%s3167] sm:$0x1]
        %v3170 = vperm.slane %v3168, 0
        %v3220 = vunpack.c.l.b16 %v3119
        %v3221 = vunpack.c.l.b16 %v3120
        %v3222 = vunpack.c.l.b16 %v3121
        %v3223 = vunpack.c.l.b16 %v3122
        %v3224 = vunpack.c.l.b16 %v3123
        %v3225 = vunpack.c.l.b16 %v3124
        %v3226 = vunpack.c.l.b16 %v3125
        %v3227 = vunpack.c.l.b16 %v3126
        %v3228 = vunpack.c.l.b16 %v3127
        %v3229 = vunpack.c.l.b16 %v3128
        %v3230 = vunpack.c.l.b16 %v3129
        %v3231 = vunpack.c.l.b16 %v3130
        %v3232 = vunpack.c.l.b16 %v3131
        %v3233 = vunpack.c.l.b16 %v3132
        %v3234 = vunpack.c.l.b16 %v3133
        %v3235 = vunpack.c.l.b16 %v3134
        %v3236 = vunpack.c.l.b16 %v3135
        %v3237 = vunpack.c.l.b16 %v3136
        %v3238 = vunpack.c.l.b16 %v3137
        %v3239 = vunpack.c.l.b16 %v3138
        %v3240 = vunpack.c.l.b16 %v3139
        %v3241 = vunpack.c.l.b16 %v3140
        %v3242 = vunpack.c.l.b16 %v3141
        %v3243 = vunpack.c.l.b16 %v3142
        %v3244 = vunpack.c.l.b16 %v3143
        %v3245 = vunpack.c.l.b16 %v3144
        %v3246 = vunpack.c.l.b16 %v3145
        %v3247 = vunpack.c.l.b16 %v3146
        %v3248 = vunpack.c.l.b16 %v3147
        %v3249 = vunpack.c.l.b16 %v3148
        %v3250 = vunpack.c.l.b16 %v3149
        %v3251 = vunpack.c.l.b16 %v3150
        %v3252 = vunpack.c.l.b16 %v3151
        %v3253 = vunpack.c.l.b16 %v3152
        %v3254 = vunpack.c.l.b16 %v3153
        %v3255 = vunpack.c.l.b16 %v3154
        %v3256 = vunpack.c.l.b16 %v3155
        %v3257 = vunpack.c.l.b16 %v3156
        %v3258 = vunpack.c.l.b16 %v3157
        %v3259 = vunpack.c.l.b16 %v3158
        %v3260 = vunpack.c.l.b16 %v3159
        %v3261 = vunpack.c.l.b16 %v3160
        %v3262 = vunpack.c.l.b16 %v3161
        %v3263 = vunpack.c.l.b16 %v3162
        %v3264 = vunpack.c.l.b16 %v3163
        %v3265 = vunpack.c.l.b16 %v3164
        %v3266 = vunpack.c.l.b16 %v3165
        %v3267 = vunpack.c.l.b16 %v3166
        %v3268 = vpack.c.b16 %v3221, %v3220
        %v3269 = vpack.c.b16 %v3223, %v3222
        %v3270 = vpack.c.b16 %v3225, %v3224
        %v3271 = vpack.c.b16 %v3227, %v3226
        %v3272 = vpack.c.b16 %v3229, %v3228
        %v3273 = vpack.c.b16 %v3231, %v3230
        %v3274 = vpack.c.b16 %v3233, %v3232
        %v3275 = vpack.c.b16 %v3235, %v3234
        %v3276 = vpack.c.b16 %v3237, %v3236
        %v3277 = vpack.c.b16 %v3239, %v3238
        %v3278 = vpack.c.b16 %v3241, %v3240
        %v3279 = vpack.c.b16 %v3243, %v3242
        %v3280 = vpack.c.b16 %v3245, %v3244
        %v3281 = vpack.c.b16 %v3247, %v3246
        %v3282 = vpack.c.b16 %v3249, %v3248
        %v3283 = vpack.c.b16 %v3251, %v3250
        %v3284 = vpack.c.b16 %v3253, %v3252
        %v3285 = vpack.c.b16 %v3255, %v3254
        %v3286 = vpack.c.b16 %v3257, %v3256
        %v3287 = vpack.c.b16 %v3259, %v3258
        %v3288 = vpack.c.b16 %v3261, %v3260
        %v3289 = vpack.c.b16 %v3263, %v3262
        %v3290 = vpack.c.b16 %v3265, %v3264
        %v3291 = vpack.c.b16 %v3267, %v3266
        %3316 = vmatpush.bf16.msra.mxu0 %v3275
        %3317 = vmatpush.bf16.msra.mxu0 %v3274
        %3318 = vmatpush.bf16.msra.mxu0 %v3273
        %3319 = vmatpush.bf16.msra.mxu0 %v3272
        %3320 = vmatpush.bf16.msra.mxu0 %v3271
        %3321 = vmatpush.bf16.msra.mxu0 %v3270
        %3322 = vmatpush.bf16.msra.mxu0 %v3269
        %3323 = vmatpush.bf16.msra.mxu0 %v3268
        %3324 = vmatmul.bf16.gmra.mxu0 %v3115
        %v3325 = vpop.f32.mrf.mxu0
        %v3326 = vadd.f32 %v3170, %v3325
        %v3327 = vpop.f32.mrf.mxu0
        %v3328 = vadd.f32 %v3170, %v3327
        %3329 = vdwg.mxu0
        %3330 = vmatpush.bf16.msra.mxu0 %v3283
        %3331 = vmatpush.bf16.msra.mxu0 %v3282
        %3332 = vmatpush.bf16.msra.mxu0 %v3281
        %3333 = vmatpush.bf16.msra.mxu0 %v3280
        %3334 = vmatpush.bf16.msra.mxu0 %v3279
        %3335 = vmatpush.bf16.msra.mxu0 %v3278
        %3336 = vmatpush.bf16.msra.mxu0 %v3277
        %3337 = vmatpush.bf16.msra.mxu0 %v3276
        %3338 = vmatmul.bf16.gmra.mxu0 %v3116
        %v3339 = vpop.f32.mrf.mxu0
        %v3340 = vadd.f32 %v3326, %v3339
        %v3341 = vpop.f32.mrf.mxu0
        %v3342 = vadd.f32 %v3328, %v3341
        %3343 = vdwg.mxu0
        %3344 = vmatpush.bf16.msra.mxu0 %v3291
        %3345 = vmatpush.bf16.msra.mxu0 %v3290
        %3346 = vmatpush.bf16.msra.mxu0 %v3289
        %3347 = vmatpush.bf16.msra.mxu0 %v3288
        %3348 = vmatpush.bf16.msra.mxu0 %v3287
        %3349 = vmatpush.bf16.msra.mxu0 %v3286
        %3350 = vmatpush.bf16.msra.mxu0 %v3285
        %3351 = vmatpush.bf16.msra.mxu0 %v3284
        %3352 = vmatmul.bf16.gmra.mxu0 %v3117
        %v3353 = vpop.f32.mrf.mxu0
        %v3354 = vadd.f32 %v3340, %v3353
        %v3355 = vpop.f32.mrf.mxu0
        %v3356 = vadd.f32 %v3342, %v3355
        %3357 = vdwg.mxu0
        %v3358 = vadd.f32 %v2792, %v3354
        %v3359 = vadd.f32 %v2793, %v3356
        %3360 = vst [vmem:[%s627] sm:$0xff] %v3358
        %3361 = vst [vmem:[%s627 + $0x8] sm:$0xff] %v3359
        %p3362 = scmp.lt.s32.totalorder %s31, 1
        %s3363 = scalar_select %p3362, %s31, 1
        %s3364 = smul.addr %s3363, 2
        %s3365 = smul.addr %s3364, 8
        %s3366 = scalar_lea.vmem %s15, %s3365
        // Predicated region
        $region113: #{forward.1} parent=79 // pred_check
          %p3367 = pneg %p369
        $region114: #{forward.1} parent=79 // pred_check_branch
          %3369 = sbr.rel (%p3367) target = $region116
        $region115: #{forward.1} parent=79 // pred_region
          _
        $region116: #{forward.1} parent=79 // pred_fallthru
          _
      $region80: #{forward.1} parent=5 // pred_fallthru
        _
      %p3370 = scmp.le.s32.totalorder 2, %s26
      // Predicated region
      $region117: #{forward.1} parent=5 // pred_check
        %p3371 = pneg %p3370
      $region118: #{forward.1} parent=5 // pred_check_branch
        %3373 = sbr.rel (%p3371) target = $region120
      $region119: #{forward.1} parent=5 // pred_region
        %s3374 = ssub.s32 %s26, 2
        // Predicated region
        $region121: #{forward.1} parent=119 // pred_check
          %p3375 = pneg %p375
        $region122: #{forward.1} parent=119 // pred_check_branch
          %3377 = sbr.rel (%p3375) target = $region124
        $region123: #{forward.1} parent=119 // pred_region
          %p3378 = scmp.lt.s32.totalorder %s32, 1
          %s3379 = scalar_select %p3378, %s32, 1
          %s3380 = smul.addr %s3379, 2
          %s3381 = smul.addr %s3380, 8
          %s3382 = scalar_lea.vmem %s15, %s3381
        $region124: #{forward.1} parent=119 // pred_fallthru
          _
      $region120: #{forward.1} parent=5 // pred_fallthru
        _
    $region6: #{forward.1} parent=1 // loop_footer
      %s30 = sadd.s32 1, %s26
    $region7: #{forward.1} parent=1 // loop_footer_branch
      %25 = sbr.rel target = $region3
    $region8: #{forward.1} parent=1 // loop_exit
      _
    %3383 = vsyncpa [#allocation3], 1
    %s3384 = scalar_lea.sflag [#allocation3], 1
    %3385 = vsyncpa %s3384, 1
    %3386 = vsyncpa [#allocation5], 1
    %3387 = vsyncpa [#allocation8], 1
    %3388 = vsyncpa [#allocation11], 1
    %3389 = vsyncpa [#allocation14], 1

</llo_original>
